<compile_context>
chip_gen: v7x
topology: tpu7x:2x2x1
jax: 0.10.0
libtpu: 0.0.40
codegen_flags: <defaults>
</compile_context>

<pallas_src>
import math

import jax
import jax.numpy as jnp
from jax.experimental import pallas as pl
from jax.experimental.pallas import tpu as pltpu

N = 16            # samples per loss instance
D_IN = 32         # representation width (z)
NUM_CLASSES = 4   # one-hot classes for s
RFF_DIM = 128     # random Fourier feature dim for kernel_z
SIGMA_Z = 1.0     # bandwidth of RFF kernel_z
SIGMA_S = 1.0     # bandwidth of Gaussian kernel_s

_RFF_SCALE = math.sqrt(2.0 / RFF_DIM)
# For one-hot s: ||s_i - s_j||^2 is 0 (same class) or 2 (different class), so the Gaussian
# Gram has exactly two values: 1 and koff = exp(-2 / (2*sigma^2)). Double centering kills
# the constant koff part, leaving the (1 - koff) * class-indicator part -> factorized HSIC.
_KS_OFF = math.exp(-2.0 / (2.0 * SIGMA_S * SIGMA_S))


def _eodep_kernel(z_ref, wz_ref, bz_ref, w_ref, out_ref):
    """One grid step = `bt` loss instances.

    z_ref  : (bt*N, D_IN) f32   representations (instances stacked along rows)
    wz_ref : (D_IN, RFF_DIM)    RFF projection (resident across steps)
    bz_ref : (1, RFF_DIM)       RFF phases     (resident across steps)
    w_ref  : (bt, N, C) f32     masked one-hot of s: w[b,i,c] = (y==1) * [s_i == c]
    out_ref: (1, bt) f32        per-instance hsic values (lane-dense)
    """
    bt = w_ref.shape[0]

    # ---- RFF feature map: one fused MXU pass over all bt*N rows, f32 in / f32 acc ----
    proj = jnp.dot(z_ref[...], wz_ref[...],
                   precision=jax.lax.Precision.HIGHEST,
                   preferred_element_type=jnp.float32) + bz_ref[...]
    phi = (_RFF_SCALE * jnp.cos(proj)).reshape(bt, N, RFF_DIM)        # (bt, N, R)

    # ---- masked one-hot bookkeeping (tiny VPU work; carries mask, labels, counts) ----
    w = w_ref[...]                                    # (bt, N, C)
    cnt = jnp.sum(w, axis=1, keepdims=True)           # (bt, 1, C) per-class masked count
    nm = jnp.sum(cnt, axis=2, keepdims=True)          # (bt, 1, 1) masked sample count
    inv_nm = 1.0 / jnp.maximum(nm, 1.0)               # nm == 0 -> hsic == 0 anyway
    m = jnp.sum(w, axis=2, keepdims=True)             # (bt, N, 1) mask (y == 1)
    a = w - m * (cnt * inv_nm)                        # (bt, N, C)

    # ---- hsic_b = (1 - koff) * sum_c || sum_i a[b,i,c] * phi[b,i,:] ||^2 ----
    hs = None
    for c in range(NUM_CLASSES):                      # static 4-iteration loop
        dc = jnp.sum(a[:, :, c:c + 1] * phi, axis=1)  # (bt, R)  weighted class sum
        sc = jnp.sum(dc * dc, axis=1)                 # (bt,)
        hs = sc if hs is None else hs + sc
    out_ref[...] = ((1.0 - _KS_OFF) * hs)[None, :]    # lane-dense (1, bt) store


def _masked_onehot(s_labels, y):
    """w[b, i, c] = (y[b,i] == 1) * [s_labels[b,i] == c] (built in the wrapper, not in-kernel)."""
    oh = jax.nn.one_hot(s_labels, NUM_CLASSES, dtype=jnp.float32)
    return oh * (y == 1).astype(jnp.float32)[..., None]


def eodep_loss_pallas_batched(z, s_labels, y, wz, bz):
    """Many EODEPLoss_old instances in one pallas_call.

    The batch axis is blocked: each grid step handles `bt` instances (128 for large
    batches), so the per-step pipeline/DMA overhead is amortized and the RFF projection
    runs as a single (bt*16, 32) @ (32, 128) MXU pass. Batches are zero-padded up to a
    multiple of `bt`; padded instances have an all-zero mask and contribute hsic = 0.
    """
    B = z.shape[0]
    if B <= 128:
        bt = ((B + 7) // 8) * 8          # one grid step, sublane-aligned tile
    else:
        bt = 128                          # 128 instances / step -> M = 2048 MXU rows
    n_steps = pl.cdiv(B, bt)
    Bp = n_steps * bt

    w = _masked_onehot(s_labels, y)       # (B, N, C)
    zf = z.astype(jnp.float32)
    if Bp != B:
        pad = Bp - B
        zf = jnp.pad(zf, ((0, pad), (0, 0), (0, 0)))
        w = jnp.pad(w, ((0, pad), (0, 0), (0, 0)))
    z_flat = zf.reshape(Bp * N, D_IN)     # instances stacked along rows (free outside kernel)

    out = pl.pallas_call(
        _eodep_kernel,
        out_shape=jax.ShapeDtypeStruct((1, Bp), jnp.float32),
        grid=(n_steps,),
        in_specs=[
            pl.BlockSpec((bt * N, D_IN), lambda b: (b, 0)),            # z rows of this tile
            pl.BlockSpec((D_IN, RFF_DIM), lambda b: (0, 0)),           # wz (resident)
            pl.BlockSpec((1, RFF_DIM), lambda b: (0, 0)),              # bz (resident)
            pl.BlockSpec((bt, N, NUM_CLASSES), lambda b: (b, 0, 0)),   # masked one-hot s
        ],
        out_specs=pl.BlockSpec((1, bt), lambda b: (0, b)),             # lane-dense output tile
        compiler_params=pltpu.CompilerParams(
            dimension_semantics=("parallel",)),
    )(z_flat, wz, bz, w)
    return out[0, :B]


def eodep_loss_pallas(z, s_labels, y, wz, bz):
    """Single loss instance, routed through the batched entry (no standalone gridless call)."""
    return eodep_loss_pallas_batched(z[None], s_labels[None], y[None], wz, bz)[0]


def eodep_loss_ref(z, s_labels, y, wz, bz):
    """Plain-JAX reference matching the torch forward (norm=None, one_hot_s=True), f32/HIGHEST."""
    hp = jax.lax.Precision.HIGHEST
    mask = (y == 1)
    s_oh = jax.nn.one_hot(s_labels, NUM_CLASSES, dtype=jnp.float32)
    sm = s_oh[mask]
    zm = z[mask]
    # kernel_s(s[mask]): Gaussian Gram
    sq = jnp.sum(sm * sm, axis=1)
    d2 = sq[:, None] + sq[None, :] - 2.0 * jnp.dot(sm, sm.T, precision=hp)
    phi_s = jnp.exp(-d2 / (2.0 * SIGMA_S * SIGMA_S))
    # kernel_z(z[mask]): RFF feature map
    proj = jnp.dot(zm, wz, precision=hp) + bz
    phi_z = _RFF_SCALE * jnp.cos(proj)
    # mean_center as in the torch code
    phi_z_c = phi_z - phi_z.mean(axis=0, keepdims=True)
    phi_s_c = phi_s - phi_s.mean(axis=0, keepdims=True)
    phi_s_c = phi_s_c.T - phi_s_c.T.mean(axis=0, keepdims=True)
    return jnp.trace(jnp.dot(jnp.dot(phi_z_c.T, phi_s_c, precision=hp),
                             phi_z_c, precision=hp))


if __name__ == "__main__":
    key = jax.random.PRNGKey(0)
    k_z, k_s, k_y, k_w, k_b = jax.random.split(key, 5)

    # deterministic RFF parameters for kernel_z (shared across instances)
    wz = jax.random.normal(k_w, (D_IN, RFF_DIM), dtype=jnp.float32) / SIGMA_Z
    bz = jax.random.uniform(k_b, (1, RFF_DIM), dtype=jnp.float32,
                            minval=0.0, maxval=2.0 * math.pi)

    # Tolerances: both sides are f32; typical agreement is ~1e-5 relative. The margin just
    # absorbs cos/matmul implementation differences between the EUP/MXU and XLA paths.
    RTOL, ATOL = 1e-2, 1e-3

    # ---- single instance (routes through the batched kernel) ----
    z = jax.random.normal(k_z, (N, D_IN), dtype=jnp.float32)
    s_labels = jax.random.randint(k_s, (N,), 0, NUM_CLASSES)
    y = jax.random.bernoulli(k_y, 0.5, (N,)).astype(jnp.int32)
    y = y.at[0].set(1).at[1].set(1)                 # make the mask non-trivial
    out = jax.block_until_ready(eodep_loss_pallas(z, s_labels, y, wz, bz))
    ref = eodep_loss_ref(z, s_labels, y, wz, bz)
    assert jnp.allclose(out, ref, rtol=RTOL, atol=ATOL), (out, ref)

    # ---- small batch with padding (B=5 -> one 8-instance tile) ----
    B1 = 5
    kb = jax.random.split(jax.random.PRNGKey(1), 3)
    zb = jax.random.normal(kb[0], (B1, N, D_IN), dtype=jnp.float32)
    sb = jax.random.randint(kb[1], (B1, N), 0, NUM_CLASSES)
    yb = jax.random.bernoulli(kb[2], 0.5, (B1, N)).astype(jnp.int32)
    yb = yb.at[:, 0].set(1).at[:, 1].set(1)
    outs = jax.block_until_ready(eodep_loss_pallas_batched(zb, sb, yb, wz, bz))
    for i in range(B1):
        ri = eodep_loss_ref(zb[i], sb[i], yb[i], wz, bz)
        assert jnp.allclose(outs[i], ri, rtol=RTOL, atol=ATOL), (i, outs[i], ri)

    # ---- larger batch exercising 128-instance tiles + multi-step "parallel" grid ----
    B2 = 160
    kc = jax.random.split(jax.random.PRNGKey(2), 3)
    zc = jax.random.normal(kc[0], (B2, N, D_IN), dtype=jnp.float32)
    sc = jax.random.randint(kc[1], (B2, N), 0, NUM_CLASSES)
    yc = jax.random.bernoulli(kc[2], 0.5, (B2, N)).astype(jnp.int32)
    yc = yc.at[:, 0].set(1).at[:, 1].set(1)
    outc = jax.block_until_ready(eodep_loss_pallas_batched(zc, sc, yc, wz, bz))
    for i in (0, 1, 77, 159):
        ri = eodep_loss_ref(zc[i], sc[i], yc[i], wz, bz)
        assert jnp.allclose(outc[i], ri, rtol=RTOL, atol=ATOL), (i, outc[i], ri)

    print("KERNEL_OK")
</pallas_src>

<mosaic_0001>
module attributes {stable_mosaic.version = 11 : i64} {
  func.func @_eodep_kernel(%arg0: i32, %arg1: memref<128x32xf32, #tpu.memory_space<vmem>>, %arg2: memref<32x128xf32, #tpu.memory_space<vmem>>, %arg3: memref<1x128xf32, #tpu.memory_space<vmem>>, %arg4: memref<8x16x4xf32, #tpu.memory_space<vmem>>, %arg5: memref<1x8xf32, #tpu.memory_space<vmem>>) attributes {dimension_semantics = [#tpu.dimension_semantics<parallel>], iteration_bounds = array<i64: 1>, scalar_prefetch = 0 : i64, scratch_operands = 0 : i64, tpu.core_type = #tpu.core_type<tc>, window_params = [{transform_indices = @transform_0, window_bounds = array<i64: 128, 32>}, {pipeline_mode = #tpu.pipeline_mode<synchronous>, transform_indices = @transform_1, window_bounds = array<i64: 32, 128>}, {pipeline_mode = #tpu.pipeline_mode<synchronous>, transform_indices = @transform_2, window_bounds = array<i64: 1, 128>}, {transform_indices = @transform_3, window_bounds = array<i64: 8, 16, 4>}, {transform_indices = @transform_4, window_bounds = array<i64: 1, 8>}]} {
    %c0 = arith.constant 0 : index
    %c0_0 = arith.constant 0 : index
    %0 = vector.load %arg1[%c0, %c0_0] : memref<128x32xf32, #tpu.memory_space<vmem>>, vector<128x32xf32>
    %c0_1 = arith.constant 0 : index
    %c0_2 = arith.constant 0 : index
    %1 = vector.load %arg2[%c0_1, %c0_2] : memref<32x128xf32, #tpu.memory_space<vmem>>, vector<32x128xf32>
    %cst = arith.constant dense<0.000000e+00> : vector<128x128xf32>
    %2 = tpu.matmul %0, %1, %cst {dimension_numbers = #tpu.dot_dimension_numbers<[1], [0], [0], [1], [0, 0, 1, 1], [], []>, precision = #tpu.contract_precision<fp32>} : vector<128x32xf32>, vector<32x128xf32>, vector<128x128xf32> -> vector<128x128xf32>
    %c0_3 = arith.constant 0 : index
    %c0_4 = arith.constant 0 : index
    %3 = vector.load %arg3[%c0_3, %c0_4] : memref<1x128xf32, #tpu.memory_space<vmem>>, vector<1x128xf32>
    %4 = vector.broadcast %3 : vector<1x128xf32> to vector<128x128xf32>
    %5 = arith.addf %2, %4 : vector<128x128xf32>
    %6 = math.cos %5 : vector<128x128xf32>
    %cst_5 = arith.constant 1.250000e-01 : f32
    %7 = vector.broadcast %cst_5 : f32 to vector<128x128xf32>
    %8 = arith.mulf %7, %6 : vector<128x128xf32>
    %9 = vector.shape_cast %8 : vector<128x128xf32> to vector<8x16x128xf32>
    %c0_6 = arith.constant 0 : index
    %c0_7 = arith.constant 0 : index
    %c0_8 = arith.constant 0 : index
    %10 = vector.load %arg4[%c0_6, %c0_7, %c0_8] : memref<8x16x4xf32, #tpu.memory_space<vmem>>, vector<8x16x4xf32>
    %cst_9 = arith.constant dense<0.000000e+00> : vector<8x4xf32>
    %11 = vector.multi_reduction <add>, %10, %cst_9 [1] : vector<8x16x4xf32> to vector<8x4xf32>
    %12 = vector.shape_cast %11 : vector<8x4xf32> to vector<8x1x4xf32>
    %cst_10 = arith.constant dense<0.000000e+00> : vector<8x1xf32>
    %13 = vector.multi_reduction <add>, %12, %cst_10 [2] : vector<8x1x4xf32> to vector<8x1xf32>
    %14 = vector.shape_cast %13 : vector<8x1xf32> to vector<8x1x1xf32>
    %cst_11 = arith.constant 1.000000e+00 : f32
    %15 = vector.broadcast %cst_11 : f32 to vector<8x1x1xf32>
    %16 = arith.maximumf %14, %15 : vector<8x1x1xf32>
    %cst_12 = arith.constant 1.000000e+00 : f32
    %17 = vector.broadcast %cst_12 : f32 to vector<8x1x1xf32>
    %18 = arith.divf %17, %16 : vector<8x1x1xf32>
    %cst_13 = arith.constant dense<0.000000e+00> : vector<8x16xf32>
    %19 = vector.multi_reduction <add>, %10, %cst_13 [2] : vector<8x16x4xf32> to vector<8x16xf32>
    %20 = vector.shape_cast %19 : vector<8x16xf32> to vector<8x16x1xf32>
    %21 = vector.broadcast %18 : vector<8x1x1xf32> to vector<8x1x4xf32>
    %22 = arith.mulf %12, %21 : vector<8x1x4xf32>
    %23 = vector.broadcast %20 : vector<8x16x1xf32> to vector<8x16x4xf32>
    %24 = vector.broadcast %22 : vector<8x1x4xf32> to vector<8x16x4xf32>
    %25 = arith.mulf %23, %24 : vector<8x16x4xf32>
    %26 = arith.subf %10, %25 : vector<8x16x4xf32>
    %27 = vector.extract_strided_slice %26 {offsets = [0, 0, 0], sizes = [8, 16, 1], strides = [1, 1, 1]} : vector<8x16x4xf32> to vector<8x16x1xf32>
    %28 = vector.broadcast %27 : vector<8x16x1xf32> to vector<8x16x128xf32>
    %29 = arith.mulf %28, %9 : vector<8x16x128xf32>
    %cst_14 = arith.constant dense<0.000000e+00> : vector<8x128xf32>
    %30 = vector.multi_reduction <add>, %29, %cst_14 [1] : vector<8x16x128xf32> to vector<8x128xf32>
    %31 = arith.mulf %30, %30 : vector<8x128xf32>
    %cst_15 = arith.constant dense<0.000000e+00> : vector<8xf32>
    %32 = vector.multi_reduction <add>, %31, %cst_15 [1] : vector<8x128xf32> to vector<8xf32>
    %33 = vector.extract_strided_slice %26 {offsets = [0, 0, 1], sizes = [8, 16, 1], strides = [1, 1, 1]} : vector<8x16x4xf32> to vector<8x16x1xf32>
    %34 = vector.broadcast %33 : vector<8x16x1xf32> to vector<8x16x128xf32>
    %35 = arith.mulf %34, %9 : vector<8x16x128xf32>
    %cst_16 = arith.constant dense<0.000000e+00> : vector<8x128xf32>
    %36 = vector.multi_reduction <add>, %35, %cst_16 [1] : vector<8x16x128xf32> to vector<8x128xf32>
    %37 = arith.mulf %36, %36 : vector<8x128xf32>
    %cst_17 = arith.constant dense<0.000000e+00> : vector<8xf32>
    %38 = vector.multi_reduction <add>, %37, %cst_17 [1] : vector<8x128xf32> to vector<8xf32>
    %39 = arith.addf %32, %38 : vector<8xf32>
    %40 = vector.extract_strided_slice %26 {offsets = [0, 0, 2], sizes = [8, 16, 1], strides = [1, 1, 1]} : vector<8x16x4xf32> to vector<8x16x1xf32>
    %41 = vector.broadcast %40 : vector<8x16x1xf32> to vector<8x16x128xf32>
    %42 = arith.mulf %41, %9 : vector<8x16x128xf32>
    %cst_18 = arith.constant dense<0.000000e+00> : vector<8x128xf32>
    %43 = vector.multi_reduction <add>, %42, %cst_18 [1] : vector<8x16x128xf32> to vector<8x128xf32>
    %44 = arith.mulf %43, %43 : vector<8x128xf32>
    %cst_19 = arith.constant dense<0.000000e+00> : vector<8xf32>
    %45 = vector.multi_reduction <add>, %44, %cst_19 [1] : vector<8x128xf32> to vector<8xf32>
    %46 = arith.addf %39, %45 : vector<8xf32>
    %47 = vector.extract_strided_slice %26 {offsets = [0, 0, 3], sizes = [8, 16, 1], strides = [1, 1, 1]} : vector<8x16x4xf32> to vector<8x16x1xf32>
    %48 = vector.broadcast %47 : vector<8x16x1xf32> to vector<8x16x128xf32>
    %49 = arith.mulf %48, %9 : vector<8x16x128xf32>
    %cst_20 = arith.constant dense<0.000000e+00> : vector<8x128xf32>
    %50 = vector.multi_reduction <add>, %49, %cst_20 [1] : vector<8x16x128xf32> to vector<8x128xf32>
    %51 = arith.mulf %50, %50 : vector<8x128xf32>
    %cst_21 = arith.constant dense<0.000000e+00> : vector<8xf32>
    %52 = vector.multi_reduction <add>, %51, %cst_21 [1] : vector<8x128xf32> to vector<8xf32>
    %53 = arith.addf %46, %52 : vector<8xf32>
    %cst_22 = arith.constant 0.632120549 : f32
    %54 = vector.broadcast %cst_22 : f32 to vector<8xf32>
    %55 = arith.mulf %54, %53 : vector<8xf32>
    %56 = vector.shape_cast %55 : vector<8xf32> to vector<1x8xf32>
    %c0_23 = arith.constant 0 : index
    %c0_24 = arith.constant 0 : index
    %57 = vector.load %arg5[%c0_23, %c0_24] : memref<1x8xf32, #tpu.memory_space<vmem>>, vector<1x8xf32>
    tpu.vector_store %arg5[%c0_23, %c0_24], %56 {strides = array<i32>} : memref<1x8xf32, #tpu.memory_space<vmem>>, vector<1x8xf32>,
    return
  }
  func.func @transform_0(%arg0: i32) -> (i32, i32) {
    %c0_i32 = arith.constant 0 : i32
    %c0_i32_0 = arith.constant 0 : i32
    return %arg0, %c0_i32 : i32, i32
  }
  func.func @transform_1(%arg0: i32) -> (i32, i32) {
    %c0_i32 = arith.constant 0 : i32
    %c0_i32_0 = arith.constant 0 : i32
    %c0_i32_1 = arith.constant 0 : i32
    return %c0_i32, %c0_i32_0 : i32, i32
  }
  func.func @transform_2(%arg0: i32) -> (i32, i32) {
    %c0_i32 = arith.constant 0 : i32
    %c0_i32_0 = arith.constant 0 : i32
    %c0_i32_1 = arith.constant 0 : i32
    return %c0_i32, %c0_i32_0 : i32, i32
  }
  func.func @transform_3(%arg0: i32) -> (i32, i32, i32) {
    %c0_i32 = arith.constant 0 : i32
    %c0_i32_0 = arith.constant 0 : i32
    %c0_i32_1 = arith.constant 0 : i32
    return %arg0, %c0_i32, %c0_i32_0 : i32, i32, i32
  }
  func.func @transform_4(%arg0: i32) -> (i32, i32) {
    %c0_i32 = arith.constant 0 : i32
    %c0_i32_0 = arith.constant 0 : i32
    return %c0_i32, %arg0 : i32, i32
  }
}

</mosaic_0001>

<llo_original>
// kernel: tpu_custom_call.1
$region0: #{tpu_custom_call.1}
  #allocation0 [shape = 'u32[]', space=smem, size = 0x4, offset = 0x4, fixed_abs, tag = 'smem constant byte address 0x4 - core index']
  #allocation1 [shape = 'u32[144,128]{1,0:T(1,128)}', space=vmem, size = 0x12000, scoped, tag = 'internal scratch']
  %s0 = inlined_call_operand.vmem [shape: f32[128,32], index: 0, kind: input, shape index: {}]
  %s1 = inlined_call_operand.vmem [shape: f32[32,128], index: 1, kind: input, shape index: {}]
  %s2 = inlined_call_operand.vmem [shape: f32[1,128], index: 2, kind: input, shape index: {}]
  %s3 = inlined_call_operand.vmem [shape: f32[8,16,4], index: 3, kind: input, shape index: {}]
  %s4 = inlined_call_operand.hbm [shape: f32[1,8], index: 4, kind: output, shape index: {}]
  %s5 = sld [smem:[#allocation0]]
  $region26: #{tpu_custom_call.1} parent=0
    _
  %s7 = ssub.s32 1, %s5
  %s8 = scalar_select 0, %s7, %s5
  $region1: #{tpu_custom_call.1} parent=0
    #allocation2 [shape = 'u8[512]{0}', space=vmem, size = 0x400, scoped, tag = 'output window, operand 0, single buffered']
    #allocation3 [shape = 's32[1]{0}', space=sflag, size = 0x4, scoped, tag = 'scoped memory for tpu_custom_call.1']
    %9 = vsyncpa [#allocation3], 0
    // Predicated region
    $region2: #{tpu_custom_call.1} parent=1 // pred_check
      _
    $region3: #{tpu_custom_call.1} parent=1 // pred_check_branch
      %11 = sbr.rel (0) target = $region5
    $region4: #{tpu_custom_call.1} parent=1 // pred_region
      _
    $region5: #{tpu_custom_call.1} parent=1 // pred_fallthru
      _
    // Predicated region
    $region6: #{tpu_custom_call.1} parent=1 // pred_check
      _
    $region7: #{tpu_custom_call.1} parent=1 // pred_check_branch
      %13 = sbr.rel (0) target = $region9
    $region8: #{tpu_custom_call.1} parent=1 // pred_region
      _
    $region9: #{tpu_custom_call.1} parent=1 // pred_fallthru
      _
    // Predicated region
    $region10: #{tpu_custom_call.1} parent=1 // pred_check
      _
    $region11: #{tpu_custom_call.1} parent=1 // pred_check_branch
      %15 = sbr.rel (0) target = $region13
    $region12: #{tpu_custom_call.1} parent=1 // pred_region
      _
    $region13: #{tpu_custom_call.1} parent=1 // pred_fallthru
      _
    // Predicated region
    $region14: #{tpu_custom_call.1} parent=1 // pred_check
      _
    $region15: #{tpu_custom_call.1} parent=1 // pred_check_branch
      %17 = sbr.rel (0) target = $region17
    $region16: #{tpu_custom_call.1} parent=1 // pred_region
      _
    $region17: #{tpu_custom_call.1} parent=1 // pred_fallthru
      _
    %v18 = vld [vmem:[%s0] sm:$0xff]
    %v19 = vld [vmem:[%s0 + $0x8] sm:$0xff]
    %v20 = vld [vmem:[%s0 + $0x10] sm:$0xff]
    %v21 = vld [vmem:[%s0 + $0x18] sm:$0xff]
    %v22 = vld [vmem:[%s0 + $0x20] sm:$0xff]
    %v23 = vld [vmem:[%s0 + $0x28] sm:$0xff]
    %v24 = vld [vmem:[%s0 + $0x30] sm:$0xff]
    %v25 = vld [vmem:[%s0 + $0x38] sm:$0xff]
    %v26 = vld [vmem:[%s0 + $0x40] sm:$0xff]
    %v27 = vld [vmem:[%s0 + $0x48] sm:$0xff]
    %v28 = vld [vmem:[%s0 + $0x50] sm:$0xff]
    %v29 = vld [vmem:[%s0 + $0x58] sm:$0xff]
    %v30 = vld [vmem:[%s0 + $0x60] sm:$0xff]
    %v31 = vld [vmem:[%s0 + $0x68] sm:$0xff]
    %v32 = vld [vmem:[%s0 + $0x70] sm:$0xff]
    %v33 = vld [vmem:[%s0 + $0x78] sm:$0xff]
    %v34 = vld [vmem:[%s1] sm:$0xff]
    %v35 = vld [vmem:[%s1 + $0x8] sm:$0xff]
    %v36 = vld [vmem:[%s1 + $0x10] sm:$0xff]
    %v37 = vld [vmem:[%s1 + $0x18] sm:$0xff]
    %v38 = vld [vmem:[%s2] sm:$0x1]
    %v40 = vlaneseq
    %v41 = vshrl.u32 %v40, 7
    %v42 = vsub.s32 0, %v41
    %v43 = vrot.slane %v38, %v42
    %vm45 = vcmask 261120
    %v47 = vsel %vm45, %v18, 0
    %v50 = vsel %vm45, %v19, 0
    %v53 = vsel %vm45, %v20, 0
    %v56 = vsel %vm45, %v21, 0
    %v59 = vsel %vm45, %v22, 0
    %v62 = vsel %vm45, %v23, 0
    %v65 = vsel %vm45, %v24, 0
    %v68 = vsel %vm45, %v25, 0
    %v71 = vsel %vm45, %v26, 0
    %v74 = vsel %vm45, %v27, 0
    %v77 = vsel %vm45, %v28, 0
    %v80 = vsel %vm45, %v29, 0
    %v83 = vsel %vm45, %v30, 0
    %v86 = vsel %vm45, %v31, 0
    %v89 = vsel %vm45, %v32, 0
    %v92 = vsel %vm45, %v33, 0
    %94 = vmatprep.subr.mxu0 0.0
    %v95 = vand.u32 %v34, 4294901760
    %96 = vmatpush1.msra.mxu0 %v95
    %97 = vmatprep.subr.mxu0 0.0
    %v98 = vand.u32 %v35, 4294901760
    %99 = vmatpush1.msra.mxu0 %v98
    %100 = vmatprep.subr.mxu0 0.0
    %v101 = vand.u32 %v36, 4294901760
    %102 = vmatpush1.msra.mxu0 %v101
    %103 = vmatprep.subr.mxu0 0.0
    %v104 = vand.u32 %v37, 4294901760
    %105 = vmatpush1.msra.mxu0 %v104
    %106 = vmatprep.subr.mxu0 0.0
    %107 = vmatpush1.msra.mxu0 0.0
    %108 = vmatprep.subr.mxu0 0.0
    %109 = vmatpush1.msra.mxu0 0.0
    %110 = vmatprep.subr.mxu0 0.0
    %111 = vmatpush1.msra.mxu0 0.0
    %112 = vmatprep.subr.mxu0 0.0
    %113 = vmatpush1.msra.mxu0 0.0
    %114 = vmatprep.subr.mxu0 0.0
    %115 = vmatpush1.msra.mxu0 0.0
    %116 = vmatprep.subr.mxu0 0.0
    %117 = vmatpush1.msra.mxu0 0.0
    %118 = vmatprep.subr.mxu0 0.0
    %119 = vmatpush1.msra.mxu0 0.0
    %120 = vmatprep.subr.mxu0 0.0
    %121 = vmatpush1.msra.mxu0 0.0
    %122 = vmatprep.subr.mxu0 0.0
    %123 = vmatpush1.msra.mxu0 0.0
    %124 = vmatprep.subr.mxu0 0.0
    %125 = vmatpush1.msra.mxu0 0.0
    %126 = vmatprep.subr.mxu0 0.0
    %127 = vmatpush1.msra.mxu0 0.0
    %128 = vmatprep.subr.mxu0 0.0
    %129 = vmatpush1.msra.mxu0 0.0
    %130 = vmatprep.subr.mxu0 0.0
    %131 = vmatpush1.msra.mxu0 0.0
    %132 = vmatprep.subr.mxu0 0.0
    %133 = vmatpush1.msra.mxu0 0.0
    %134 = vmatprep.subr.mxu0 0.0
    %135 = vmatpush1.msra.mxu0 0.0
    %136 = vmatprep.subr.mxu0 0.0
    %137 = vmatpush1.msra.mxu0 0.0
    %138 = vmatprep.subr.mxu0 0.0
    %139 = vmatpush1.msra.mxu0 0.0
    %140 = vmatprep.subr.mxu0 0.0
    %141 = vmatpush1.msra.mxu0 0.0
    %142 = vmatprep.subr.mxu0 0.0
    %143 = vmatpush1.msra.mxu0 0.0
    %144 = vmatprep.subr.mxu0 0.0
    %145 = vmatpush1.msra.mxu0 0.0
    %146 = vmatprep.subr.mxu0 0.0
    %147 = vmatpush1.msra.mxu0 0.0
    %148 = vmatprep.subr.mxu0 0.0
    %149 = vmatpush1.msra.mxu0 0.0
    %150 = vmatprep.subr.mxu0 0.0
    %151 = vmatpush1.msra.mxu0 0.0
    %152 = vmatprep.subr.mxu0 0.0
    %153 = vmatpush1.msra.mxu0 0.0
    %154 = vmatprep.subr.mxu0 0.0
    %155 = vmatpush1.msra.mxu0 0.0
    %156 = vmatprep.subr.mxu0 0.0
    %157 = vmatpush1.msra.mxu0 0.0
    %158 = vmatprep.subr.mxu0 0.0
    %159 = vmatpush1.msra.mxu0 0.0
    %160 = vmatprep.subr.mxu0 0.0
    %161 = vmatpush1.msra.mxu0 0.0
    %162 = vmatprep.mubr.f32.mxu0 0.0
    %v163 = vand.u32 %v47, 4294901760
    %v164 = vsub.f32 %v47, %v163
    %v165 = vand.u32 %v164, 4294901760
    %v166 = vsub.f32 %v164, %v165
    %v167 = vand.u32 %v166, 4294901760
    %168 = vmatmul.mubr.f32.gmra.mrb[0].mxu0 %v167
    %v169 = vpop.f32.mrb[0].mxu0
    %v170 = vadd.f32 %v43, %v169
    %v171 = vpop.f32.mrb[0].mxu0
    %172 = vmatprep.mubr.f32.mxu0 0.0
    %v173 = vand.u32 %v50, 4294901760
    %v174 = vsub.f32 %v50, %v173
    %v175 = vand.u32 %v174, 4294901760
    %v176 = vsub.f32 %v174, %v175
    %v177 = vand.u32 %v176, 4294901760
    %178 = vmatmul.mubr.f32.gmra.mrb[0].mxu0 %v177
    %v179 = vpop.f32.mrb[0].mxu0
    %v180 = vadd.f32 %v43, %v179
    %v181 = vpop.f32.mrb[0].mxu0
    %182 = vmatprep.mubr.f32.mxu0 0.0
    %v183 = vand.u32 %v53, 4294901760
    %v184 = vsub.f32 %v53, %v183
    %v185 = vand.u32 %v184, 4294901760
    %v186 = vsub.f32 %v184, %v185
    %v187 = vand.u32 %v186, 4294901760
    %188 = vmatmul.mubr.f32.gmra.mrb[0].mxu0 %v187
    %v189 = vpop.f32.mrb[0].mxu0
    %v190 = vadd.f32 %v43, %v189
    %v191 = vpop.f32.mrb[0].mxu0
    %192 = vmatprep.mubr.f32.mxu0 0.0
    %v193 = vand.u32 %v56, 4294901760
    %v194 = vsub.f32 %v56, %v193
    %v195 = vand.u32 %v194, 4294901760
    %v196 = vsub.f32 %v194, %v195
    %v197 = vand.u32 %v196, 4294901760
    %198 = vmatmul.mubr.f32.gmra.mrb[0].mxu0 %v197
    %v199 = vpop.f32.mrb[0].mxu0
    %v200 = vadd.f32 %v43, %v199
    %v201 = vpop.f32.mrb[0].mxu0
    %202 = vmatprep.mubr.f32.mxu0 0.0
    %v203 = vand.u32 %v59, 4294901760
    %v204 = vsub.f32 %v59, %v203
    %v205 = vand.u32 %v204, 4294901760
    %v206 = vsub.f32 %v204, %v205
    %v207 = vand.u32 %v206, 4294901760
    %208 = vmatmul.mubr.f32.gmra.mrb[0].mxu0 %v207
    %v209 = vpop.f32.mrb[0].mxu0
    %v210 = vadd.f32 %v43, %v209
    %v211 = vpop.f32.mrb[0].mxu0
    %212 = vmatprep.mubr.f32.mxu0 0.0
    %v213 = vand.u32 %v62, 4294901760
    %v214 = vsub.f32 %v62, %v213
    %v215 = vand.u32 %v214, 4294901760
    %v216 = vsub.f32 %v214, %v215
    %v217 = vand.u32 %v216, 4294901760
    %218 = vmatmul.mubr.f32.gmra.mrb[0].mxu0 %v217
    %v219 = vpop.f32.mrb[0].mxu0
    %v220 = vadd.f32 %v43, %v219
    %v221 = vpop.f32.mrb[0].mxu0
    %222 = vmatprep.mubr.f32.mxu0 0.0
    %v223 = vand.u32 %v65, 4294901760
    %v224 = vsub.f32 %v65, %v223
    %v225 = vand.u32 %v224, 4294901760
    %v226 = vsub.f32 %v224, %v225
    %v227 = vand.u32 %v226, 4294901760
    %228 = vmatmul.mubr.f32.gmra.mrb[0].mxu0 %v227
    %v229 = vpop.f32.mrb[0].mxu0
    %v230 = vadd.f32 %v43, %v229
    %v231 = vpop.f32.mrb[0].mxu0
    %232 = vmatprep.mubr.f32.mxu0 0.0
    %v233 = vand.u32 %v68, 4294901760
    %v234 = vsub.f32 %v68, %v233
    %v235 = vand.u32 %v234, 4294901760
    %v236 = vsub.f32 %v234, %v235
    %v237 = vand.u32 %v236, 4294901760
    %238 = vmatmul.mubr.f32.gmra.mrb[0].mxu0 %v237
    %v239 = vpop.f32.mrb[0].mxu0
    %v240 = vadd.f32 %v43, %v239
    %v241 = vpop.f32.mrb[0].mxu0
    %242 = vmatprep.mubr.f32.mxu0 0.0
    %v243 = vand.u32 %v71, 4294901760
    %v244 = vsub.f32 %v71, %v243
    %v245 = vand.u32 %v244, 4294901760
    %v246 = vsub.f32 %v244, %v245
    %v247 = vand.u32 %v246, 4294901760
    %248 = vmatmul.mubr.f32.gmra.mrb[0].mxu0 %v247
    %v249 = vpop.f32.mrb[0].mxu0
    %v250 = vadd.f32 %v43, %v249
    %v251 = vpop.f32.mrb[0].mxu0
    %252 = vmatprep.mubr.f32.mxu0 0.0
    %v253 = vand.u32 %v74, 4294901760
    %v254 = vsub.f32 %v74, %v253
    %v255 = vand.u32 %v254, 4294901760
    %v256 = vsub.f32 %v254, %v255
    %v257 = vand.u32 %v256, 4294901760
    %258 = vmatmul.mubr.f32.gmra.mrb[0].mxu0 %v257
    %v259 = vpop.f32.mrb[0].mxu0
    %v260 = vadd.f32 %v43, %v259
    %v261 = vpop.f32.mrb[0].mxu0
    %262 = vmatprep.mubr.f32.mxu0 0.0
    %v263 = vand.u32 %v77, 4294901760
    %v264 = vsub.f32 %v77, %v263
    %v265 = vand.u32 %v264, 4294901760
    %v266 = vsub.f32 %v264, %v265
    %v267 = vand.u32 %v266, 4294901760
    %268 = vmatmul.mubr.f32.gmra.mrb[0].mxu0 %v267
    %v269 = vpop.f32.mrb[0].mxu0
    %v270 = vadd.f32 %v43, %v269
    %v271 = vpop.f32.mrb[0].mxu0
    %272 = vmatprep.mubr.f32.mxu0 0.0
    %v273 = vand.u32 %v80, 4294901760
    %v274 = vsub.f32 %v80, %v273
    %v275 = vand.u32 %v274, 4294901760
    %v276 = vsub.f32 %v274, %v275
    %v277 = vand.u32 %v276, 4294901760
    %278 = vmatmul.mubr.f32.gmra.mrb[0].mxu0 %v277
    %v279 = vpop.f32.mrb[0].mxu0
    %v280 = vadd.f32 %v43, %v279
    %v281 = vpop.f32.mrb[0].mxu0
    %282 = vmatprep.mubr.f32.mxu0 0.0
    %v283 = vand.u32 %v83, 4294901760
    %v284 = vsub.f32 %v83, %v283
    %v285 = vand.u32 %v284, 4294901760
    %v286 = vsub.f32 %v284, %v285
    %v287 = vand.u32 %v286, 4294901760
    %288 = vmatmul.mubr.f32.gmra.mrb[0].mxu0 %v287
    %v289 = vpop.f32.mrb[0].mxu0
    %v290 = vadd.f32 %v43, %v289
    %v291 = vpop.f32.mrb[0].mxu0
    %292 = vmatprep.mubr.f32.mxu0 0.0
    %v293 = vand.u32 %v86, 4294901760
    %v294 = vsub.f32 %v86, %v293
    %v295 = vand.u32 %v294, 4294901760
    %v296 = vsub.f32 %v294, %v295
    %v297 = vand.u32 %v296, 4294901760
    %298 = vmatmul.mubr.f32.gmra.mrb[0].mxu0 %v297
    %v299 = vpop.f32.mrb[0].mxu0
    %v300 = vadd.f32 %v43, %v299
    %v301 = vpop.f32.mrb[0].mxu0
    %302 = vmatprep.mubr.f32.mxu0 0.0
    %v303 = vand.u32 %v89, 4294901760
    %v304 = vsub.f32 %v89, %v303
    %v305 = vand.u32 %v304, 4294901760
    %v306 = vsub.f32 %v304, %v305
    %v307 = vand.u32 %v306, 4294901760
    %308 = vmatmul.mubr.f32.gmra.mrb[0].mxu0 %v307
    %v309 = vpop.f32.mrb[0].mxu0
    %v310 = vadd.f32 %v43, %v309
    %v311 = vpop.f32.mrb[0].mxu0
    %312 = vmatprep.mubr.f32.mxu0 0.0
    %v313 = vand.u32 %v92, 4294901760
    %v314 = vsub.f32 %v92, %v313
    %v315 = vand.u32 %v314, 4294901760
    %v316 = vsub.f32 %v314, %v315
    %v317 = vand.u32 %v316, 4294901760
    %318 = vmatmul.mubr.f32.gmra.mrb[0].mxu0 %v317
    %v319 = vpop.f32.mrb[0].mxu0
    %v320 = vadd.f32 %v43, %v319
    %v321 = vpop.f32.mrb[0].mxu0
    %322 = vdwg.mxu0
    %323 = vmatprep.subr.mxu0 0.0
    %v324 = vand.u32 %v34, 4294901760
    %v325 = vsub.f32 %v34, %v324
    %v326 = vand.u32 %v325, 4294901760
    %v327 = vsub.f32 %v325, %v326
    %v328 = vand.u32 %v327, 4294901760
    %329 = vmatpush1.msra.mxu0 %v328
    %330 = vmatprep.subr.mxu0 0.0
    %v331 = vand.u32 %v35, 4294901760
    %v332 = vsub.f32 %v35, %v331
    %v333 = vand.u32 %v332, 4294901760
    %v334 = vsub.f32 %v332, %v333
    %v335 = vand.u32 %v334, 4294901760
    %336 = vmatpush1.msra.mxu0 %v335
    %337 = vmatprep.subr.mxu0 0.0
    %v338 = vand.u32 %v36, 4294901760
    %v339 = vsub.f32 %v36, %v338
    %v340 = vand.u32 %v339, 4294901760
    %v341 = vsub.f32 %v339, %v340
    %v342 = vand.u32 %v341, 4294901760
    %343 = vmatpush1.msra.mxu0 %v342
    %344 = vmatprep.subr.mxu0 0.0
    %v345 = vand.u32 %v37, 4294901760
    %v346 = vsub.f32 %v37, %v345
    %v347 = vand.u32 %v346, 4294901760
    %v348 = vsub.f32 %v346, %v347
    %v349 = vand.u32 %v348, 4294901760
    %350 = vmatpush1.msra.mxu0 %v349
    %351 = vmatprep.subr.mxu0 0.0
    %352 = vmatpush1.msra.mxu0 0.0
    %353 = vmatprep.subr.mxu0 0.0
    %354 = vmatpush1.msra.mxu0 0.0
    %355 = vmatprep.subr.mxu0 0.0
    %356 = vmatpush1.msra.mxu0 0.0
    %357 = vmatprep.subr.mxu0 0.0
    %358 = vmatpush1.msra.mxu0 0.0
    %359 = vmatprep.subr.mxu0 0.0
    %360 = vmatpush1.msra.mxu0 0.0
    %361 = vmatprep.subr.mxu0 0.0
    %362 = vmatpush1.msra.mxu0 0.0
    %363 = vmatprep.subr.mxu0 0.0
    %364 = vmatpush1.msra.mxu0 0.0
    %365 = vmatprep.subr.mxu0 0.0
    %366 = vmatpush1.msra.mxu0 0.0
    %367 = vmatprep.subr.mxu0 0.0
    %368 = vmatpush1.msra.mxu0 0.0
    %369 = vmatprep.subr.mxu0 0.0
    %370 = vmatpush1.msra.mxu0 0.0
    %371 = vmatprep.subr.mxu0 0.0
    %372 = vmatpush1.msra.mxu0 0.0
    %373 = vmatprep.subr.mxu0 0.0
    %374 = vmatpush1.msra.mxu0 0.0
    %375 = vmatprep.subr.mxu0 0.0
    %376 = vmatpush1.msra.mxu0 0.0
    %377 = vmatprep.subr.mxu0 0.0
    %378 = vmatpush1.msra.mxu0 0.0
    %379 = vmatprep.subr.mxu0 0.0
    %380 = vmatpush1.msra.mxu0 0.0
    %381 = vmatprep.subr.mxu0 0.0
    %382 = vmatpush1.msra.mxu0 0.0
    %383 = vmatprep.subr.mxu0 0.0
    %384 = vmatpush1.msra.mxu0 0.0
    %385 = vmatprep.subr.mxu0 0.0
    %386 = vmatpush1.msra.mxu0 0.0
    %387 = vmatprep.subr.mxu0 0.0
    %388 = vmatpush1.msra.mxu0 0.0
    %389 = vmatprep.subr.mxu0 0.0
    %390 = vmatpush1.msra.mxu0 0.0
    %391 = vmatprep.subr.mxu0 0.0
    %392 = vmatpush1.msra.mxu0 0.0
    %393 = vmatprep.subr.mxu0 0.0
    %394 = vmatpush1.msra.mxu0 0.0
    %395 = vmatprep.subr.mxu0 0.0
    %396 = vmatpush1.msra.mxu0 0.0
    %397 = vmatprep.subr.mxu0 0.0
    %398 = vmatpush1.msra.mxu0 0.0
    %399 = vmatprep.subr.mxu0 0.0
    %400 = vmatpush1.msra.mxu0 0.0
    %401 = vmatprep.subr.mxu0 0.0
    %402 = vmatpush1.msra.mxu0 0.0
    %403 = vmatprep.subr.mxu0 0.0
    %404 = vmatpush1.msra.mxu0 0.0
    %405 = vmatprep.subr.mxu0 0.0
    %406 = vmatpush1.msra.mxu0 0.0
    %407 = vmatprep.mubr.f32.mxu0 0.0
    %v408 = vand.u32 %v47, 4294901760
    %409 = vmatmul.mubr.f32.gmra.mrb[0].mxu0 %v408
    %v410 = vpop.f32.mrb[0].mxu0
    %v411 = vadd.f32 %v170, %v410
    %v412 = vpop.f32.mrb[0].mxu0
    %413 = vmatprep.mubr.f32.mxu0 0.0
    %v414 = vand.u32 %v50, 4294901760
    %415 = vmatmul.mubr.f32.gmra.mrb[0].mxu0 %v414
    %v416 = vpop.f32.mrb[0].mxu0
    %v417 = vadd.f32 %v180, %v416
    %v418 = vpop.f32.mrb[0].mxu0
    %419 = vmatprep.mubr.f32.mxu0 0.0
    %v420 = vand.u32 %v53, 4294901760
    %421 = vmatmul.mubr.f32.gmra.mrb[0].mxu0 %v420
    %v422 = vpop.f32.mrb[0].mxu0
    %v423 = vadd.f32 %v190, %v422
    %v424 = vpop.f32.mrb[0].mxu0
    %425 = vmatprep.mubr.f32.mxu0 0.0
    %v426 = vand.u32 %v56, 4294901760
    %427 = vmatmul.mubr.f32.gmra.mrb[0].mxu0 %v426
    %v428 = vpop.f32.mrb[0].mxu0
    %v429 = vadd.f32 %v200, %v428
    %v430 = vpop.f32.mrb[0].mxu0
    %431 = vmatprep.mubr.f32.mxu0 0.0
    %v432 = vand.u32 %v59, 4294901760
    %433 = vmatmul.mubr.f32.gmra.mrb[0].mxu0 %v432
    %v434 = vpop.f32.mrb[0].mxu0
    %v435 = vadd.f32 %v210, %v434
    %v436 = vpop.f32.mrb[0].mxu0
    %437 = vmatprep.mubr.f32.mxu0 0.0
    %v438 = vand.u32 %v62, 4294901760
    %439 = vmatmul.mubr.f32.gmra.mrb[0].mxu0 %v438
    %v440 = vpop.f32.mrb[0].mxu0
    %v441 = vadd.f32 %v220, %v440
    %v442 = vpop.f32.mrb[0].mxu0
    %443 = vmatprep.mubr.f32.mxu0 0.0
    %v444 = vand.u32 %v65, 4294901760
    %445 = vmatmul.mubr.f32.gmra.mrb[0].mxu0 %v444
    %v446 = vpop.f32.mrb[0].mxu0
    %v447 = vadd.f32 %v230, %v446
    %v448 = vpop.f32.mrb[0].mxu0
    %449 = vmatprep.mubr.f32.mxu0 0.0
    %v450 = vand.u32 %v68, 4294901760
    %451 = vmatmul.mubr.f32.gmra.mrb[0].mxu0 %v450
    %v452 = vpop.f32.mrb[0].mxu0
    %v453 = vadd.f32 %v240, %v452
    %v454 = vpop.f32.mrb[0].mxu0
    %455 = vmatprep.mubr.f32.mxu0 0.0
    %v456 = vand.u32 %v71, 4294901760
    %457 = vmatmul.mubr.f32.gmra.mrb[0].mxu0 %v456
    %v458 = vpop.f32.mrb[0].mxu0
    %v459 = vadd.f32 %v250, %v458
    %v460 = vpop.f32.mrb[0].mxu0
    %461 = vmatprep.mubr.f32.mxu0 0.0
    %v462 = vand.u32 %v74, 4294901760
    %463 = vmatmul.mubr.f32.gmra.mrb[0].mxu0 %v462
    %v464 = vpop.f32.mrb[0].mxu0
    %v465 = vadd.f32 %v260, %v464
    %v466 = vpop.f32.mrb[0].mxu0
    %467 = vmatprep.mubr.f32.mxu0 0.0
    %v468 = vand.u32 %v77, 4294901760
    %469 = vmatmul.mubr.f32.gmra.mrb[0].mxu0 %v468
    %v470 = vpop.f32.mrb[0].mxu0
    %v471 = vadd.f32 %v270, %v470
    %v472 = vpop.f32.mrb[0].mxu0
    %473 = vmatprep.mubr.f32.mxu0 0.0
    %v474 = vand.u32 %v80, 4294901760
    %475 = vmatmul.mubr.f32.gmra.mrb[0].mxu0 %v474
    %v476 = vpop.f32.mrb[0].mxu0
    %v477 = vadd.f32 %v280, %v476
    %v478 = vpop.f32.mrb[0].mxu0
    %479 = vmatprep.mubr.f32.mxu0 0.0
    %v480 = vand.u32 %v83, 4294901760
    %481 = vmatmul.mubr.f32.gmra.mrb[0].mxu0 %v480
    %v482 = vpop.f32.mrb[0].mxu0
    %v483 = vadd.f32 %v290, %v482
    %v484 = vpop.f32.mrb[0].mxu0
    %485 = vmatprep.mubr.f32.mxu0 0.0
    %v486 = vand.u32 %v86, 4294901760
    %487 = vmatmul.mubr.f32.gmra.mrb[0].mxu0 %v486
    %v488 = vpop.f32.mrb[0].mxu0
    %v489 = vadd.f32 %v300, %v488
    %v490 = vpop.f32.mrb[0].mxu0
    %491 = vmatprep.mubr.f32.mxu0 0.0
    %v492 = vand.u32 %v89, 4294901760
    %493 = vmatmul.mubr.f32.gmra.mrb[0].mxu0 %v492
    %v494 = vpop.f32.mrb[0].mxu0
    %v495 = vadd.f32 %v310, %v494
    %v496 = vpop.f32.mrb[0].mxu0
    %497 = vmatprep.mubr.f32.mxu0 0.0
    %v498 = vand.u32 %v92, 4294901760
    %499 = vmatmul.mubr.f32.gmra.mrb[0].mxu0 %v498
    %v500 = vpop.f32.mrb[0].mxu0
    %v501 = vadd.f32 %v320, %v500
    %v502 = vpop.f32.mrb[0].mxu0
    %503 = vdwg.mxu0
    %504 = vmatprep.subr.mxu0 0.0
    %v505 = vand.u32 %v34, 4294901760
    %v506 = vsub.f32 %v34, %v505
    %507 = vmatpush1.msra.mxu0 %v506
    %508 = vmatprep.subr.mxu0 0.0
    %v509 = vand.u32 %v35, 4294901760
    %v510 = vsub.f32 %v35, %v509
    %511 = vmatpush1.msra.mxu0 %v510
    %512 = vmatprep.subr.mxu0 0.0
    %v513 = vand.u32 %v36, 4294901760
    %v514 = vsub.f32 %v36, %v513
    %515 = vmatpush1.msra.mxu0 %v514
    %516 = vmatprep.subr.mxu0 0.0
    %v517 = vand.u32 %v37, 4294901760
    %v518 = vsub.f32 %v37, %v517
    %519 = vmatpush1.msra.mxu0 %v518
    %520 = vmatprep.subr.mxu0 0.0
    %521 = vmatpush1.msra.mxu0 0.0
    %522 = vmatprep.subr.mxu0 0.0
    %523 = vmatpush1.msra.mxu0 0.0
    %524 = vmatprep.subr.mxu0 0.0
    %525 = vmatpush1.msra.mxu0 0.0
    %526 = vmatprep.subr.mxu0 0.0
    %527 = vmatpush1.msra.mxu0 0.0
    %528 = vmatprep.subr.mxu0 0.0
    %529 = vmatpush1.msra.mxu0 0.0
    %530 = vmatprep.subr.mxu0 0.0
    %531 = vmatpush1.msra.mxu0 0.0
    %532 = vmatprep.subr.mxu0 0.0
    %533 = vmatpush1.msra.mxu0 0.0
    %534 = vmatprep.subr.mxu0 0.0
    %535 = vmatpush1.msra.mxu0 0.0
    %536 = vmatprep.subr.mxu0 0.0
    %537 = vmatpush1.msra.mxu0 0.0
    %538 = vmatprep.subr.mxu0 0.0
    %539 = vmatpush1.msra.mxu0 0.0
    %540 = vmatprep.subr.mxu0 0.0
    %541 = vmatpush1.msra.mxu0 0.0
    %542 = vmatprep.subr.mxu0 0.0
    %543 = vmatpush1.msra.mxu0 0.0
    %544 = vmatprep.subr.mxu0 0.0
    %545 = vmatpush1.msra.mxu0 0.0
    %546 = vmatprep.subr.mxu0 0.0
    %547 = vmatpush1.msra.mxu0 0.0
    %548 = vmatprep.subr.mxu0 0.0
    %549 = vmatpush1.msra.mxu0 0.0
    %550 = vmatprep.subr.mxu0 0.0
    %551 = vmatpush1.msra.mxu0 0.0
    %552 = vmatprep.subr.mxu0 0.0
    %553 = vmatpush1.msra.mxu0 0.0
    %554 = vmatprep.subr.mxu0 0.0
    %555 = vmatpush1.msra.mxu0 0.0
    %556 = vmatprep.subr.mxu0 0.0
    %557 = vmatpush1.msra.mxu0 0.0
    %558 = vmatprep.subr.mxu0 0.0
    %559 = vmatpush1.msra.mxu0 0.0
    %560 = vmatprep.subr.mxu0 0.0
    %561 = vmatpush1.msra.mxu0 0.0
    %562 = vmatprep.subr.mxu0 0.0
    %563 = vmatpush1.msra.mxu0 0.0
    %564 = vmatprep.subr.mxu0 0.0
    %565 = vmatpush1.msra.mxu0 0.0
    %566 = vmatprep.subr.mxu0 0.0
    %567 = vmatpush1.msra.mxu0 0.0
    %568 = vmatprep.subr.mxu0 0.0
    %569 = vmatpush1.msra.mxu0 0.0
    %570 = vmatprep.subr.mxu0 0.0
    %571 = vmatpush1.msra.mxu0 0.0
    %572 = vmatprep.subr.mxu0 0.0
    %573 = vmatpush1.msra.mxu0 0.0
    %574 = vmatprep.subr.mxu0 0.0
    %575 = vmatpush1.msra.mxu0 0.0
    %576 = vmatprep.mubr.f32.mxu0 0.0
    %v577 = vand.u32 %v47, 4294901760
    %v578 = vsub.f32 %v47, %v577
    %579 = vmatmul.mubr.f32.gmra.mrb[0].mxu0 %v578
    %v580 = vpop.f32.mrb[0].mxu0
    %v581 = vadd.f32 %v411, %v580
    %v582 = vpop.f32.mrb[0].mxu0
    %583 = vmatprep.mubr.f32.mxu0 0.0
    %v584 = vand.u32 %v50, 4294901760
    %v585 = vsub.f32 %v50, %v584
    %586 = vmatmul.mubr.f32.gmra.mrb[0].mxu0 %v585
    %v587 = vpop.f32.mrb[0].mxu0
    %v588 = vadd.f32 %v417, %v587
    %v589 = vpop.f32.mrb[0].mxu0
    %590 = vmatprep.mubr.f32.mxu0 0.0
    %v591 = vand.u32 %v53, 4294901760
    %v592 = vsub.f32 %v53, %v591
    %593 = vmatmul.mubr.f32.gmra.mrb[0].mxu0 %v592
    %v594 = vpop.f32.mrb[0].mxu0
    %v595 = vadd.f32 %v423, %v594
    %v596 = vpop.f32.mrb[0].mxu0
    %597 = vmatprep.mubr.f32.mxu0 0.0
    %v598 = vand.u32 %v56, 4294901760
    %v599 = vsub.f32 %v56, %v598
    %600 = vmatmul.mubr.f32.gmra.mrb[0].mxu0 %v599
    %v601 = vpop.f32.mrb[0].mxu0
    %v602 = vadd.f32 %v429, %v601
    %v603 = vpop.f32.mrb[0].mxu0
    %604 = vmatprep.mubr.f32.mxu0 0.0
    %v605 = vand.u32 %v59, 4294901760
    %v606 = vsub.f32 %v59, %v605
    %607 = vmatmul.mubr.f32.gmra.mrb[0].mxu0 %v606
    %v608 = vpop.f32.mrb[0].mxu0
    %v609 = vadd.f32 %v435, %v608
    %v610 = vpop.f32.mrb[0].mxu0
    %611 = vmatprep.mubr.f32.mxu0 0.0
    %v612 = vand.u32 %v62, 4294901760
    %v613 = vsub.f32 %v62, %v612
    %614 = vmatmul.mubr.f32.gmra.mrb[0].mxu0 %v613
    %v615 = vpop.f32.mrb[0].mxu0
    %v616 = vadd.f32 %v441, %v615
    %v617 = vpop.f32.mrb[0].mxu0
    %618 = vmatprep.mubr.f32.mxu0 0.0
    %v619 = vand.u32 %v65, 4294901760
    %v620 = vsub.f32 %v65, %v619
    %621 = vmatmul.mubr.f32.gmra.mrb[0].mxu0 %v620
    %v622 = vpop.f32.mrb[0].mxu0
    %v623 = vadd.f32 %v447, %v622
    %v624 = vpop.f32.mrb[0].mxu0
    %625 = vmatprep.mubr.f32.mxu0 0.0
    %v626 = vand.u32 %v68, 4294901760
    %v627 = vsub.f32 %v68, %v626
    %628 = vmatmul.mubr.f32.gmra.mrb[0].mxu0 %v627
    %v629 = vpop.f32.mrb[0].mxu0
    %v630 = vadd.f32 %v453, %v629
    %v631 = vpop.f32.mrb[0].mxu0
    %632 = vmatprep.mubr.f32.mxu0 0.0
    %v633 = vand.u32 %v71, 4294901760
    %v634 = vsub.f32 %v71, %v633
    %635 = vmatmul.mubr.f32.gmra.mrb[0].mxu0 %v634
    %v636 = vpop.f32.mrb[0].mxu0
    %v637 = vadd.f32 %v459, %v636
    %v638 = vpop.f32.mrb[0].mxu0
    %639 = vmatprep.mubr.f32.mxu0 0.0
    %v640 = vand.u32 %v74, 4294901760
    %v641 = vsub.f32 %v74, %v640
    %642 = vmatmul.mubr.f32.gmra.mrb[0].mxu0 %v641
    %v643 = vpop.f32.mrb[0].mxu0
    %v644 = vadd.f32 %v465, %v643
    %v645 = vpop.f32.mrb[0].mxu0
    %646 = vmatprep.mubr.f32.mxu0 0.0
    %v647 = vand.u32 %v77, 4294901760
    %v648 = vsub.f32 %v77, %v647
    %649 = vmatmul.mubr.f32.gmra.mrb[0].mxu0 %v648
    %v650 = vpop.f32.mrb[0].mxu0
    %v651 = vadd.f32 %v471, %v650
    %v652 = vpop.f32.mrb[0].mxu0
    %653 = vmatprep.mubr.f32.mxu0 0.0
    %v654 = vand.u32 %v80, 4294901760
    %v655 = vsub.f32 %v80, %v654
    %656 = vmatmul.mubr.f32.gmra.mrb[0].mxu0 %v655
    %v657 = vpop.f32.mrb[0].mxu0
    %v658 = vadd.f32 %v477, %v657
    %v659 = vpop.f32.mrb[0].mxu0
    %660 = vmatprep.mubr.f32.mxu0 0.0
    %v661 = vand.u32 %v83, 4294901760
    %v662 = vsub.f32 %v83, %v661
    %663 = vmatmul.mubr.f32.gmra.mrb[0].mxu0 %v662
    %v664 = vpop.f32.mrb[0].mxu0
    %v665 = vadd.f32 %v483, %v664
    %v666 = vpop.f32.mrb[0].mxu0
    %667 = vmatprep.mubr.f32.mxu0 0.0
    %v668 = vand.u32 %v86, 4294901760
    %v669 = vsub.f32 %v86, %v668
    %670 = vmatmul.mubr.f32.gmra.mrb[0].mxu0 %v669
    %v671 = vpop.f32.mrb[0].mxu0
    %v672 = vadd.f32 %v489, %v671
    %v673 = vpop.f32.mrb[0].mxu0
    %674 = vmatprep.mubr.f32.mxu0 0.0
    %v675 = vand.u32 %v89, 4294901760
    %v676 = vsub.f32 %v89, %v675
    %677 = vmatmul.mubr.f32.gmra.mrb[0].mxu0 %v676
    %v678 = vpop.f32.mrb[0].mxu0
    %v679 = vadd.f32 %v495, %v678
    %v680 = vpop.f32.mrb[0].mxu0
    %681 = vmatprep.mubr.f32.mxu0 0.0
    %v682 = vand.u32 %v92, 4294901760
    %v683 = vsub.f32 %v92, %v682
    %684 = vmatmul.mubr.f32.gmra.mrb[0].mxu0 %v683
    %v685 = vpop.f32.mrb[0].mxu0
    %v686 = vadd.f32 %v501, %v685
    %v687 = vpop.f32.mrb[0].mxu0
    %688 = vdwg.mxu0
    %689 = vmatprep.subr.mxu0 0.0
    %v690 = vand.u32 %v34, 4294901760
    %691 = vmatpush1.msra.mxu0 %v690
    %692 = vmatprep.subr.mxu0 0.0
    %v693 = vand.u32 %v35, 4294901760
    %694 = vmatpush1.msra.mxu0 %v693
    %695 = vmatprep.subr.mxu0 0.0
    %v696 = vand.u32 %v36, 4294901760
    %697 = vmatpush1.msra.mxu0 %v696
    %698 = vmatprep.subr.mxu0 0.0
    %v699 = vand.u32 %v37, 4294901760
    %700 = vmatpush1.msra.mxu0 %v699
    %701 = vmatprep.subr.mxu0 0.0
    %702 = vmatpush1.msra.mxu0 0.0
    %703 = vmatprep.subr.mxu0 0.0
    %704 = vmatpush1.msra.mxu0 0.0
    %705 = vmatprep.subr.mxu0 0.0
    %706 = vmatpush1.msra.mxu0 0.0
    %707 = vmatprep.subr.mxu0 0.0
    %708 = vmatpush1.msra.mxu0 0.0
    %709 = vmatprep.subr.mxu0 0.0
    %710 = vmatpush1.msra.mxu0 0.0
    %711 = vmatprep.subr.mxu0 0.0
    %712 = vmatpush1.msra.mxu0 0.0
    %713 = vmatprep.subr.mxu0 0.0
    %714 = vmatpush1.msra.mxu0 0.0
    %715 = vmatprep.subr.mxu0 0.0
    %716 = vmatpush1.msra.mxu0 0.0
    %717 = vmatprep.subr.mxu0 0.0
    %718 = vmatpush1.msra.mxu0 0.0
    %719 = vmatprep.subr.mxu0 0.0
    %720 = vmatpush1.msra.mxu0 0.0
    %721 = vmatprep.subr.mxu0 0.0
    %722 = vmatpush1.msra.mxu0 0.0
    %723 = vmatprep.subr.mxu0 0.0
    %724 = vmatpush1.msra.mxu0 0.0
    %725 = vmatprep.subr.mxu0 0.0
    %726 = vmatpush1.msra.mxu0 0.0
    %727 = vmatprep.subr.mxu0 0.0
    %728 = vmatpush1.msra.mxu0 0.0
    %729 = vmatprep.subr.mxu0 0.0
    %730 = vmatpush1.msra.mxu0 0.0
    %731 = vmatprep.subr.mxu0 0.0
    %732 = vmatpush1.msra.mxu0 0.0
    %733 = vmatprep.subr.mxu0 0.0
    %734 = vmatpush1.msra.mxu0 0.0
    %735 = vmatprep.subr.mxu0 0.0
    %736 = vmatpush1.msra.mxu0 0.0
    %737 = vmatprep.subr.mxu0 0.0
    %738 = vmatpush1.msra.mxu0 0.0
    %739 = vmatprep.subr.mxu0 0.0
    %740 = vmatpush1.msra.mxu0 0.0
    %741 = vmatprep.subr.mxu0 0.0
    %742 = vmatpush1.msra.mxu0 0.0
    %743 = vmatprep.subr.mxu0 0.0
    %744 = vmatpush1.msra.mxu0 0.0
    %745 = vmatprep.subr.mxu0 0.0
    %746 = vmatpush1.msra.mxu0 0.0
    %747 = vmatprep.subr.mxu0 0.0
    %748 = vmatpush1.msra.mxu0 0.0
    %749 = vmatprep.subr.mxu0 0.0
    %750 = vmatpush1.msra.mxu0 0.0
    %751 = vmatprep.subr.mxu0 0.0
    %752 = vmatpush1.msra.mxu0 0.0
    %753 = vmatprep.subr.mxu0 0.0
    %754 = vmatpush1.msra.mxu0 0.0
    %755 = vmatprep.subr.mxu0 0.0
    %756 = vmatpush1.msra.mxu0 0.0
    %757 = vmatprep.mubr.f32.mxu0 0.0
    %v758 = vand.u32 %v47, 4294901760
    %v759 = vsub.f32 %v47, %v758
    %v760 = vand.u32 %v759, 4294901760
    %761 = vmatmul.mubr.f32.gmra.mrb[0].mxu0 %v760
    %v762 = vpop.f32.mrb[0].mxu0
    %v763 = vadd.f32 %v581, %v762
    %v764 = vpop.f32.mrb[0].mxu0
    %765 = vmatprep.mubr.f32.mxu0 0.0
    %v766 = vand.u32 %v50, 4294901760
    %v767 = vsub.f32 %v50, %v766
    %v768 = vand.u32 %v767, 4294901760
    %769 = vmatmul.mubr.f32.gmra.mrb[0].mxu0 %v768
    %v770 = vpop.f32.mrb[0].mxu0
    %v771 = vadd.f32 %v588, %v770
    %v772 = vpop.f32.mrb[0].mxu0
    %773 = vmatprep.mubr.f32.mxu0 0.0
    %v774 = vand.u32 %v53, 4294901760
    %v775 = vsub.f32 %v53, %v774
    %v776 = vand.u32 %v775, 4294901760
    %777 = vmatmul.mubr.f32.gmra.mrb[0].mxu0 %v776
    %v778 = vpop.f32.mrb[0].mxu0
    %v779 = vadd.f32 %v595, %v778
    %v780 = vpop.f32.mrb[0].mxu0
    %781 = vmatprep.mubr.f32.mxu0 0.0
    %v782 = vand.u32 %v56, 4294901760
    %v783 = vsub.f32 %v56, %v782
    %v784 = vand.u32 %v783, 4294901760
    %785 = vmatmul.mubr.f32.gmra.mrb[0].mxu0 %v784
    %v786 = vpop.f32.mrb[0].mxu0
    %v787 = vadd.f32 %v602, %v786
    %v788 = vpop.f32.mrb[0].mxu0
    %789 = vmatprep.mubr.f32.mxu0 0.0
    %v790 = vand.u32 %v59, 4294901760
    %v791 = vsub.f32 %v59, %v790
    %v792 = vand.u32 %v791, 4294901760
    %793 = vmatmul.mubr.f32.gmra.mrb[0].mxu0 %v792
    %v794 = vpop.f32.mrb[0].mxu0
    %v795 = vadd.f32 %v609, %v794
    %v796 = vpop.f32.mrb[0].mxu0
    %797 = vmatprep.mubr.f32.mxu0 0.0
    %v798 = vand.u32 %v62, 4294901760
    %v799 = vsub.f32 %v62, %v798
    %v800 = vand.u32 %v799, 4294901760
    %801 = vmatmul.mubr.f32.gmra.mrb[0].mxu0 %v800
    %v802 = vpop.f32.mrb[0].mxu0
    %v803 = vadd.f32 %v616, %v802
    %v804 = vpop.f32.mrb[0].mxu0
    %805 = vmatprep.mubr.f32.mxu0 0.0
    %v806 = vand.u32 %v65, 4294901760
    %v807 = vsub.f32 %v65, %v806
    %v808 = vand.u32 %v807, 4294901760
    %809 = vmatmul.mubr.f32.gmra.mrb[0].mxu0 %v808
    %v810 = vpop.f32.mrb[0].mxu0
    %v811 = vadd.f32 %v623, %v810
    %v812 = vpop.f32.mrb[0].mxu0
    %813 = vmatprep.mubr.f32.mxu0 0.0
    %v814 = vand.u32 %v68, 4294901760
    %v815 = vsub.f32 %v68, %v814
    %v816 = vand.u32 %v815, 4294901760
    %817 = vmatmul.mubr.f32.gmra.mrb[0].mxu0 %v816
    %v818 = vpop.f32.mrb[0].mxu0
    %v819 = vadd.f32 %v630, %v818
    %v820 = vpop.f32.mrb[0].mxu0
    %821 = vmatprep.mubr.f32.mxu0 0.0
    %v822 = vand.u32 %v71, 4294901760
    %v823 = vsub.f32 %v71, %v822
    %v824 = vand.u32 %v823, 4294901760
    %825 = vmatmul.mubr.f32.gmra.mrb[0].mxu0 %v824
    %v826 = vpop.f32.mrb[0].mxu0
    %v827 = vadd.f32 %v637, %v826
    %v828 = vpop.f32.mrb[0].mxu0
    %829 = vmatprep.mubr.f32.mxu0 0.0
    %v830 = vand.u32 %v74, 4294901760
    %v831 = vsub.f32 %v74, %v830
    %v832 = vand.u32 %v831, 4294901760
    %833 = vmatmul.mubr.f32.gmra.mrb[0].mxu0 %v832
    %v834 = vpop.f32.mrb[0].mxu0
    %v835 = vadd.f32 %v644, %v834
    %v836 = vpop.f32.mrb[0].mxu0
    %837 = vmatprep.mubr.f32.mxu0 0.0
    %v838 = vand.u32 %v77, 4294901760
    %v839 = vsub.f32 %v77, %v838
    %v840 = vand.u32 %v839, 4294901760
    %841 = vmatmul.mubr.f32.gmra.mrb[0].mxu0 %v840
    %v842 = vpop.f32.mrb[0].mxu0
    %v843 = vadd.f32 %v651, %v842
    %v844 = vpop.f32.mrb[0].mxu0
    %845 = vmatprep.mubr.f32.mxu0 0.0
    %v846 = vand.u32 %v80, 4294901760
    %v847 = vsub.f32 %v80, %v846
    %v848 = vand.u32 %v847, 4294901760
    %849 = vmatmul.mubr.f32.gmra.mrb[0].mxu0 %v848
    %v850 = vpop.f32.mrb[0].mxu0
    %v851 = vadd.f32 %v658, %v850
    %v852 = vpop.f32.mrb[0].mxu0
    %853 = vmatprep.mubr.f32.mxu0 0.0
    %v854 = vand.u32 %v83, 4294901760
    %v855 = vsub.f32 %v83, %v854
    %v856 = vand.u32 %v855, 4294901760
    %857 = vmatmul.mubr.f32.gmra.mrb[0].mxu0 %v856
    %v858 = vpop.f32.mrb[0].mxu0
    %v859 = vadd.f32 %v665, %v858
    %v860 = vpop.f32.mrb[0].mxu0
    %861 = vmatprep.mubr.f32.mxu0 0.0
    %v862 = vand.u32 %v86, 4294901760
    %v863 = vsub.f32 %v86, %v862
    %v864 = vand.u32 %v863, 4294901760
    %865 = vmatmul.mubr.f32.gmra.mrb[0].mxu0 %v864
    %v866 = vpop.f32.mrb[0].mxu0
    %v867 = vadd.f32 %v672, %v866
    %v868 = vpop.f32.mrb[0].mxu0
    %869 = vmatprep.mubr.f32.mxu0 0.0
    %v870 = vand.u32 %v89, 4294901760
    %v871 = vsub.f32 %v89, %v870
    %v872 = vand.u32 %v871, 4294901760
    %873 = vmatmul.mubr.f32.gmra.mrb[0].mxu0 %v872
    %v874 = vpop.f32.mrb[0].mxu0
    %v875 = vadd.f32 %v679, %v874
    %v876 = vpop.f32.mrb[0].mxu0
    %877 = vmatprep.mubr.f32.mxu0 0.0
    %v878 = vand.u32 %v92, 4294901760
    %v879 = vsub.f32 %v92, %v878
    %v880 = vand.u32 %v879, 4294901760
    %881 = vmatmul.mubr.f32.gmra.mrb[0].mxu0 %v880
    %v882 = vpop.f32.mrb[0].mxu0
    %v883 = vadd.f32 %v686, %v882
    %v884 = vpop.f32.mrb[0].mxu0
    %885 = vdwg.mxu0
    %886 = vmatprep.subr.mxu0 0.0
    %v887 = vand.u32 %v34, 4294901760
    %v888 = vsub.f32 %v34, %v887
    %v889 = vand.u32 %v888, 4294901760
    %890 = vmatpush1.msra.mxu0 %v889
    %891 = vmatprep.subr.mxu0 0.0
    %v892 = vand.u32 %v35, 4294901760
    %v893 = vsub.f32 %v35, %v892
    %v894 = vand.u32 %v893, 4294901760
    %895 = vmatpush1.msra.mxu0 %v894
    %896 = vmatprep.subr.mxu0 0.0
    %v897 = vand.u32 %v36, 4294901760
    %v898 = vsub.f32 %v36, %v897
    %v899 = vand.u32 %v898, 4294901760
    %900 = vmatpush1.msra.mxu0 %v899
    %901 = vmatprep.subr.mxu0 0.0
    %v902 = vand.u32 %v37, 4294901760
    %v903 = vsub.f32 %v37, %v902
    %v904 = vand.u32 %v903, 4294901760
    %905 = vmatpush1.msra.mxu0 %v904
    %906 = vmatprep.subr.mxu0 0.0
    %907 = vmatpush1.msra.mxu0 0.0
    %908 = vmatprep.subr.mxu0 0.0
    %909 = vmatpush1.msra.mxu0 0.0
    %910 = vmatprep.subr.mxu0 0.0
    %911 = vmatpush1.msra.mxu0 0.0
    %912 = vmatprep.subr.mxu0 0.0
    %913 = vmatpush1.msra.mxu0 0.0
    %914 = vmatprep.subr.mxu0 0.0
    %915 = vmatpush1.msra.mxu0 0.0
    %916 = vmatprep.subr.mxu0 0.0
    %917 = vmatpush1.msra.mxu0 0.0
    %918 = vmatprep.subr.mxu0 0.0
    %919 = vmatpush1.msra.mxu0 0.0
    %920 = vmatprep.subr.mxu0 0.0
    %921 = vmatpush1.msra.mxu0 0.0
    %922 = vmatprep.subr.mxu0 0.0
    %923 = vmatpush1.msra.mxu0 0.0
    %924 = vmatprep.subr.mxu0 0.0
    %925 = vmatpush1.msra.mxu0 0.0
    %926 = vmatprep.subr.mxu0 0.0
    %927 = vmatpush1.msra.mxu0 0.0
    %928 = vmatprep.subr.mxu0 0.0
    %929 = vmatpush1.msra.mxu0 0.0
    %930 = vmatprep.subr.mxu0 0.0
    %931 = vmatpush1.msra.mxu0 0.0
    %932 = vmatprep.subr.mxu0 0.0
    %933 = vmatpush1.msra.mxu0 0.0
    %934 = vmatprep.subr.mxu0 0.0
    %935 = vmatpush1.msra.mxu0 0.0
    %936 = vmatprep.subr.mxu0 0.0
    %937 = vmatpush1.msra.mxu0 0.0
    %938 = vmatprep.subr.mxu0 0.0
    %939 = vmatpush1.msra.mxu0 0.0
    %940 = vmatprep.subr.mxu0 0.0
    %941 = vmatpush1.msra.mxu0 0.0
    %942 = vmatprep.subr.mxu0 0.0
    %943 = vmatpush1.msra.mxu0 0.0
    %944 = vmatprep.subr.mxu0 0.0
    %945 = vmatpush1.msra.mxu0 0.0
    %946 = vmatprep.subr.mxu0 0.0
    %947 = vmatpush1.msra.mxu0 0.0
    %948 = vmatprep.subr.mxu0 0.0
    %949 = vmatpush1.msra.mxu0 0.0
    %950 = vmatprep.subr.mxu0 0.0
    %951 = vmatpush1.msra.mxu0 0.0
    %952 = vmatprep.subr.mxu0 0.0
    %953 = vmatpush1.msra.mxu0 0.0
    %954 = vmatprep.subr.mxu0 0.0
    %955 = vmatpush1.msra.mxu0 0.0
    %956 = vmatprep.subr.mxu0 0.0
    %957 = vmatpush1.msra.mxu0 0.0
    %958 = vmatprep.subr.mxu0 0.0
    %959 = vmatpush1.msra.mxu0 0.0
    %960 = vmatprep.subr.mxu0 0.0
    %961 = vmatpush1.msra.mxu0 0.0
    %962 = vmatprep.mubr.f32.mxu0 0.0
    %v963 = vand.u32 %v47, 4294901760
    %964 = vmatmul.mubr.f32.gmra.mrb[0].mxu0 %v963
    %v965 = vpop.f32.mrb[0].mxu0
    %v966 = vadd.f32 %v763, %v965
    %v967 = vpop.f32.mrb[0].mxu0
    %968 = vmatprep.mubr.f32.mxu0 0.0
    %v969 = vand.u32 %v50, 4294901760
    %970 = vmatmul.mubr.f32.gmra.mrb[0].mxu0 %v969
    %v971 = vpop.f32.mrb[0].mxu0
    %v972 = vadd.f32 %v771, %v971
    %v973 = vpop.f32.mrb[0].mxu0
    %974 = vmatprep.mubr.f32.mxu0 0.0
    %v975 = vand.u32 %v53, 4294901760
    %976 = vmatmul.mubr.f32.gmra.mrb[0].mxu0 %v975
    %v977 = vpop.f32.mrb[0].mxu0
    %v978 = vadd.f32 %v779, %v977
    %v979 = vpop.f32.mrb[0].mxu0
    %980 = vmatprep.mubr.f32.mxu0 0.0
    %v981 = vand.u32 %v56, 4294901760
    %982 = vmatmul.mubr.f32.gmra.mrb[0].mxu0 %v981
    %v983 = vpop.f32.mrb[0].mxu0
    %v984 = vadd.f32 %v787, %v983
    %v985 = vpop.f32.mrb[0].mxu0
    %986 = vmatprep.mubr.f32.mxu0 0.0
    %v987 = vand.u32 %v59, 4294901760
    %988 = vmatmul.mubr.f32.gmra.mrb[0].mxu0 %v987
    %v989 = vpop.f32.mrb[0].mxu0
    %v990 = vadd.f32 %v795, %v989
    %v991 = vpop.f32.mrb[0].mxu0
    %992 = vmatprep.mubr.f32.mxu0 0.0
    %v993 = vand.u32 %v62, 4294901760
    %994 = vmatmul.mubr.f32.gmra.mrb[0].mxu0 %v993
    %v995 = vpop.f32.mrb[0].mxu0
    %v996 = vadd.f32 %v803, %v995
    %v997 = vpop.f32.mrb[0].mxu0
    %998 = vmatprep.mubr.f32.mxu0 0.0
    %v999 = vand.u32 %v65, 4294901760
    %1000 = vmatmul.mubr.f32.gmra.mrb[0].mxu0 %v999
    %v1001 = vpop.f32.mrb[0].mxu0
    %v1002 = vadd.f32 %v811, %v1001
    %v1003 = vpop.f32.mrb[0].mxu0
    %1004 = vmatprep.mubr.f32.mxu0 0.0
    %v1005 = vand.u32 %v68, 4294901760
    %1006 = vmatmul.mubr.f32.gmra.mrb[0].mxu0 %v1005
    %v1007 = vpop.f32.mrb[0].mxu0
    %v1008 = vadd.f32 %v819, %v1007
    %v1009 = vpop.f32.mrb[0].mxu0
    %1010 = vmatprep.mubr.f32.mxu0 0.0
    %v1011 = vand.u32 %v71, 4294901760
    %1012 = vmatmul.mubr.f32.gmra.mrb[0].mxu0 %v1011
    %v1013 = vpop.f32.mrb[0].mxu0
    %v1014 = vadd.f32 %v827, %v1013
    %v1015 = vpop.f32.mrb[0].mxu0
    %1016 = vmatprep.mubr.f32.mxu0 0.0
    %v1017 = vand.u32 %v74, 4294901760
    %1018 = vmatmul.mubr.f32.gmra.mrb[0].mxu0 %v1017
    %v1019 = vpop.f32.mrb[0].mxu0
    %v1020 = vadd.f32 %v835, %v1019
    %v1021 = vpop.f32.mrb[0].mxu0
    %1022 = vmatprep.mubr.f32.mxu0 0.0
    %v1023 = vand.u32 %v77, 4294901760
    %1024 = vmatmul.mubr.f32.gmra.mrb[0].mxu0 %v1023
    %v1025 = vpop.f32.mrb[0].mxu0
    %v1026 = vadd.f32 %v843, %v1025
    %v1027 = vpop.f32.mrb[0].mxu0
    %1028 = vmatprep.mubr.f32.mxu0 0.0
    %v1029 = vand.u32 %v80, 4294901760
    %1030 = vmatmul.mubr.f32.gmra.mrb[0].mxu0 %v1029
    %v1031 = vpop.f32.mrb[0].mxu0
    %v1032 = vadd.f32 %v851, %v1031
    %v1033 = vpop.f32.mrb[0].mxu0
    %1034 = vmatprep.mubr.f32.mxu0 0.0
    %v1035 = vand.u32 %v83, 4294901760
    %1036 = vmatmul.mubr.f32.gmra.mrb[0].mxu0 %v1035
    %v1037 = vpop.f32.mrb[0].mxu0
    %v1038 = vadd.f32 %v859, %v1037
    %v1039 = vpop.f32.mrb[0].mxu0
    %1040 = vmatprep.mubr.f32.mxu0 0.0
    %v1041 = vand.u32 %v86, 4294901760
    %1042 = vmatmul.mubr.f32.gmra.mrb[0].mxu0 %v1041
    %v1043 = vpop.f32.mrb[0].mxu0
    %v1044 = vadd.f32 %v867, %v1043
    %v1045 = vpop.f32.mrb[0].mxu0
    %1046 = vmatprep.mubr.f32.mxu0 0.0
    %v1047 = vand.u32 %v89, 4294901760
    %1048 = vmatmul.mubr.f32.gmra.mrb[0].mxu0 %v1047
    %v1049 = vpop.f32.mrb[0].mxu0
    %v1050 = vadd.f32 %v875, %v1049
    %v1051 = vpop.f32.mrb[0].mxu0
    %1052 = vmatprep.mubr.f32.mxu0 0.0
    %v1053 = vand.u32 %v92, 4294901760
    %1054 = vmatmul.mubr.f32.gmra.mrb[0].mxu0 %v1053
    %v1055 = vpop.f32.mrb[0].mxu0
    %v1056 = vadd.f32 %v883, %v1055
    %v1057 = vpop.f32.mrb[0].mxu0
    %1058 = vdwg.mxu0
    %1059 = vmatprep.subr.mxu0 0.0
    %v1060 = vand.u32 %v34, 4294901760
    %1061 = vmatpush1.msra.mxu0 %v1060
    %1062 = vmatprep.subr.mxu0 0.0
    %v1063 = vand.u32 %v35, 4294901760
    %1064 = vmatpush1.msra.mxu0 %v1063
    %1065 = vmatprep.subr.mxu0 0.0
    %v1066 = vand.u32 %v36, 4294901760
    %1067 = vmatpush1.msra.mxu0 %v1066
    %1068 = vmatprep.subr.mxu0 0.0
    %v1069 = vand.u32 %v37, 4294901760
    %1070 = vmatpush1.msra.mxu0 %v1069
    %1071 = vmatprep.subr.mxu0 0.0
    %1072 = vmatpush1.msra.mxu0 0.0
    %1073 = vmatprep.subr.mxu0 0.0
    %1074 = vmatpush1.msra.mxu0 0.0
    %1075 = vmatprep.subr.mxu0 0.0
    %1076 = vmatpush1.msra.mxu0 0.0
    %1077 = vmatprep.subr.mxu0 0.0
    %1078 = vmatpush1.msra.mxu0 0.0
    %1079 = vmatprep.subr.mxu0 0.0
    %1080 = vmatpush1.msra.mxu0 0.0
    %1081 = vmatprep.subr.mxu0 0.0
    %1082 = vmatpush1.msra.mxu0 0.0
    %1083 = vmatprep.subr.mxu0 0.0
    %1084 = vmatpush1.msra.mxu0 0.0
    %1085 = vmatprep.subr.mxu0 0.0
    %1086 = vmatpush1.msra.mxu0 0.0
    %1087 = vmatprep.subr.mxu0 0.0
    %1088 = vmatpush1.msra.mxu0 0.0
    %1089 = vmatprep.subr.mxu0 0.0
    %1090 = vmatpush1.msra.mxu0 0.0
    %1091 = vmatprep.subr.mxu0 0.0
    %1092 = vmatpush1.msra.mxu0 0.0
    %1093 = vmatprep.subr.mxu0 0.0
    %1094 = vmatpush1.msra.mxu0 0.0
    %1095 = vmatprep.subr.mxu0 0.0
    %1096 = vmatpush1.msra.mxu0 0.0
    %1097 = vmatprep.subr.mxu0 0.0
    %1098 = vmatpush1.msra.mxu0 0.0
    %1099 = vmatprep.subr.mxu0 0.0
    %1100 = vmatpush1.msra.mxu0 0.0
    %1101 = vmatprep.subr.mxu0 0.0
    %1102 = vmatpush1.msra.mxu0 0.0
    %1103 = vmatprep.subr.mxu0 0.0
    %1104 = vmatpush1.msra.mxu0 0.0
    %1105 = vmatprep.subr.mxu0 0.0
    %1106 = vmatpush1.msra.mxu0 0.0
    %1107 = vmatprep.subr.mxu0 0.0
    %1108 = vmatpush1.msra.mxu0 0.0
    %1109 = vmatprep.subr.mxu0 0.0
    %1110 = vmatpush1.msra.mxu0 0.0
    %1111 = vmatprep.subr.mxu0 0.0
    %1112 = vmatpush1.msra.mxu0 0.0
    %1113 = vmatprep.subr.mxu0 0.0
    %1114 = vmatpush1.msra.mxu0 0.0
    %1115 = vmatprep.subr.mxu0 0.0
    %1116 = vmatpush1.msra.mxu0 0.0
    %1117 = vmatprep.subr.mxu0 0.0
    %1118 = vmatpush1.msra.mxu0 0.0
    %1119 = vmatprep.subr.mxu0 0.0
    %1120 = vmatpush1.msra.mxu0 0.0
    %1121 = vmatprep.subr.mxu0 0.0
    %1122 = vmatpush1.msra.mxu0 0.0
    %1123 = vmatprep.subr.mxu0 0.0
    %1124 = vmatpush1.msra.mxu0 0.0
    %1125 = vmatprep.subr.mxu0 0.0
    %1126 = vmatpush1.msra.mxu0 0.0
    %1127 = vmatprep.mubr.f32.mxu0 0.0
    %v1128 = vand.u32 %v47, 4294901760
    %1129 = vmatmul.mubr.f32.gmra.mrb[0].mxu0 %v1128
    %v1130 = vpop.f32.mrb[0].mxu0
    %v1131 = vadd.f32 %v966, %v1130
    %v1132 = vpop.f32.mrb[0].mxu0
    %1133 = vmatprep.mubr.f32.mxu0 0.0
    %v1134 = vand.u32 %v50, 4294901760
    %1135 = vmatmul.mubr.f32.gmra.mrb[0].mxu0 %v1134
    %v1136 = vpop.f32.mrb[0].mxu0
    %v1137 = vadd.f32 %v972, %v1136
    %v1138 = vpop.f32.mrb[0].mxu0
    %1139 = vmatprep.mubr.f32.mxu0 0.0
    %v1140 = vand.u32 %v53, 4294901760
    %1141 = vmatmul.mubr.f32.gmra.mrb[0].mxu0 %v1140
    %v1142 = vpop.f32.mrb[0].mxu0
    %v1143 = vadd.f32 %v978, %v1142
    %v1144 = vpop.f32.mrb[0].mxu0
    %1145 = vmatprep.mubr.f32.mxu0 0.0
    %v1146 = vand.u32 %v56, 4294901760
    %1147 = vmatmul.mubr.f32.gmra.mrb[0].mxu0 %v1146
    %v1148 = vpop.f32.mrb[0].mxu0
    %v1149 = vadd.f32 %v984, %v1148
    %v1150 = vpop.f32.mrb[0].mxu0
    %1151 = vmatprep.mubr.f32.mxu0 0.0
    %v1152 = vand.u32 %v59, 4294901760
    %1153 = vmatmul.mubr.f32.gmra.mrb[0].mxu0 %v1152
    %v1154 = vpop.f32.mrb[0].mxu0
    %v1155 = vadd.f32 %v990, %v1154
    %v1156 = vpop.f32.mrb[0].mxu0
    %1157 = vmatprep.mubr.f32.mxu0 0.0
    %v1158 = vand.u32 %v62, 4294901760
    %1159 = vmatmul.mubr.f32.gmra.mrb[0].mxu0 %v1158
    %v1160 = vpop.f32.mrb[0].mxu0
    %v1161 = vadd.f32 %v996, %v1160
    %v1162 = vpop.f32.mrb[0].mxu0
    %1163 = vmatprep.mubr.f32.mxu0 0.0
    %v1164 = vand.u32 %v65, 4294901760
    %1165 = vmatmul.mubr.f32.gmra.mrb[0].mxu0 %v1164
    %v1166 = vpop.f32.mrb[0].mxu0
    %v1167 = vadd.f32 %v1002, %v1166
    %v1168 = vpop.f32.mrb[0].mxu0
    %1169 = vmatprep.mubr.f32.mxu0 0.0
    %v1170 = vand.u32 %v68, 4294901760
    %1171 = vmatmul.mubr.f32.gmra.mrb[0].mxu0 %v1170
    %v1172 = vpop.f32.mrb[0].mxu0
    %v1173 = vadd.f32 %v1008, %v1172
    %v1174 = vpop.f32.mrb[0].mxu0
    %1175 = vmatprep.mubr.f32.mxu0 0.0
    %v1176 = vand.u32 %v71, 4294901760
    %1177 = vmatmul.mubr.f32.gmra.mrb[0].mxu0 %v1176
    %v1178 = vpop.f32.mrb[0].mxu0
    %v1179 = vadd.f32 %v1014, %v1178
    %v1180 = vpop.f32.mrb[0].mxu0
    %1181 = vmatprep.mubr.f32.mxu0 0.0
    %v1182 = vand.u32 %v74, 4294901760
    %1183 = vmatmul.mubr.f32.gmra.mrb[0].mxu0 %v1182
    %v1184 = vpop.f32.mrb[0].mxu0
    %v1185 = vadd.f32 %v1020, %v1184
    %v1186 = vpop.f32.mrb[0].mxu0
    %1187 = vmatprep.mubr.f32.mxu0 0.0
    %v1188 = vand.u32 %v77, 4294901760
    %1189 = vmatmul.mubr.f32.gmra.mrb[0].mxu0 %v1188
    %v1190 = vpop.f32.mrb[0].mxu0
    %v1191 = vadd.f32 %v1026, %v1190
    %v1192 = vpop.f32.mrb[0].mxu0
    %1193 = vmatprep.mubr.f32.mxu0 0.0
    %v1194 = vand.u32 %v80, 4294901760
    %1195 = vmatmul.mubr.f32.gmra.mrb[0].mxu0 %v1194
    %v1196 = vpop.f32.mrb[0].mxu0
    %v1197 = vadd.f32 %v1032, %v1196
    %v1198 = vpop.f32.mrb[0].mxu0
    %1199 = vmatprep.mubr.f32.mxu0 0.0
    %v1200 = vand.u32 %v83, 4294901760
    %1201 = vmatmul.mubr.f32.gmra.mrb[0].mxu0 %v1200
    %v1202 = vpop.f32.mrb[0].mxu0
    %v1203 = vadd.f32 %v1038, %v1202
    %v1204 = vpop.f32.mrb[0].mxu0
    %1205 = vmatprep.mubr.f32.mxu0 0.0
    %v1206 = vand.u32 %v86, 4294901760
    %1207 = vmatmul.mubr.f32.gmra.mrb[0].mxu0 %v1206
    %v1208 = vpop.f32.mrb[0].mxu0
    %v1209 = vadd.f32 %v1044, %v1208
    %v1210 = vpop.f32.mrb[0].mxu0
    %1211 = vmatprep.mubr.f32.mxu0 0.0
    %v1212 = vand.u32 %v89, 4294901760
    %1213 = vmatmul.mubr.f32.gmra.mrb[0].mxu0 %v1212
    %v1214 = vpop.f32.mrb[0].mxu0
    %v1215 = vadd.f32 %v1050, %v1214
    %v1216 = vpop.f32.mrb[0].mxu0
    %1217 = vmatprep.mubr.f32.mxu0 0.0
    %v1218 = vand.u32 %v92, 4294901760
    %1219 = vmatmul.mubr.f32.gmra.mrb[0].mxu0 %v1218
    %v1220 = vpop.f32.mrb[0].mxu0
    %v1221 = vadd.f32 %v1056, %v1220
    %v1222 = vpop.f32.mrb[0].mxu0
    %1223 = vdwg.mxu0
    %v1224 = vand.u32 2147483647, %v1131
    %vm1225 = vcmp.le.f32.partialorder %v1224, 0.7853982
    %vm1226 = vcmp.lt.s32.totalorder %v1131, 0
    %v1227 = vand.u32 %v1131, 2139095040
    %v1228 = vshrl.u32 %v1227, 23
    %v1229 = vsub.s32 %v1228, 127
    %v1230 = vand.u32 2147483647, %v1131
    %v1231 = vand.u32 %v1230, 8388607
    %v1232 = vor.u32 %v1231, 8388608
    %v1233 = vsub.s32 0, %v1232
    %v1234 = vadd.s32 %v1229, 1
    %vm1235 = vcmp.gt.s32.totalorder %v1234, 0
    %v1236 = vsel %vm1235, %v1234, 0
    %v1237 = vshrl.u32 %v1236, 5
    %v1238 = vand.u32 %v1236, 31
    %v1239 = vsub.s32 32, %v1238
    %v1240 = vshrl.u32 683565275, %v1239
    %v1241 = vshll.u32 683565275, %v1238
    %v1242 = vshrl.u32 2475754826, %v1239
    %v1243 = vor.u32 %v1241, %v1242
    %v1244 = vshll.u32 2475754826, %v1238
    %v1245 = vshrl.u32 2131351028, %v1239
    %v1246 = vor.u32 %v1244, %v1245
    %v1247 = vshll.u32 2131351028, %v1238
    %v1248 = vshrl.u32 2102212464, %v1239
    %v1249 = vor.u32 %v1247, %v1248
    %v1250 = vshll.u32 2102212464, %v1238
    %v1251 = vshrl.u32 920167782, %v1239
    %v1252 = vor.u32 %v1250, %v1251
    %v1253 = vshll.u32 920167782, %v1238
    %v1254 = vshrl.u32 1326507024, %v1239
    %v1255 = vor.u32 %v1253, %v1254
    %vm1256 = vcmp.lt.s32.totalorder %v1237, 1
    %vm1257 = vcmp.lt.s32.totalorder %v1237, 2
    %vm1258 = vcmp.lt.s32.totalorder %v1237, 3
    %vm1259 = vcmp.lt.s32.totalorder %v1237, 4
    %v1260 = vsel %vm1256, %v1240, %v1243
    %v1261 = vsel %vm1259, %v1249, 2102212464
    %v1262 = vsel %vm1258, %v1246, %v1261
    %v1263 = vsel %vm1257, %v1260, %v1262
    %v1264 = vsel %vm1256, %v1243, %v1246
    %v1265 = vsel %vm1259, %v1252, 920167782
    %v1266 = vsel %vm1258, %v1249, %v1265
    %v1267 = vsel %vm1257, %v1264, %v1266
    %v1268 = vsel %vm1256, %v1246, %v1249
    %v1269 = vsel %vm1259, %v1255, 1326507024
    %v1270 = vsel %vm1258, %v1252, %v1269
    %v1271 = vsel %vm1257, %v1268, %v1270
    %v1272 = vshll.u32 %v1232, 8
    %v1273 = vmul.u32.u64.compose %v1272, %v1271
    %v1274 = vextract.low.u32 %v1273
    %v1275 = vextract.high.u32 %v1273
    %v1276 = vmul.u32.u64.compose %v1272, %v1267
    %v1277 = vextract.low.u32 %v1276
    %v1278 = vextract.high.u32 %v1276
    %v1279 = vmul.u32 %v1272, %v1263
    %v1280 = vadd.s32 %v1275, %v1277
    %vm1281 = vc.u32 %v1275, %v1277
    %v1282 = vadd.s32 %v1278, 1
    %v1283 = vsel %vm1281, %v1282, %v1278
    %v1284 = vadd.s32 %v1279, %v1283
    %v1285 = vadd.s32 %v1284, 536870912
    %v1286 = vshrl.u32 %v1285, 30
    %v1287 = vshll.u32 %v1286, 30
    %v1288 = vsub.s32 %v1284, %v1287
    %vm1289 = vcmp.lt.s32.totalorder %v1288, 0
    %v1290 = vsub.s32 0, %v1288
    %v1291 = vsel %vm1289, %v1290, %v1288
    %v1292 = vclz %v1291
    %v1293 = vsub.s32 %v1292, 2
    %vm1294 = vcmp.gt.s32.totalorder 0, %v1293
    %v1295 = vsel %vm1294, 0, %v1293
    %v1296 = vsub.s32 32, %v1295
    %v1297 = vshll.u32 %v1288, %v1295
    %v1298 = vshrl.u32 %v1280, %v1296
    %v1299 = vor.u32 %v1297, %v1298
    %v1300 = vsub.s32 4294967266, %v1295
    %v1301 = vadd.s32 %v1300, 127
    %v1302 = vshll.u32 %v1301, 23
    %v1303 = vor.u32 4788187, %v1302
    %v1304 = vand.u32 2147483647, %v1303
    %v1306 = vcvt.s32.f32 %v1299
    %v1307 = vmul.f32 %v1306, %v1304
    %v1308 = vxor.u32 %v1307, 2147483648
    %v1309 = vsel %vm1226, %v1308, %v1307
    %v1310 = vsub.s32 4, %v1286
    %v1311 = vsel %vm1226, %v1310, %v1286
    %v1312 = vsel %vm1225, %v1131, %v1309
    %v1313 = vsel %vm1225, 0, %v1311
    %v1314 = vcosq.f32.pop %v1312
    %v1315 = vsinq.f32.pop %v1312
    %vm1316 = vweird.f32 %v1131
    %v1317 = vand.u32 %v1313, 3
    %vm1318 = vcmp.lt.s32.totalorder %v1317, 2
    %vm1319 = vcmp.eq.s32.totalorder %v1317, 0
    %v1320 = vxor.u32 %v1315, 2147483648
    %v1321 = vsel %vm1319, %v1314, %v1320
    %vm1322 = vcmp.eq.s32.totalorder %v1317, 2
    %v1323 = vxor.u32 %v1314, 2147483648
    %v1324 = vsel %vm1322, %v1323, %v1315
    %v1325 = vsel %vm1318, %v1321, %v1324
    %v1326 = vsel %vm1316, nan, %v1325
    %v1327 = vand.u32 2147483647, %v1137
    %vm1328 = vcmp.le.f32.partialorder %v1327, 0.7853982
    %vm1329 = vcmp.lt.s32.totalorder %v1137, 0
    %v1330 = vand.u32 %v1137, 2139095040
    %v1331 = vshrl.u32 %v1330, 23
    %v1332 = vsub.s32 %v1331, 127
    %v1333 = vand.u32 2147483647, %v1137
    %v1334 = vand.u32 %v1333, 8388607
    %v1335 = vor.u32 %v1334, 8388608
    %v1336 = vsub.s32 0, %v1335
    %v1337 = vadd.s32 %v1332, 1
    %vm1338 = vcmp.gt.s32.totalorder %v1337, 0
    %v1339 = vsel %vm1338, %v1337, 0
    %v1340 = vshrl.u32 %v1339, 5
    %v1341 = vand.u32 %v1339, 31
    %v1342 = vsub.s32 32, %v1341
    %v1343 = vshrl.u32 683565275, %v1342
    %v1344 = vshll.u32 683565275, %v1341
    %v1345 = vshrl.u32 2475754826, %v1342
    %v1346 = vor.u32 %v1344, %v1345
    %v1347 = vshll.u32 2475754826, %v1341
    %v1348 = vshrl.u32 2131351028, %v1342
    %v1349 = vor.u32 %v1347, %v1348
    %v1350 = vshll.u32 2131351028, %v1341
    %v1351 = vshrl.u32 2102212464, %v1342
    %v1352 = vor.u32 %v1350, %v1351
    %v1353 = vshll.u32 2102212464, %v1341
    %v1354 = vshrl.u32 920167782, %v1342
    %v1355 = vor.u32 %v1353, %v1354
    %v1356 = vshll.u32 920167782, %v1341
    %v1357 = vshrl.u32 1326507024, %v1342
    %v1358 = vor.u32 %v1356, %v1357
    %vm1359 = vcmp.lt.s32.totalorder %v1340, 1
    %vm1360 = vcmp.lt.s32.totalorder %v1340, 2
    %vm1361 = vcmp.lt.s32.totalorder %v1340, 3
    %vm1362 = vcmp.lt.s32.totalorder %v1340, 4
    %v1363 = vsel %vm1359, %v1343, %v1346
    %v1364 = vsel %vm1362, %v1352, 2102212464
    %v1365 = vsel %vm1361, %v1349, %v1364
    %v1366 = vsel %vm1360, %v1363, %v1365
    %v1367 = vsel %vm1359, %v1346, %v1349
    %v1368 = vsel %vm1362, %v1355, 920167782
    %v1369 = vsel %vm1361, %v1352, %v1368
    %v1370 = vsel %vm1360, %v1367, %v1369
    %v1371 = vsel %vm1359, %v1349, %v1352
    %v1372 = vsel %vm1362, %v1358, 1326507024
    %v1373 = vsel %vm1361, %v1355, %v1372
    %v1374 = vsel %vm1360, %v1371, %v1373
    %v1375 = vshll.u32 %v1335, 8
    %v1376 = vmul.u32.u64.compose %v1375, %v1374
    %v1377 = vextract.low.u32 %v1376
    %v1378 = vextract.high.u32 %v1376
    %v1379 = vmul.u32.u64.compose %v1375, %v1370
    %v1380 = vextract.low.u32 %v1379
    %v1381 = vextract.high.u32 %v1379
    %v1382 = vmul.u32 %v1375, %v1366
    %v1383 = vadd.s32 %v1378, %v1380
    %vm1384 = vc.u32 %v1378, %v1380
    %v1385 = vadd.s32 %v1381, 1
    %v1386 = vsel %vm1384, %v1385, %v1381
    %v1387 = vadd.s32 %v1382, %v1386
    %v1388 = vadd.s32 %v1387, 536870912
    %v1389 = vshrl.u32 %v1388, 30
    %v1390 = vshll.u32 %v1389, 30
    %v1391 = vsub.s32 %v1387, %v1390
    %vm1392 = vcmp.lt.s32.totalorder %v1391, 0
    %v1393 = vsub.s32 0, %v1391
    %v1394 = vsel %vm1392, %v1393, %v1391
    %v1395 = vclz %v1394
    %v1396 = vsub.s32 %v1395, 2
    %vm1397 = vcmp.gt.s32.totalorder 0, %v1396
    %v1398 = vsel %vm1397, 0, %v1396
    %v1399 = vsub.s32 32, %v1398
    %v1400 = vshll.u32 %v1391, %v1398
    %v1401 = vshrl.u32 %v1383, %v1399
    %v1402 = vor.u32 %v1400, %v1401
    %v1403 = vsub.s32 4294967266, %v1398
    %v1404 = vadd.s32 %v1403, 127
    %v1405 = vshll.u32 %v1404, 23
    %v1406 = vor.u32 4788187, %v1405
    %v1407 = vand.u32 2147483647, %v1406
    %v1409 = vcvt.s32.f32 %v1402
    %v1410 = vmul.f32 %v1409, %v1407
    %v1411 = vxor.u32 %v1410, 2147483648
    %v1412 = vsel %vm1329, %v1411, %v1410
    %v1413 = vsub.s32 4, %v1389
    %v1414 = vsel %vm1329, %v1413, %v1389
    %v1415 = vsel %vm1328, %v1137, %v1412
    %v1416 = vsel %vm1328, 0, %v1414
    %v1417 = vcosq.f32.pop %v1415
    %v1418 = vsinq.f32.pop %v1415
    %vm1419 = vweird.f32 %v1137
    %v1420 = vand.u32 %v1416, 3
    %vm1421 = vcmp.lt.s32.totalorder %v1420, 2
    %vm1422 = vcmp.eq.s32.totalorder %v1420, 0
    %v1423 = vxor.u32 %v1418, 2147483648
    %v1424 = vsel %vm1422, %v1417, %v1423
    %vm1425 = vcmp.eq.s32.totalorder %v1420, 2
    %v1426 = vxor.u32 %v1417, 2147483648
    %v1427 = vsel %vm1425, %v1426, %v1418
    %v1428 = vsel %vm1421, %v1424, %v1427
    %v1429 = vsel %vm1419, nan, %v1428
    %v1430 = vand.u32 2147483647, %v1143
    %vm1431 = vcmp.le.f32.partialorder %v1430, 0.7853982
    %vm1432 = vcmp.lt.s32.totalorder %v1143, 0
    %v1433 = vand.u32 %v1143, 2139095040
    %v1434 = vshrl.u32 %v1433, 23
    %v1435 = vsub.s32 %v1434, 127
    %v1436 = vand.u32 2147483647, %v1143
    %v1437 = vand.u32 %v1436, 8388607
    %v1438 = vor.u32 %v1437, 8388608
    %v1439 = vsub.s32 0, %v1438
    %v1440 = vadd.s32 %v1435, 1
    %vm1441 = vcmp.gt.s32.totalorder %v1440, 0
    %v1442 = vsel %vm1441, %v1440, 0
    %v1443 = vshrl.u32 %v1442, 5
    %v1444 = vand.u32 %v1442, 31
    %v1445 = vsub.s32 32, %v1444
    %v1446 = vshrl.u32 683565275, %v1445
    %v1447 = vshll.u32 683565275, %v1444
    %v1448 = vshrl.u32 2475754826, %v1445
    %v1449 = vor.u32 %v1447, %v1448
    %v1450 = vshll.u32 2475754826, %v1444
    %v1451 = vshrl.u32 2131351028, %v1445
    %v1452 = vor.u32 %v1450, %v1451
    %v1453 = vshll.u32 2131351028, %v1444
    %v1454 = vshrl.u32 2102212464, %v1445
    %v1455 = vor.u32 %v1453, %v1454
    %v1456 = vshll.u32 2102212464, %v1444
    %v1457 = vshrl.u32 920167782, %v1445
    %v1458 = vor.u32 %v1456, %v1457
    %v1459 = vshll.u32 920167782, %v1444
    %v1460 = vshrl.u32 1326507024, %v1445
    %v1461 = vor.u32 %v1459, %v1460
    %vm1462 = vcmp.lt.s32.totalorder %v1443, 1
    %vm1463 = vcmp.lt.s32.totalorder %v1443, 2
    %vm1464 = vcmp.lt.s32.totalorder %v1443, 3
    %vm1465 = vcmp.lt.s32.totalorder %v1443, 4
    %v1466 = vsel %vm1462, %v1446, %v1449
    %v1467 = vsel %vm1465, %v1455, 2102212464
    %v1468 = vsel %vm1464, %v1452, %v1467
    %v1469 = vsel %vm1463, %v1466, %v1468
    %v1470 = vsel %vm1462, %v1449, %v1452
    %v1471 = vsel %vm1465, %v1458, 920167782
    %v1472 = vsel %vm1464, %v1455, %v1471
    %v1473 = vsel %vm1463, %v1470, %v1472
    %v1474 = vsel %vm1462, %v1452, %v1455
    %v1475 = vsel %vm1465, %v1461, 1326507024
    %v1476 = vsel %vm1464, %v1458, %v1475
    %v1477 = vsel %vm1463, %v1474, %v1476
    %v1478 = vshll.u32 %v1438, 8
    %v1479 = vmul.u32.u64.compose %v1478, %v1477
    %v1480 = vextract.low.u32 %v1479
    %v1481 = vextract.high.u32 %v1479
    %v1482 = vmul.u32.u64.compose %v1478, %v1473
    %v1483 = vextract.low.u32 %v1482
    %v1484 = vextract.high.u32 %v1482
    %v1485 = vmul.u32 %v1478, %v1469
    %v1486 = vadd.s32 %v1481, %v1483
    %vm1487 = vc.u32 %v1481, %v1483
    %v1488 = vadd.s32 %v1484, 1
    %v1489 = vsel %vm1487, %v1488, %v1484
    %v1490 = vadd.s32 %v1485, %v1489
    %v1491 = vadd.s32 %v1490, 536870912
    %v1492 = vshrl.u32 %v1491, 30
    %v1493 = vshll.u32 %v1492, 30
    %v1494 = vsub.s32 %v1490, %v1493
    %vm1495 = vcmp.lt.s32.totalorder %v1494, 0
    %v1496 = vsub.s32 0, %v1494
    %v1497 = vsel %vm1495, %v1496, %v1494
    %v1498 = vclz %v1497
    %v1499 = vsub.s32 %v1498, 2
    %vm1500 = vcmp.gt.s32.totalorder 0, %v1499
    %v1501 = vsel %vm1500, 0, %v1499
    %v1502 = vsub.s32 32, %v1501
    %v1503 = vshll.u32 %v1494, %v1501
    %v1504 = vshrl.u32 %v1486, %v1502
    %v1505 = vor.u32 %v1503, %v1504
    %v1506 = vsub.s32 4294967266, %v1501
    %v1507 = vadd.s32 %v1506, 127
    %v1508 = vshll.u32 %v1507, 23
    %v1509 = vor.u32 4788187, %v1508
    %v1510 = vand.u32 2147483647, %v1509
    %v1512 = vcvt.s32.f32 %v1505
    %v1513 = vmul.f32 %v1512, %v1510
    %v1514 = vxor.u32 %v1513, 2147483648
    %v1515 = vsel %vm1432, %v1514, %v1513
    %v1516 = vsub.s32 4, %v1492
    %v1517 = vsel %vm1432, %v1516, %v1492
    %v1518 = vsel %vm1431, %v1143, %v1515
    %v1519 = vsel %vm1431, 0, %v1517
    %v1520 = vcosq.f32.pop %v1518
    %v1521 = vsinq.f32.pop %v1518
    %vm1522 = vweird.f32 %v1143
    %v1523 = vand.u32 %v1519, 3
    %vm1524 = vcmp.lt.s32.totalorder %v1523, 2
    %vm1525 = vcmp.eq.s32.totalorder %v1523, 0
    %v1526 = vxor.u32 %v1521, 2147483648
    %v1527 = vsel %vm1525, %v1520, %v1526
    %vm1528 = vcmp.eq.s32.totalorder %v1523, 2
    %v1529 = vxor.u32 %v1520, 2147483648
    %v1530 = vsel %vm1528, %v1529, %v1521
    %v1531 = vsel %vm1524, %v1527, %v1530
    %v1532 = vsel %vm1522, nan, %v1531
    %v1533 = vand.u32 2147483647, %v1149
    %vm1534 = vcmp.le.f32.partialorder %v1533, 0.7853982
    %vm1535 = vcmp.lt.s32.totalorder %v1149, 0
    %v1536 = vand.u32 %v1149, 2139095040
    %v1537 = vshrl.u32 %v1536, 23
    %v1538 = vsub.s32 %v1537, 127
    %v1539 = vand.u32 2147483647, %v1149
    %v1540 = vand.u32 %v1539, 8388607
    %v1541 = vor.u32 %v1540, 8388608
    %v1542 = vsub.s32 0, %v1541
    %v1543 = vadd.s32 %v1538, 1
    %vm1544 = vcmp.gt.s32.totalorder %v1543, 0
    %v1545 = vsel %vm1544, %v1543, 0
    %v1546 = vshrl.u32 %v1545, 5
    %v1547 = vand.u32 %v1545, 31
    %v1548 = vsub.s32 32, %v1547
    %v1549 = vshrl.u32 683565275, %v1548
    %v1550 = vshll.u32 683565275, %v1547
    %v1551 = vshrl.u32 2475754826, %v1548
    %v1552 = vor.u32 %v1550, %v1551
    %v1553 = vshll.u32 2475754826, %v1547
    %v1554 = vshrl.u32 2131351028, %v1548
    %v1555 = vor.u32 %v1553, %v1554
    %v1556 = vshll.u32 2131351028, %v1547
    %v1557 = vshrl.u32 2102212464, %v1548
    %v1558 = vor.u32 %v1556, %v1557
    %v1559 = vshll.u32 2102212464, %v1547
    %v1560 = vshrl.u32 920167782, %v1548
    %v1561 = vor.u32 %v1559, %v1560
    %v1562 = vshll.u32 920167782, %v1547
    %v1563 = vshrl.u32 1326507024, %v1548
    %v1564 = vor.u32 %v1562, %v1563
    %vm1565 = vcmp.lt.s32.totalorder %v1546, 1
    %vm1566 = vcmp.lt.s32.totalorder %v1546, 2
    %vm1567 = vcmp.lt.s32.totalorder %v1546, 3
    %vm1568 = vcmp.lt.s32.totalorder %v1546, 4
    %v1569 = vsel %vm1565, %v1549, %v1552
    %v1570 = vsel %vm1568, %v1558, 2102212464
    %v1571 = vsel %vm1567, %v1555, %v1570
    %v1572 = vsel %vm1566, %v1569, %v1571
    %v1573 = vsel %vm1565, %v1552, %v1555
    %v1574 = vsel %vm1568, %v1561, 920167782
    %v1575 = vsel %vm1567, %v1558, %v1574
    %v1576 = vsel %vm1566, %v1573, %v1575
    %v1577 = vsel %vm1565, %v1555, %v1558
    %v1578 = vsel %vm1568, %v1564, 1326507024
    %v1579 = vsel %vm1567, %v1561, %v1578
    %v1580 = vsel %vm1566, %v1577, %v1579
    %v1581 = vshll.u32 %v1541, 8
    %v1582 = vmul.u32.u64.compose %v1581, %v1580
    %v1583 = vextract.low.u32 %v1582
    %v1584 = vextract.high.u32 %v1582
    %v1585 = vmul.u32.u64.compose %v1581, %v1576
    %v1586 = vextract.low.u32 %v1585
    %v1587 = vextract.high.u32 %v1585
    %v1588 = vmul.u32 %v1581, %v1572
    %v1589 = vadd.s32 %v1584, %v1586
    %vm1590 = vc.u32 %v1584, %v1586
    %v1591 = vadd.s32 %v1587, 1
    %v1592 = vsel %vm1590, %v1591, %v1587
    %v1593 = vadd.s32 %v1588, %v1592
    %v1594 = vadd.s32 %v1593, 536870912
    %v1595 = vshrl.u32 %v1594, 30
    %v1596 = vshll.u32 %v1595, 30
    %v1597 = vsub.s32 %v1593, %v1596
    %vm1598 = vcmp.lt.s32.totalorder %v1597, 0
    %v1599 = vsub.s32 0, %v1597
    %v1600 = vsel %vm1598, %v1599, %v1597
    %v1601 = vclz %v1600
    %v1602 = vsub.s32 %v1601, 2
    %vm1603 = vcmp.gt.s32.totalorder 0, %v1602
    %v1604 = vsel %vm1603, 0, %v1602
    %v1605 = vsub.s32 32, %v1604
    %v1606 = vshll.u32 %v1597, %v1604
    %v1607 = vshrl.u32 %v1589, %v1605
    %v1608 = vor.u32 %v1606, %v1607
    %v1609 = vsub.s32 4294967266, %v1604
    %v1610 = vadd.s32 %v1609, 127
    %v1611 = vshll.u32 %v1610, 23
    %v1612 = vor.u32 4788187, %v1611
    %v1613 = vand.u32 2147483647, %v1612
    %v1615 = vcvt.s32.f32 %v1608
    %v1616 = vmul.f32 %v1615, %v1613
    %v1617 = vxor.u32 %v1616, 2147483648
    %v1618 = vsel %vm1535, %v1617, %v1616
    %v1619 = vsub.s32 4, %v1595
    %v1620 = vsel %vm1535, %v1619, %v1595
    %v1621 = vsel %vm1534, %v1149, %v1618
    %v1622 = vsel %vm1534, 0, %v1620
    %v1623 = vcosq.f32.pop %v1621
    %v1624 = vsinq.f32.pop %v1621
    %vm1625 = vweird.f32 %v1149
    %v1626 = vand.u32 %v1622, 3
    %vm1627 = vcmp.lt.s32.totalorder %v1626, 2
    %vm1628 = vcmp.eq.s32.totalorder %v1626, 0
    %v1629 = vxor.u32 %v1624, 2147483648
    %v1630 = vsel %vm1628, %v1623, %v1629
    %vm1631 = vcmp.eq.s32.totalorder %v1626, 2
    %v1632 = vxor.u32 %v1623, 2147483648
    %v1633 = vsel %vm1631, %v1632, %v1624
    %v1634 = vsel %vm1627, %v1630, %v1633
    %v1635 = vsel %vm1625, nan, %v1634
    %v1636 = vand.u32 2147483647, %v1155
    %vm1637 = vcmp.le.f32.partialorder %v1636, 0.7853982
    %vm1638 = vcmp.lt.s32.totalorder %v1155, 0
    %v1639 = vand.u32 %v1155, 2139095040
    %v1640 = vshrl.u32 %v1639, 23
    %v1641 = vsub.s32 %v1640, 127
    %v1642 = vand.u32 2147483647, %v1155
    %v1643 = vand.u32 %v1642, 8388607
    %v1644 = vor.u32 %v1643, 8388608
    %v1645 = vsub.s32 0, %v1644
    %v1646 = vadd.s32 %v1641, 1
    %vm1647 = vcmp.gt.s32.totalorder %v1646, 0
    %v1648 = vsel %vm1647, %v1646, 0
    %v1649 = vshrl.u32 %v1648, 5
    %v1650 = vand.u32 %v1648, 31
    %v1651 = vsub.s32 32, %v1650
    %v1652 = vshrl.u32 683565275, %v1651
    %v1653 = vshll.u32 683565275, %v1650
    %v1654 = vshrl.u32 2475754826, %v1651
    %v1655 = vor.u32 %v1653, %v1654
    %v1656 = vshll.u32 2475754826, %v1650
    %v1657 = vshrl.u32 2131351028, %v1651
    %v1658 = vor.u32 %v1656, %v1657
    %v1659 = vshll.u32 2131351028, %v1650
    %v1660 = vshrl.u32 2102212464, %v1651
    %v1661 = vor.u32 %v1659, %v1660
    %v1662 = vshll.u32 2102212464, %v1650
    %v1663 = vshrl.u32 920167782, %v1651
    %v1664 = vor.u32 %v1662, %v1663
    %v1665 = vshll.u32 920167782, %v1650
    %v1666 = vshrl.u32 1326507024, %v1651
    %v1667 = vor.u32 %v1665, %v1666
    %vm1668 = vcmp.lt.s32.totalorder %v1649, 1
    %vm1669 = vcmp.lt.s32.totalorder %v1649, 2
    %vm1670 = vcmp.lt.s32.totalorder %v1649, 3
    %vm1671 = vcmp.lt.s32.totalorder %v1649, 4
    %v1672 = vsel %vm1668, %v1652, %v1655
    %v1673 = vsel %vm1671, %v1661, 2102212464
    %v1674 = vsel %vm1670, %v1658, %v1673
    %v1675 = vsel %vm1669, %v1672, %v1674
    %v1676 = vsel %vm1668, %v1655, %v1658
    %v1677 = vsel %vm1671, %v1664, 920167782
    %v1678 = vsel %vm1670, %v1661, %v1677
    %v1679 = vsel %vm1669, %v1676, %v1678
    %v1680 = vsel %vm1668, %v1658, %v1661
    %v1681 = vsel %vm1671, %v1667, 1326507024
    %v1682 = vsel %vm1670, %v1664, %v1681
    %v1683 = vsel %vm1669, %v1680, %v1682
    %v1684 = vshll.u32 %v1644, 8
    %v1685 = vmul.u32.u64.compose %v1684, %v1683
    %v1686 = vextract.low.u32 %v1685
    %v1687 = vextract.high.u32 %v1685
    %v1688 = vmul.u32.u64.compose %v1684, %v1679
    %v1689 = vextract.low.u32 %v1688
    %v1690 = vextract.high.u32 %v1688
    %v1691 = vmul.u32 %v1684, %v1675
    %v1692 = vadd.s32 %v1687, %v1689
    %vm1693 = vc.u32 %v1687, %v1689
    %v1694 = vadd.s32 %v1690, 1
    %v1695 = vsel %vm1693, %v1694, %v1690
    %v1696 = vadd.s32 %v1691, %v1695
    %v1697 = vadd.s32 %v1696, 536870912
    %v1698 = vshrl.u32 %v1697, 30
    %v1699 = vshll.u32 %v1698, 30
    %v1700 = vsub.s32 %v1696, %v1699
    %vm1701 = vcmp.lt.s32.totalorder %v1700, 0
    %v1702 = vsub.s32 0, %v1700
    %v1703 = vsel %vm1701, %v1702, %v1700
    %v1704 = vclz %v1703
    %v1705 = vsub.s32 %v1704, 2
    %vm1706 = vcmp.gt.s32.totalorder 0, %v1705
    %v1707 = vsel %vm1706, 0, %v1705
    %v1708 = vsub.s32 32, %v1707
    %v1709 = vshll.u32 %v1700, %v1707
    %v1710 = vshrl.u32 %v1692, %v1708
    %v1711 = vor.u32 %v1709, %v1710
    %v1712 = vsub.s32 4294967266, %v1707
    %v1713 = vadd.s32 %v1712, 127
    %v1714 = vshll.u32 %v1713, 23
    %v1715 = vor.u32 4788187, %v1714
    %v1716 = vand.u32 2147483647, %v1715
    %v1718 = vcvt.s32.f32 %v1711
    %v1719 = vmul.f32 %v1718, %v1716
    %v1720 = vxor.u32 %v1719, 2147483648
    %v1721 = vsel %vm1638, %v1720, %v1719
    %v1722 = vsub.s32 4, %v1698
    %v1723 = vsel %vm1638, %v1722, %v1698
    %v1724 = vsel %vm1637, %v1155, %v1721
    %v1725 = vsel %vm1637, 0, %v1723
    %v1726 = vcosq.f32.pop %v1724
    %v1727 = vsinq.f32.pop %v1724
    %vm1728 = vweird.f32 %v1155
    %v1729 = vand.u32 %v1725, 3
    %vm1730 = vcmp.lt.s32.totalorder %v1729, 2
    %vm1731 = vcmp.eq.s32.totalorder %v1729, 0
    %v1732 = vxor.u32 %v1727, 2147483648
    %v1733 = vsel %vm1731, %v1726, %v1732
    %vm1734 = vcmp.eq.s32.totalorder %v1729, 2
    %v1735 = vxor.u32 %v1726, 2147483648
    %v1736 = vsel %vm1734, %v1735, %v1727
    %v1737 = vsel %vm1730, %v1733, %v1736
    %v1738 = vsel %vm1728, nan, %v1737
    %v1739 = vand.u32 2147483647, %v1161
    %vm1740 = vcmp.le.f32.partialorder %v1739, 0.7853982
    %vm1741 = vcmp.lt.s32.totalorder %v1161, 0
    %v1742 = vand.u32 %v1161, 2139095040
    %v1743 = vshrl.u32 %v1742, 23
    %v1744 = vsub.s32 %v1743, 127
    %v1745 = vand.u32 2147483647, %v1161
    %v1746 = vand.u32 %v1745, 8388607
    %v1747 = vor.u32 %v1746, 8388608
    %v1748 = vsub.s32 0, %v1747
    %v1749 = vadd.s32 %v1744, 1
    %vm1750 = vcmp.gt.s32.totalorder %v1749, 0
    %v1751 = vsel %vm1750, %v1749, 0
    %v1752 = vshrl.u32 %v1751, 5
    %v1753 = vand.u32 %v1751, 31
    %v1754 = vsub.s32 32, %v1753
    %v1755 = vshrl.u32 683565275, %v1754
    %v1756 = vshll.u32 683565275, %v1753
    %v1757 = vshrl.u32 2475754826, %v1754
    %v1758 = vor.u32 %v1756, %v1757
    %v1759 = vshll.u32 2475754826, %v1753
    %v1760 = vshrl.u32 2131351028, %v1754
    %v1761 = vor.u32 %v1759, %v1760
    %v1762 = vshll.u32 2131351028, %v1753
    %v1763 = vshrl.u32 2102212464, %v1754
    %v1764 = vor.u32 %v1762, %v1763
    %v1765 = vshll.u32 2102212464, %v1753
    %v1766 = vshrl.u32 920167782, %v1754
    %v1767 = vor.u32 %v1765, %v1766
    %v1768 = vshll.u32 920167782, %v1753
    %v1769 = vshrl.u32 1326507024, %v1754
    %v1770 = vor.u32 %v1768, %v1769
    %vm1771 = vcmp.lt.s32.totalorder %v1752, 1
    %vm1772 = vcmp.lt.s32.totalorder %v1752, 2
    %vm1773 = vcmp.lt.s32.totalorder %v1752, 3
    %vm1774 = vcmp.lt.s32.totalorder %v1752, 4
    %v1775 = vsel %vm1771, %v1755, %v1758
    %v1776 = vsel %vm1774, %v1764, 2102212464
    %v1777 = vsel %vm1773, %v1761, %v1776
    %v1778 = vsel %vm1772, %v1775, %v1777
    %v1779 = vsel %vm1771, %v1758, %v1761
    %v1780 = vsel %vm1774, %v1767, 920167782
    %v1781 = vsel %vm1773, %v1764, %v1780
    %v1782 = vsel %vm1772, %v1779, %v1781
    %v1783 = vsel %vm1771, %v1761, %v1764
    %v1784 = vsel %vm1774, %v1770, 1326507024
    %v1785 = vsel %vm1773, %v1767, %v1784
    %v1786 = vsel %vm1772, %v1783, %v1785
    %v1787 = vshll.u32 %v1747, 8
    %v1788 = vmul.u32.u64.compose %v1787, %v1786
    %v1789 = vextract.low.u32 %v1788
    %v1790 = vextract.high.u32 %v1788
    %v1791 = vmul.u32.u64.compose %v1787, %v1782
    %v1792 = vextract.low.u32 %v1791
    %v1793 = vextract.high.u32 %v1791
    %v1794 = vmul.u32 %v1787, %v1778
    %v1795 = vadd.s32 %v1790, %v1792
    %vm1796 = vc.u32 %v1790, %v1792
    %v1797 = vadd.s32 %v1793, 1
    %v1798 = vsel %vm1796, %v1797, %v1793
    %v1799 = vadd.s32 %v1794, %v1798
    %v1800 = vadd.s32 %v1799, 536870912
    %v1801 = vshrl.u32 %v1800, 30
    %v1802 = vshll.u32 %v1801, 30
    %v1803 = vsub.s32 %v1799, %v1802
    %vm1804 = vcmp.lt.s32.totalorder %v1803, 0
    %v1805 = vsub.s32 0, %v1803
    %v1806 = vsel %vm1804, %v1805, %v1803
    %v1807 = vclz %v1806
    %v1808 = vsub.s32 %v1807, 2
    %vm1809 = vcmp.gt.s32.totalorder 0, %v1808
    %v1810 = vsel %vm1809, 0, %v1808
    %v1811 = vsub.s32 32, %v1810
    %v1812 = vshll.u32 %v1803, %v1810
    %v1813 = vshrl.u32 %v1795, %v1811
    %v1814 = vor.u32 %v1812, %v1813
    %v1815 = vsub.s32 4294967266, %v1810
    %v1816 = vadd.s32 %v1815, 127
    %v1817 = vshll.u32 %v1816, 23
    %v1818 = vor.u32 4788187, %v1817
    %v1819 = vand.u32 2147483647, %v1818
    %v1821 = vcvt.s32.f32 %v1814
    %v1822 = vmul.f32 %v1821, %v1819
    %v1823 = vxor.u32 %v1822, 2147483648
    %v1824 = vsel %vm1741, %v1823, %v1822
    %v1825 = vsub.s32 4, %v1801
    %v1826 = vsel %vm1741, %v1825, %v1801
    %v1827 = vsel %vm1740, %v1161, %v1824
    %v1828 = vsel %vm1740, 0, %v1826
    %v1829 = vcosq.f32.pop %v1827
    %v1830 = vsinq.f32.pop %v1827
    %vm1831 = vweird.f32 %v1161
    %v1832 = vand.u32 %v1828, 3
    %vm1833 = vcmp.lt.s32.totalorder %v1832, 2
    %vm1834 = vcmp.eq.s32.totalorder %v1832, 0
    %v1835 = vxor.u32 %v1830, 2147483648
    %v1836 = vsel %vm1834, %v1829, %v1835
    %vm1837 = vcmp.eq.s32.totalorder %v1832, 2
    %v1838 = vxor.u32 %v1829, 2147483648
    %v1839 = vsel %vm1837, %v1838, %v1830
    %v1840 = vsel %vm1833, %v1836, %v1839
    %v1841 = vsel %vm1831, nan, %v1840
    %v1842 = vand.u32 2147483647, %v1167
    %vm1843 = vcmp.le.f32.partialorder %v1842, 0.7853982
    %vm1844 = vcmp.lt.s32.totalorder %v1167, 0
    %v1845 = vand.u32 %v1167, 2139095040
    %v1846 = vshrl.u32 %v1845, 23
    %v1847 = vsub.s32 %v1846, 127
    %v1848 = vand.u32 2147483647, %v1167
    %v1849 = vand.u32 %v1848, 8388607
    %v1850 = vor.u32 %v1849, 8388608
    %v1851 = vsub.s32 0, %v1850
    %v1852 = vadd.s32 %v1847, 1
    %vm1853 = vcmp.gt.s32.totalorder %v1852, 0
    %v1854 = vsel %vm1853, %v1852, 0
    %v1855 = vshrl.u32 %v1854, 5
    %v1856 = vand.u32 %v1854, 31
    %v1857 = vsub.s32 32, %v1856
    %v1858 = vshrl.u32 683565275, %v1857
    %v1859 = vshll.u32 683565275, %v1856
    %v1860 = vshrl.u32 2475754826, %v1857
    %v1861 = vor.u32 %v1859, %v1860
    %v1862 = vshll.u32 2475754826, %v1856
    %v1863 = vshrl.u32 2131351028, %v1857
    %v1864 = vor.u32 %v1862, %v1863
    %v1865 = vshll.u32 2131351028, %v1856
    %v1866 = vshrl.u32 2102212464, %v1857
    %v1867 = vor.u32 %v1865, %v1866
    %v1868 = vshll.u32 2102212464, %v1856
    %v1869 = vshrl.u32 920167782, %v1857
    %v1870 = vor.u32 %v1868, %v1869
    %v1871 = vshll.u32 920167782, %v1856
    %v1872 = vshrl.u32 1326507024, %v1857
    %v1873 = vor.u32 %v1871, %v1872
    %vm1874 = vcmp.lt.s32.totalorder %v1855, 1
    %vm1875 = vcmp.lt.s32.totalorder %v1855, 2
    %vm1876 = vcmp.lt.s32.totalorder %v1855, 3
    %vm1877 = vcmp.lt.s32.totalorder %v1855, 4
    %v1878 = vsel %vm1874, %v1858, %v1861
    %v1879 = vsel %vm1877, %v1867, 2102212464
    %v1880 = vsel %vm1876, %v1864, %v1879
    %v1881 = vsel %vm1875, %v1878, %v1880
    %v1882 = vsel %vm1874, %v1861, %v1864
    %v1883 = vsel %vm1877, %v1870, 920167782
    %v1884 = vsel %vm1876, %v1867, %v1883
    %v1885 = vsel %vm1875, %v1882, %v1884
    %v1886 = vsel %vm1874, %v1864, %v1867
    %v1887 = vsel %vm1877, %v1873, 1326507024
    %v1888 = vsel %vm1876, %v1870, %v1887
    %v1889 = vsel %vm1875, %v1886, %v1888
    %v1890 = vshll.u32 %v1850, 8
    %v1891 = vmul.u32.u64.compose %v1890, %v1889
    %v1892 = vextract.low.u32 %v1891
    %v1893 = vextract.high.u32 %v1891
    %v1894 = vmul.u32.u64.compose %v1890, %v1885
    %v1895 = vextract.low.u32 %v1894
    %v1896 = vextract.high.u32 %v1894
    %v1897 = vmul.u32 %v1890, %v1881
    %v1898 = vadd.s32 %v1893, %v1895
    %vm1899 = vc.u32 %v1893, %v1895
    %v1900 = vadd.s32 %v1896, 1
    %v1901 = vsel %vm1899, %v1900, %v1896
    %v1902 = vadd.s32 %v1897, %v1901
    %v1903 = vadd.s32 %v1902, 536870912
    %v1904 = vshrl.u32 %v1903, 30
    %v1905 = vshll.u32 %v1904, 30
    %v1906 = vsub.s32 %v1902, %v1905
    %vm1907 = vcmp.lt.s32.totalorder %v1906, 0
    %v1908 = vsub.s32 0, %v1906
    %v1909 = vsel %vm1907, %v1908, %v1906
    %v1910 = vclz %v1909
    %v1911 = vsub.s32 %v1910, 2
    %vm1912 = vcmp.gt.s32.totalorder 0, %v1911
    %v1913 = vsel %vm1912, 0, %v1911
    %v1914 = vsub.s32 32, %v1913
    %v1915 = vshll.u32 %v1906, %v1913
    %v1916 = vshrl.u32 %v1898, %v1914
    %v1917 = vor.u32 %v1915, %v1916
    %v1918 = vsub.s32 4294967266, %v1913
    %v1919 = vadd.s32 %v1918, 127
    %v1920 = vshll.u32 %v1919, 23
    %v1921 = vor.u32 4788187, %v1920
    %v1922 = vand.u32 2147483647, %v1921
    %v1924 = vcvt.s32.f32 %v1917
    %v1925 = vmul.f32 %v1924, %v1922
    %v1926 = vxor.u32 %v1925, 2147483648
    %v1927 = vsel %vm1844, %v1926, %v1925
    %v1928 = vsub.s32 4, %v1904
    %v1929 = vsel %vm1844, %v1928, %v1904
    %v1930 = vsel %vm1843, %v1167, %v1927
    %v1931 = vsel %vm1843, 0, %v1929
    %v1932 = vcosq.f32.pop %v1930
    %v1933 = vsinq.f32.pop %v1930
    %vm1934 = vweird.f32 %v1167
    %v1935 = vand.u32 %v1931, 3
    %vm1936 = vcmp.lt.s32.totalorder %v1935, 2
    %vm1937 = vcmp.eq.s32.totalorder %v1935, 0
    %v1938 = vxor.u32 %v1933, 2147483648
    %v1939 = vsel %vm1937, %v1932, %v1938
    %vm1940 = vcmp.eq.s32.totalorder %v1935, 2
    %v1941 = vxor.u32 %v1932, 2147483648
    %v1942 = vsel %vm1940, %v1941, %v1933
    %v1943 = vsel %vm1936, %v1939, %v1942
    %v1944 = vsel %vm1934, nan, %v1943
    %v1945 = vand.u32 2147483647, %v1173
    %vm1946 = vcmp.le.f32.partialorder %v1945, 0.7853982
    %vm1947 = vcmp.lt.s32.totalorder %v1173, 0
    %v1948 = vand.u32 %v1173, 2139095040
    %v1949 = vshrl.u32 %v1948, 23
    %v1950 = vsub.s32 %v1949, 127
    %v1951 = vand.u32 2147483647, %v1173
    %v1952 = vand.u32 %v1951, 8388607
    %v1953 = vor.u32 %v1952, 8388608
    %v1954 = vsub.s32 0, %v1953
    %v1955 = vadd.s32 %v1950, 1
    %vm1956 = vcmp.gt.s32.totalorder %v1955, 0
    %v1957 = vsel %vm1956, %v1955, 0
    %v1958 = vshrl.u32 %v1957, 5
    %v1959 = vand.u32 %v1957, 31
    %v1960 = vsub.s32 32, %v1959
    %v1961 = vshrl.u32 683565275, %v1960
    %v1962 = vshll.u32 683565275, %v1959
    %v1963 = vshrl.u32 2475754826, %v1960
    %v1964 = vor.u32 %v1962, %v1963
    %v1965 = vshll.u32 2475754826, %v1959
    %v1966 = vshrl.u32 2131351028, %v1960
    %v1967 = vor.u32 %v1965, %v1966
    %v1968 = vshll.u32 2131351028, %v1959
    %v1969 = vshrl.u32 2102212464, %v1960
    %v1970 = vor.u32 %v1968, %v1969
    %v1971 = vshll.u32 2102212464, %v1959
    %v1972 = vshrl.u32 920167782, %v1960
    %v1973 = vor.u32 %v1971, %v1972
    %v1974 = vshll.u32 920167782, %v1959
    %v1975 = vshrl.u32 1326507024, %v1960
    %v1976 = vor.u32 %v1974, %v1975
    %vm1977 = vcmp.lt.s32.totalorder %v1958, 1
    %vm1978 = vcmp.lt.s32.totalorder %v1958, 2
    %vm1979 = vcmp.lt.s32.totalorder %v1958, 3
    %vm1980 = vcmp.lt.s32.totalorder %v1958, 4
    %v1981 = vsel %vm1977, %v1961, %v1964
    %v1982 = vsel %vm1980, %v1970, 2102212464
    %v1983 = vsel %vm1979, %v1967, %v1982
    %v1984 = vsel %vm1978, %v1981, %v1983
    %v1985 = vsel %vm1977, %v1964, %v1967
    %v1986 = vsel %vm1980, %v1973, 920167782
    %v1987 = vsel %vm1979, %v1970, %v1986
    %v1988 = vsel %vm1978, %v1985, %v1987
    %v1989 = vsel %vm1977, %v1967, %v1970
    %v1990 = vsel %vm1980, %v1976, 1326507024
    %v1991 = vsel %vm1979, %v1973, %v1990
    %v1992 = vsel %vm1978, %v1989, %v1991
    %v1993 = vshll.u32 %v1953, 8
    %v1994 = vmul.u32.u64.compose %v1993, %v1992
    %v1995 = vextract.low.u32 %v1994
    %v1996 = vextract.high.u32 %v1994
    %v1997 = vmul.u32.u64.compose %v1993, %v1988
    %v1998 = vextract.low.u32 %v1997
    %v1999 = vextract.high.u32 %v1997
    %v2000 = vmul.u32 %v1993, %v1984
    %v2001 = vadd.s32 %v1996, %v1998
    %vm2002 = vc.u32 %v1996, %v1998
    %v2003 = vadd.s32 %v1999, 1
    %v2004 = vsel %vm2002, %v2003, %v1999
    %v2005 = vadd.s32 %v2000, %v2004
    %v2006 = vadd.s32 %v2005, 536870912
    %v2007 = vshrl.u32 %v2006, 30
    %v2008 = vshll.u32 %v2007, 30
    %v2009 = vsub.s32 %v2005, %v2008
    %vm2010 = vcmp.lt.s32.totalorder %v2009, 0
    %v2011 = vsub.s32 0, %v2009
    %v2012 = vsel %vm2010, %v2011, %v2009
    %v2013 = vclz %v2012
    %v2014 = vsub.s32 %v2013, 2
    %vm2015 = vcmp.gt.s32.totalorder 0, %v2014
    %v2016 = vsel %vm2015, 0, %v2014
    %v2017 = vsub.s32 32, %v2016
    %v2018 = vshll.u32 %v2009, %v2016
    %v2019 = vshrl.u32 %v2001, %v2017
    %v2020 = vor.u32 %v2018, %v2019
    %v2021 = vsub.s32 4294967266, %v2016
    %v2022 = vadd.s32 %v2021, 127
    %v2023 = vshll.u32 %v2022, 23
    %v2024 = vor.u32 4788187, %v2023
    %v2025 = vand.u32 2147483647, %v2024
    %v2027 = vcvt.s32.f32 %v2020
    %v2028 = vmul.f32 %v2027, %v2025
    %v2029 = vxor.u32 %v2028, 2147483648
    %v2030 = vsel %vm1947, %v2029, %v2028
    %v2031 = vsub.s32 4, %v2007
    %v2032 = vsel %vm1947, %v2031, %v2007
    %v2033 = vsel %vm1946, %v1173, %v2030
    %v2034 = vsel %vm1946, 0, %v2032
    %v2035 = vcosq.f32.pop %v2033
    %v2036 = vsinq.f32.pop %v2033
    %vm2037 = vweird.f32 %v1173
    %v2038 = vand.u32 %v2034, 3
    %vm2039 = vcmp.lt.s32.totalorder %v2038, 2
    %vm2040 = vcmp.eq.s32.totalorder %v2038, 0
    %v2041 = vxor.u32 %v2036, 2147483648
    %v2042 = vsel %vm2040, %v2035, %v2041
    %vm2043 = vcmp.eq.s32.totalorder %v2038, 2
    %v2044 = vxor.u32 %v2035, 2147483648
    %v2045 = vsel %vm2043, %v2044, %v2036
    %v2046 = vsel %vm2039, %v2042, %v2045
    %v2047 = vsel %vm2037, nan, %v2046
    %v2048 = vand.u32 2147483647, %v1179
    %vm2049 = vcmp.le.f32.partialorder %v2048, 0.7853982
    %vm2050 = vcmp.lt.s32.totalorder %v1179, 0
    %v2051 = vand.u32 %v1179, 2139095040
    %v2052 = vshrl.u32 %v2051, 23
    %v2053 = vsub.s32 %v2052, 127
    %v2054 = vand.u32 2147483647, %v1179
    %v2055 = vand.u32 %v2054, 8388607
    %v2056 = vor.u32 %v2055, 8388608
    %v2057 = vsub.s32 0, %v2056
    %v2058 = vadd.s32 %v2053, 1
    %vm2059 = vcmp.gt.s32.totalorder %v2058, 0
    %v2060 = vsel %vm2059, %v2058, 0
    %v2061 = vshrl.u32 %v2060, 5
    %v2062 = vand.u32 %v2060, 31
    %v2063 = vsub.s32 32, %v2062
    %v2064 = vshrl.u32 683565275, %v2063
    %v2065 = vshll.u32 683565275, %v2062
    %v2066 = vshrl.u32 2475754826, %v2063
    %v2067 = vor.u32 %v2065, %v2066
    %v2068 = vshll.u32 2475754826, %v2062
    %v2069 = vshrl.u32 2131351028, %v2063
    %v2070 = vor.u32 %v2068, %v2069
    %v2071 = vshll.u32 2131351028, %v2062
    %v2072 = vshrl.u32 2102212464, %v2063
    %v2073 = vor.u32 %v2071, %v2072
    %v2074 = vshll.u32 2102212464, %v2062
    %v2075 = vshrl.u32 920167782, %v2063
    %v2076 = vor.u32 %v2074, %v2075
    %v2077 = vshll.u32 920167782, %v2062
    %v2078 = vshrl.u32 1326507024, %v2063
    %v2079 = vor.u32 %v2077, %v2078
    %vm2080 = vcmp.lt.s32.totalorder %v2061, 1
    %vm2081 = vcmp.lt.s32.totalorder %v2061, 2
    %vm2082 = vcmp.lt.s32.totalorder %v2061, 3
    %vm2083 = vcmp.lt.s32.totalorder %v2061, 4
    %v2084 = vsel %vm2080, %v2064, %v2067
    %v2085 = vsel %vm2083, %v2073, 2102212464
    %v2086 = vsel %vm2082, %v2070, %v2085
    %v2087 = vsel %vm2081, %v2084, %v2086
    %v2088 = vsel %vm2080, %v2067, %v2070
    %v2089 = vsel %vm2083, %v2076, 920167782
    %v2090 = vsel %vm2082, %v2073, %v2089
    %v2091 = vsel %vm2081, %v2088, %v2090
    %v2092 = vsel %vm2080, %v2070, %v2073
    %v2093 = vsel %vm2083, %v2079, 1326507024
    %v2094 = vsel %vm2082, %v2076, %v2093
    %v2095 = vsel %vm2081, %v2092, %v2094
    %v2096 = vshll.u32 %v2056, 8
    %v2097 = vmul.u32.u64.compose %v2096, %v2095
    %v2098 = vextract.low.u32 %v2097
    %v2099 = vextract.high.u32 %v2097
    %v2100 = vmul.u32.u64.compose %v2096, %v2091
    %v2101 = vextract.low.u32 %v2100
    %v2102 = vextract.high.u32 %v2100
    %v2103 = vmul.u32 %v2096, %v2087
    %v2104 = vadd.s32 %v2099, %v2101
    %vm2105 = vc.u32 %v2099, %v2101
    %v2106 = vadd.s32 %v2102, 1
    %v2107 = vsel %vm2105, %v2106, %v2102
    %v2108 = vadd.s32 %v2103, %v2107
    %v2109 = vadd.s32 %v2108, 536870912
    %v2110 = vshrl.u32 %v2109, 30
    %v2111 = vshll.u32 %v2110, 30
    %v2112 = vsub.s32 %v2108, %v2111
    %vm2113 = vcmp.lt.s32.totalorder %v2112, 0
    %v2114 = vsub.s32 0, %v2112
    %v2115 = vsel %vm2113, %v2114, %v2112
    %v2116 = vclz %v2115
    %v2117 = vsub.s32 %v2116, 2
    %vm2118 = vcmp.gt.s32.totalorder 0, %v2117
    %v2119 = vsel %vm2118, 0, %v2117
    %v2120 = vsub.s32 32, %v2119
    %v2121 = vshll.u32 %v2112, %v2119
    %v2122 = vshrl.u32 %v2104, %v2120
    %v2123 = vor.u32 %v2121, %v2122
    %v2124 = vsub.s32 4294967266, %v2119
    %v2125 = vadd.s32 %v2124, 127
    %v2126 = vshll.u32 %v2125, 23
    %v2127 = vor.u32 4788187, %v2126
    %v2128 = vand.u32 2147483647, %v2127
    %v2130 = vcvt.s32.f32 %v2123
    %v2131 = vmul.f32 %v2130, %v2128
    %v2132 = vxor.u32 %v2131, 2147483648
    %v2133 = vsel %vm2050, %v2132, %v2131
    %v2134 = vsub.s32 4, %v2110
    %v2135 = vsel %vm2050, %v2134, %v2110
    %v2136 = vsel %vm2049, %v1179, %v2133
    %v2137 = vsel %vm2049, 0, %v2135
    %v2138 = vcosq.f32.pop %v2136
    %v2139 = vsinq.f32.pop %v2136
    %vm2140 = vweird.f32 %v1179
    %v2141 = vand.u32 %v2137, 3
    %vm2142 = vcmp.lt.s32.totalorder %v2141, 2
    %vm2143 = vcmp.eq.s32.totalorder %v2141, 0
    %v2144 = vxor.u32 %v2139, 2147483648
    %v2145 = vsel %vm2143, %v2138, %v2144
    %vm2146 = vcmp.eq.s32.totalorder %v2141, 2
    %v2147 = vxor.u32 %v2138, 2147483648
    %v2148 = vsel %vm2146, %v2147, %v2139
    %v2149 = vsel %vm2142, %v2145, %v2148
    %v2150 = vsel %vm2140, nan, %v2149
    %v2151 = vand.u32 2147483647, %v1185
    %vm2152 = vcmp.le.f32.partialorder %v2151, 0.7853982
    %vm2153 = vcmp.lt.s32.totalorder %v1185, 0
    %v2154 = vand.u32 %v1185, 2139095040
    %v2155 = vshrl.u32 %v2154, 23
    %v2156 = vsub.s32 %v2155, 127
    %v2157 = vand.u32 2147483647, %v1185
    %v2158 = vand.u32 %v2157, 8388607
    %v2159 = vor.u32 %v2158, 8388608
    %v2160 = vsub.s32 0, %v2159
    %v2161 = vadd.s32 %v2156, 1
    %vm2162 = vcmp.gt.s32.totalorder %v2161, 0
    %v2163 = vsel %vm2162, %v2161, 0
    %v2164 = vshrl.u32 %v2163, 5
    %v2165 = vand.u32 %v2163, 31
    %v2166 = vsub.s32 32, %v2165
    %v2167 = vshrl.u32 683565275, %v2166
    %v2168 = vshll.u32 683565275, %v2165
    %v2169 = vshrl.u32 2475754826, %v2166
    %v2170 = vor.u32 %v2168, %v2169
    %v2171 = vshll.u32 2475754826, %v2165
    %v2172 = vshrl.u32 2131351028, %v2166
    %v2173 = vor.u32 %v2171, %v2172
    %v2174 = vshll.u32 2131351028, %v2165
    %v2175 = vshrl.u32 2102212464, %v2166
    %v2176 = vor.u32 %v2174, %v2175
    %v2177 = vshll.u32 2102212464, %v2165
    %v2178 = vshrl.u32 920167782, %v2166
    %v2179 = vor.u32 %v2177, %v2178
    %v2180 = vshll.u32 920167782, %v2165
    %v2181 = vshrl.u32 1326507024, %v2166
    %v2182 = vor.u32 %v2180, %v2181
    %vm2183 = vcmp.lt.s32.totalorder %v2164, 1
    %vm2184 = vcmp.lt.s32.totalorder %v2164, 2
    %vm2185 = vcmp.lt.s32.totalorder %v2164, 3
    %vm2186 = vcmp.lt.s32.totalorder %v2164, 4
    %v2187 = vsel %vm2183, %v2167, %v2170
    %v2188 = vsel %vm2186, %v2176, 2102212464
    %v2189 = vsel %vm2185, %v2173, %v2188
    %v2190 = vsel %vm2184, %v2187, %v2189
    %v2191 = vsel %vm2183, %v2170, %v2173
    %v2192 = vsel %vm2186, %v2179, 920167782
    %v2193 = vsel %vm2185, %v2176, %v2192
    %v2194 = vsel %vm2184, %v2191, %v2193
    %v2195 = vsel %vm2183, %v2173, %v2176
    %v2196 = vsel %vm2186, %v2182, 1326507024
    %v2197 = vsel %vm2185, %v2179, %v2196
    %v2198 = vsel %vm2184, %v2195, %v2197
    %v2199 = vshll.u32 %v2159, 8
    %v2200 = vmul.u32.u64.compose %v2199, %v2198
    %v2201 = vextract.low.u32 %v2200
    %v2202 = vextract.high.u32 %v2200
    %v2203 = vmul.u32.u64.compose %v2199, %v2194
    %v2204 = vextract.low.u32 %v2203
    %v2205 = vextract.high.u32 %v2203
    %v2206 = vmul.u32 %v2199, %v2190
    %v2207 = vadd.s32 %v2202, %v2204
    %vm2208 = vc.u32 %v2202, %v2204
    %v2209 = vadd.s32 %v2205, 1
    %v2210 = vsel %vm2208, %v2209, %v2205
    %v2211 = vadd.s32 %v2206, %v2210
    %v2212 = vadd.s32 %v2211, 536870912
    %v2213 = vshrl.u32 %v2212, 30
    %v2214 = vshll.u32 %v2213, 30
    %v2215 = vsub.s32 %v2211, %v2214
    %vm2216 = vcmp.lt.s32.totalorder %v2215, 0
    %v2217 = vsub.s32 0, %v2215
    %v2218 = vsel %vm2216, %v2217, %v2215
    %v2219 = vclz %v2218
    %v2220 = vsub.s32 %v2219, 2
    %vm2221 = vcmp.gt.s32.totalorder 0, %v2220
    %v2222 = vsel %vm2221, 0, %v2220
    %v2223 = vsub.s32 32, %v2222
    %v2224 = vshll.u32 %v2215, %v2222
    %v2225 = vshrl.u32 %v2207, %v2223
    %v2226 = vor.u32 %v2224, %v2225
    %v2227 = vsub.s32 4294967266, %v2222
    %v2228 = vadd.s32 %v2227, 127
    %v2229 = vshll.u32 %v2228, 23
    %v2230 = vor.u32 4788187, %v2229
    %v2231 = vand.u32 2147483647, %v2230
    %v2233 = vcvt.s32.f32 %v2226
    %v2234 = vmul.f32 %v2233, %v2231
    %v2235 = vxor.u32 %v2234, 2147483648
    %v2236 = vsel %vm2153, %v2235, %v2234
    %v2237 = vsub.s32 4, %v2213
    %v2238 = vsel %vm2153, %v2237, %v2213
    %v2239 = vsel %vm2152, %v1185, %v2236
    %v2240 = vsel %vm2152, 0, %v2238
    %v2241 = vcosq.f32.pop %v2239
    %v2242 = vsinq.f32.pop %v2239
    %vm2243 = vweird.f32 %v1185
    %v2244 = vand.u32 %v2240, 3
    %vm2245 = vcmp.lt.s32.totalorder %v2244, 2
    %vm2246 = vcmp.eq.s32.totalorder %v2244, 0
    %v2247 = vxor.u32 %v2242, 2147483648
    %v2248 = vsel %vm2246, %v2241, %v2247
    %vm2249 = vcmp.eq.s32.totalorder %v2244, 2
    %v2250 = vxor.u32 %v2241, 2147483648
    %v2251 = vsel %vm2249, %v2250, %v2242
    %v2252 = vsel %vm2245, %v2248, %v2251
    %v2253 = vsel %vm2243, nan, %v2252
    %v2254 = vand.u32 2147483647, %v1191
    %vm2255 = vcmp.le.f32.partialorder %v2254, 0.7853982
    %vm2256 = vcmp.lt.s32.totalorder %v1191, 0
    %v2257 = vand.u32 %v1191, 2139095040
    %v2258 = vshrl.u32 %v2257, 23
    %v2259 = vsub.s32 %v2258, 127
    %v2260 = vand.u32 2147483647, %v1191
    %v2261 = vand.u32 %v2260, 8388607
    %v2262 = vor.u32 %v2261, 8388608
    %v2263 = vsub.s32 0, %v2262
    %v2264 = vadd.s32 %v2259, 1
    %vm2265 = vcmp.gt.s32.totalorder %v2264, 0
    %v2266 = vsel %vm2265, %v2264, 0
    %v2267 = vshrl.u32 %v2266, 5
    %v2268 = vand.u32 %v2266, 31
    %v2269 = vsub.s32 32, %v2268
    %v2270 = vshrl.u32 683565275, %v2269
    %v2271 = vshll.u32 683565275, %v2268
    %v2272 = vshrl.u32 2475754826, %v2269
    %v2273 = vor.u32 %v2271, %v2272
    %v2274 = vshll.u32 2475754826, %v2268
    %v2275 = vshrl.u32 2131351028, %v2269
    %v2276 = vor.u32 %v2274, %v2275
    %v2277 = vshll.u32 2131351028, %v2268
    %v2278 = vshrl.u32 2102212464, %v2269
    %v2279 = vor.u32 %v2277, %v2278
    %v2280 = vshll.u32 2102212464, %v2268
    %v2281 = vshrl.u32 920167782, %v2269
    %v2282 = vor.u32 %v2280, %v2281
    %v2283 = vshll.u32 920167782, %v2268
    %v2284 = vshrl.u32 1326507024, %v2269
    %v2285 = vor.u32 %v2283, %v2284
    %vm2286 = vcmp.lt.s32.totalorder %v2267, 1
    %vm2287 = vcmp.lt.s32.totalorder %v2267, 2
    %vm2288 = vcmp.lt.s32.totalorder %v2267, 3
    %vm2289 = vcmp.lt.s32.totalorder %v2267, 4
    %v2290 = vsel %vm2286, %v2270, %v2273
    %v2291 = vsel %vm2289, %v2279, 2102212464
    %v2292 = vsel %vm2288, %v2276, %v2291
    %v2293 = vsel %vm2287, %v2290, %v2292
    %v2294 = vsel %vm2286, %v2273, %v2276
    %v2295 = vsel %vm2289, %v2282, 920167782
    %v2296 = vsel %vm2288, %v2279, %v2295
    %v2297 = vsel %vm2287, %v2294, %v2296
    %v2298 = vsel %vm2286, %v2276, %v2279
    %v2299 = vsel %vm2289, %v2285, 1326507024
    %v2300 = vsel %vm2288, %v2282, %v2299
    %v2301 = vsel %vm2287, %v2298, %v2300
    %v2302 = vshll.u32 %v2262, 8
    %v2303 = vmul.u32.u64.compose %v2302, %v2301
    %v2304 = vextract.low.u32 %v2303
    %v2305 = vextract.high.u32 %v2303
    %v2306 = vmul.u32.u64.compose %v2302, %v2297
    %v2307 = vextract.low.u32 %v2306
    %v2308 = vextract.high.u32 %v2306
    %v2309 = vmul.u32 %v2302, %v2293
    %v2310 = vadd.s32 %v2305, %v2307
    %vm2311 = vc.u32 %v2305, %v2307
    %v2312 = vadd.s32 %v2308, 1
    %v2313 = vsel %vm2311, %v2312, %v2308
    %v2314 = vadd.s32 %v2309, %v2313
    %v2315 = vadd.s32 %v2314, 536870912
    %v2316 = vshrl.u32 %v2315, 30
    %v2317 = vshll.u32 %v2316, 30
    %v2318 = vsub.s32 %v2314, %v2317
    %vm2319 = vcmp.lt.s32.totalorder %v2318, 0
    %v2320 = vsub.s32 0, %v2318
    %v2321 = vsel %vm2319, %v2320, %v2318
    %v2322 = vclz %v2321
    %v2323 = vsub.s32 %v2322, 2
    %vm2324 = vcmp.gt.s32.totalorder 0, %v2323
    %v2325 = vsel %vm2324, 0, %v2323
    %v2326 = vsub.s32 32, %v2325
    %v2327 = vshll.u32 %v2318, %v2325
    %v2328 = vshrl.u32 %v2310, %v2326
    %v2329 = vor.u32 %v2327, %v2328
    %v2330 = vsub.s32 4294967266, %v2325
    %v2331 = vadd.s32 %v2330, 127
    %v2332 = vshll.u32 %v2331, 23
    %v2333 = vor.u32 4788187, %v2332
    %v2334 = vand.u32 2147483647, %v2333
    %v2336 = vcvt.s32.f32 %v2329
    %v2337 = vmul.f32 %v2336, %v2334
    %v2338 = vxor.u32 %v2337, 2147483648
    %v2339 = vsel %vm2256, %v2338, %v2337
    %v2340 = vsub.s32 4, %v2316
    %v2341 = vsel %vm2256, %v2340, %v2316
    %v2342 = vsel %vm2255, %v1191, %v2339
    %v2343 = vsel %vm2255, 0, %v2341
    %v2344 = vcosq.f32.pop %v2342
    %v2345 = vsinq.f32.pop %v2342
    %vm2346 = vweird.f32 %v1191
    %v2347 = vand.u32 %v2343, 3
    %vm2348 = vcmp.lt.s32.totalorder %v2347, 2
    %vm2349 = vcmp.eq.s32.totalorder %v2347, 0
    %v2350 = vxor.u32 %v2345, 2147483648
    %v2351 = vsel %vm2349, %v2344, %v2350
    %vm2352 = vcmp.eq.s32.totalorder %v2347, 2
    %v2353 = vxor.u32 %v2344, 2147483648
    %v2354 = vsel %vm2352, %v2353, %v2345
    %v2355 = vsel %vm2348, %v2351, %v2354
    %v2356 = vsel %vm2346, nan, %v2355
    %v2357 = vand.u32 2147483647, %v1197
    %vm2358 = vcmp.le.f32.partialorder %v2357, 0.7853982
    %vm2359 = vcmp.lt.s32.totalorder %v1197, 0
    %v2360 = vand.u32 %v1197, 2139095040
    %v2361 = vshrl.u32 %v2360, 23
    %v2362 = vsub.s32 %v2361, 127
    %v2363 = vand.u32 2147483647, %v1197
    %v2364 = vand.u32 %v2363, 8388607
    %v2365 = vor.u32 %v2364, 8388608
    %v2366 = vsub.s32 0, %v2365
    %v2367 = vadd.s32 %v2362, 1
    %vm2368 = vcmp.gt.s32.totalorder %v2367, 0
    %v2369 = vsel %vm2368, %v2367, 0
    %v2370 = vshrl.u32 %v2369, 5
    %v2371 = vand.u32 %v2369, 31
    %v2372 = vsub.s32 32, %v2371
    %v2373 = vshrl.u32 683565275, %v2372
    %v2374 = vshll.u32 683565275, %v2371
    %v2375 = vshrl.u32 2475754826, %v2372
    %v2376 = vor.u32 %v2374, %v2375
    %v2377 = vshll.u32 2475754826, %v2371
    %v2378 = vshrl.u32 2131351028, %v2372
    %v2379 = vor.u32 %v2377, %v2378
    %v2380 = vshll.u32 2131351028, %v2371
    %v2381 = vshrl.u32 2102212464, %v2372
    %v2382 = vor.u32 %v2380, %v2381
    %v2383 = vshll.u32 2102212464, %v2371
    %v2384 = vshrl.u32 920167782, %v2372
    %v2385 = vor.u32 %v2383, %v2384
    %v2386 = vshll.u32 920167782, %v2371
    %v2387 = vshrl.u32 1326507024, %v2372
    %v2388 = vor.u32 %v2386, %v2387
    %vm2389 = vcmp.lt.s32.totalorder %v2370, 1
    %vm2390 = vcmp.lt.s32.totalorder %v2370, 2
    %vm2391 = vcmp.lt.s32.totalorder %v2370, 3
    %vm2392 = vcmp.lt.s32.totalorder %v2370, 4
    %v2393 = vsel %vm2389, %v2373, %v2376
    %v2394 = vsel %vm2392, %v2382, 2102212464
    %v2395 = vsel %vm2391, %v2379, %v2394
    %v2396 = vsel %vm2390, %v2393, %v2395
    %v2397 = vsel %vm2389, %v2376, %v2379
    %v2398 = vsel %vm2392, %v2385, 920167782
    %v2399 = vsel %vm2391, %v2382, %v2398
    %v2400 = vsel %vm2390, %v2397, %v2399
    %v2401 = vsel %vm2389, %v2379, %v2382
    %v2402 = vsel %vm2392, %v2388, 1326507024
    %v2403 = vsel %vm2391, %v2385, %v2402
    %v2404 = vsel %vm2390, %v2401, %v2403
    %v2405 = vshll.u32 %v2365, 8
    %v2406 = vmul.u32.u64.compose %v2405, %v2404
    %v2407 = vextract.low.u32 %v2406
    %v2408 = vextract.high.u32 %v2406
    %v2409 = vmul.u32.u64.compose %v2405, %v2400
    %v2410 = vextract.low.u32 %v2409
    %v2411 = vextract.high.u32 %v2409
    %v2412 = vmul.u32 %v2405, %v2396
    %v2413 = vadd.s32 %v2408, %v2410
    %vm2414 = vc.u32 %v2408, %v2410
    %v2415 = vadd.s32 %v2411, 1
    %v2416 = vsel %vm2414, %v2415, %v2411
    %v2417 = vadd.s32 %v2412, %v2416
    %v2418 = vadd.s32 %v2417, 536870912
    %v2419 = vshrl.u32 %v2418, 30
    %v2420 = vshll.u32 %v2419, 30
    %v2421 = vsub.s32 %v2417, %v2420
    %vm2422 = vcmp.lt.s32.totalorder %v2421, 0
    %v2423 = vsub.s32 0, %v2421
    %v2424 = vsel %vm2422, %v2423, %v2421
    %v2425 = vclz %v2424
    %v2426 = vsub.s32 %v2425, 2
    %vm2427 = vcmp.gt.s32.totalorder 0, %v2426
    %v2428 = vsel %vm2427, 0, %v2426
    %v2429 = vsub.s32 32, %v2428
    %v2430 = vshll.u32 %v2421, %v2428
    %v2431 = vshrl.u32 %v2413, %v2429
    %v2432 = vor.u32 %v2430, %v2431
    %v2433 = vsub.s32 4294967266, %v2428
    %v2434 = vadd.s32 %v2433, 127
    %v2435 = vshll.u32 %v2434, 23
    %v2436 = vor.u32 4788187, %v2435
    %v2437 = vand.u32 2147483647, %v2436
    %v2439 = vcvt.s32.f32 %v2432
    %v2440 = vmul.f32 %v2439, %v2437
    %v2441 = vxor.u32 %v2440, 2147483648
    %v2442 = vsel %vm2359, %v2441, %v2440
    %v2443 = vsub.s32 4, %v2419
    %v2444 = vsel %vm2359, %v2443, %v2419
    %v2445 = vsel %vm2358, %v1197, %v2442
    %v2446 = vsel %vm2358, 0, %v2444
    %v2447 = vcosq.f32.pop %v2445
    %v2448 = vsinq.f32.pop %v2445
    %vm2449 = vweird.f32 %v1197
    %v2450 = vand.u32 %v2446, 3
    %vm2451 = vcmp.lt.s32.totalorder %v2450, 2
    %vm2452 = vcmp.eq.s32.totalorder %v2450, 0
    %v2453 = vxor.u32 %v2448, 2147483648
    %v2454 = vsel %vm2452, %v2447, %v2453
    %vm2455 = vcmp.eq.s32.totalorder %v2450, 2
    %v2456 = vxor.u32 %v2447, 2147483648
    %v2457 = vsel %vm2455, %v2456, %v2448
    %v2458 = vsel %vm2451, %v2454, %v2457
    %v2459 = vsel %vm2449, nan, %v2458
    %v2460 = vand.u32 2147483647, %v1203
    %vm2461 = vcmp.le.f32.partialorder %v2460, 0.7853982
    %vm2462 = vcmp.lt.s32.totalorder %v1203, 0
    %v2463 = vand.u32 %v1203, 2139095040
    %v2464 = vshrl.u32 %v2463, 23
    %v2465 = vsub.s32 %v2464, 127
    %v2466 = vand.u32 2147483647, %v1203
    %v2467 = vand.u32 %v2466, 8388607
    %v2468 = vor.u32 %v2467, 8388608
    %v2469 = vsub.s32 0, %v2468
    %v2470 = vadd.s32 %v2465, 1
    %vm2471 = vcmp.gt.s32.totalorder %v2470, 0
    %v2472 = vsel %vm2471, %v2470, 0
    %v2473 = vshrl.u32 %v2472, 5
    %v2474 = vand.u32 %v2472, 31
    %v2475 = vsub.s32 32, %v2474
    %v2476 = vshrl.u32 683565275, %v2475
    %v2477 = vshll.u32 683565275, %v2474
    %v2478 = vshrl.u32 2475754826, %v2475
    %v2479 = vor.u32 %v2477, %v2478
    %v2480 = vshll.u32 2475754826, %v2474
    %v2481 = vshrl.u32 2131351028, %v2475
    %v2482 = vor.u32 %v2480, %v2481
    %v2483 = vshll.u32 2131351028, %v2474
    %v2484 = vshrl.u32 2102212464, %v2475
    %v2485 = vor.u32 %v2483, %v2484
    %v2486 = vshll.u32 2102212464, %v2474
    %v2487 = vshrl.u32 920167782, %v2475
    %v2488 = vor.u32 %v2486, %v2487
    %v2489 = vshll.u32 920167782, %v2474
    %v2490 = vshrl.u32 1326507024, %v2475
    %v2491 = vor.u32 %v2489, %v2490
    %vm2492 = vcmp.lt.s32.totalorder %v2473, 1
    %vm2493 = vcmp.lt.s32.totalorder %v2473, 2
    %vm2494 = vcmp.lt.s32.totalorder %v2473, 3
    %vm2495 = vcmp.lt.s32.totalorder %v2473, 4
    %v2496 = vsel %vm2492, %v2476, %v2479
    %v2497 = vsel %vm2495, %v2485, 2102212464
    %v2498 = vsel %vm2494, %v2482, %v2497
    %v2499 = vsel %vm2493, %v2496, %v2498
    %v2500 = vsel %vm2492, %v2479, %v2482
    %v2501 = vsel %vm2495, %v2488, 920167782
    %v2502 = vsel %vm2494, %v2485, %v2501
    %v2503 = vsel %vm2493, %v2500, %v2502
    %v2504 = vsel %vm2492, %v2482, %v2485
    %v2505 = vsel %vm2495, %v2491, 1326507024
    %v2506 = vsel %vm2494, %v2488, %v2505
    %v2507 = vsel %vm2493, %v2504, %v2506
    %v2508 = vshll.u32 %v2468, 8
    %v2509 = vmul.u32.u64.compose %v2508, %v2507
    %v2510 = vextract.low.u32 %v2509
    %v2511 = vextract.high.u32 %v2509
    %v2512 = vmul.u32.u64.compose %v2508, %v2503
    %v2513 = vextract.low.u32 %v2512
    %v2514 = vextract.high.u32 %v2512
    %v2515 = vmul.u32 %v2508, %v2499
    %v2516 = vadd.s32 %v2511, %v2513
    %vm2517 = vc.u32 %v2511, %v2513
    %v2518 = vadd.s32 %v2514, 1
    %v2519 = vsel %vm2517, %v2518, %v2514
    %v2520 = vadd.s32 %v2515, %v2519
    %v2521 = vadd.s32 %v2520, 536870912
    %v2522 = vshrl.u32 %v2521, 30
    %v2523 = vshll.u32 %v2522, 30
    %v2524 = vsub.s32 %v2520, %v2523
    %vm2525 = vcmp.lt.s32.totalorder %v2524, 0
    %v2526 = vsub.s32 0, %v2524
    %v2527 = vsel %vm2525, %v2526, %v2524
    %v2528 = vclz %v2527
    %v2529 = vsub.s32 %v2528, 2
    %vm2530 = vcmp.gt.s32.totalorder 0, %v2529
    %v2531 = vsel %vm2530, 0, %v2529
    %v2532 = vsub.s32 32, %v2531
    %v2533 = vshll.u32 %v2524, %v2531
    %v2534 = vshrl.u32 %v2516, %v2532
    %v2535 = vor.u32 %v2533, %v2534
    %v2536 = vsub.s32 4294967266, %v2531
    %v2537 = vadd.s32 %v2536, 127
    %v2538 = vshll.u32 %v2537, 23
    %v2539 = vor.u32 4788187, %v2538
    %v2540 = vand.u32 2147483647, %v2539
    %v2542 = vcvt.s32.f32 %v2535
    %v2543 = vmul.f32 %v2542, %v2540
    %v2544 = vxor.u32 %v2543, 2147483648
    %v2545 = vsel %vm2462, %v2544, %v2543
    %v2546 = vsub.s32 4, %v2522
    %v2547 = vsel %vm2462, %v2546, %v2522
    %v2548 = vsel %vm2461, %v1203, %v2545
    %v2549 = vsel %vm2461, 0, %v2547
    %v2550 = vcosq.f32.pop %v2548
    %v2551 = vsinq.f32.pop %v2548
    %vm2552 = vweird.f32 %v1203
    %v2553 = vand.u32 %v2549, 3
    %vm2554 = vcmp.lt.s32.totalorder %v2553, 2
    %vm2555 = vcmp.eq.s32.totalorder %v2553, 0
    %v2556 = vxor.u32 %v2551, 2147483648
    %v2557 = vsel %vm2555, %v2550, %v2556
    %vm2558 = vcmp.eq.s32.totalorder %v2553, 2
    %v2559 = vxor.u32 %v2550, 2147483648
    %v2560 = vsel %vm2558, %v2559, %v2551
    %v2561 = vsel %vm2554, %v2557, %v2560
    %v2562 = vsel %vm2552, nan, %v2561
    %v2563 = vand.u32 2147483647, %v1209
    %vm2564 = vcmp.le.f32.partialorder %v2563, 0.7853982
    %vm2565 = vcmp.lt.s32.totalorder %v1209, 0
    %v2566 = vand.u32 %v1209, 2139095040
    %v2567 = vshrl.u32 %v2566, 23
    %v2568 = vsub.s32 %v2567, 127
    %v2569 = vand.u32 2147483647, %v1209
    %v2570 = vand.u32 %v2569, 8388607
    %v2571 = vor.u32 %v2570, 8388608
    %v2572 = vsub.s32 0, %v2571
    %v2573 = vadd.s32 %v2568, 1
    %vm2574 = vcmp.gt.s32.totalorder %v2573, 0
    %v2575 = vsel %vm2574, %v2573, 0
    %v2576 = vshrl.u32 %v2575, 5
    %v2577 = vand.u32 %v2575, 31
    %v2578 = vsub.s32 32, %v2577
    %v2579 = vshrl.u32 683565275, %v2578
    %v2580 = vshll.u32 683565275, %v2577
    %v2581 = vshrl.u32 2475754826, %v2578
    %v2582 = vor.u32 %v2580, %v2581
    %v2583 = vshll.u32 2475754826, %v2577
    %v2584 = vshrl.u32 2131351028, %v2578
    %v2585 = vor.u32 %v2583, %v2584
    %v2586 = vshll.u32 2131351028, %v2577
    %v2587 = vshrl.u32 2102212464, %v2578
    %v2588 = vor.u32 %v2586, %v2587
    %v2589 = vshll.u32 2102212464, %v2577
    %v2590 = vshrl.u32 920167782, %v2578
    %v2591 = vor.u32 %v2589, %v2590
    %v2592 = vshll.u32 920167782, %v2577
    %v2593 = vshrl.u32 1326507024, %v2578
    %v2594 = vor.u32 %v2592, %v2593
    %vm2595 = vcmp.lt.s32.totalorder %v2576, 1
    %vm2596 = vcmp.lt.s32.totalorder %v2576, 2
    %vm2597 = vcmp.lt.s32.totalorder %v2576, 3
    %vm2598 = vcmp.lt.s32.totalorder %v2576, 4
    %v2599 = vsel %vm2595, %v2579, %v2582
    %v2600 = vsel %vm2598, %v2588, 2102212464
    %v2601 = vsel %vm2597, %v2585, %v2600
    %v2602 = vsel %vm2596, %v2599, %v2601
    %v2603 = vsel %vm2595, %v2582, %v2585
    %v2604 = vsel %vm2598, %v2591, 920167782
    %v2605 = vsel %vm2597, %v2588, %v2604
    %v2606 = vsel %vm2596, %v2603, %v2605
    %v2607 = vsel %vm2595, %v2585, %v2588
    %v2608 = vsel %vm2598, %v2594, 1326507024
    %v2609 = vsel %vm2597, %v2591, %v2608
    %v2610 = vsel %vm2596, %v2607, %v2609
    %v2611 = vshll.u32 %v2571, 8
    %v2612 = vmul.u32.u64.compose %v2611, %v2610
    %v2613 = vextract.low.u32 %v2612
    %v2614 = vextract.high.u32 %v2612
    %v2615 = vmul.u32.u64.compose %v2611, %v2606
    %v2616 = vextract.low.u32 %v2615
    %v2617 = vextract.high.u32 %v2615
    %v2618 = vmul.u32 %v2611, %v2602
    %v2619 = vadd.s32 %v2614, %v2616
    %vm2620 = vc.u32 %v2614, %v2616
    %v2621 = vadd.s32 %v2617, 1
    %v2622 = vsel %vm2620, %v2621, %v2617
    %v2623 = vadd.s32 %v2618, %v2622
    %v2624 = vadd.s32 %v2623, 536870912
    %v2625 = vshrl.u32 %v2624, 30
    %v2626 = vshll.u32 %v2625, 30
    %v2627 = vsub.s32 %v2623, %v2626
    %vm2628 = vcmp.lt.s32.totalorder %v2627, 0
    %v2629 = vsub.s32 0, %v2627
    %v2630 = vsel %vm2628, %v2629, %v2627
    %v2631 = vclz %v2630
    %v2632 = vsub.s32 %v2631, 2
    %vm2633 = vcmp.gt.s32.totalorder 0, %v2632
    %v2634 = vsel %vm2633, 0, %v2632
    %v2635 = vsub.s32 32, %v2634
    %v2636 = vshll.u32 %v2627, %v2634
    %v2637 = vshrl.u32 %v2619, %v2635
    %v2638 = vor.u32 %v2636, %v2637
    %v2639 = vsub.s32 4294967266, %v2634
    %v2640 = vadd.s32 %v2639, 127
    %v2641 = vshll.u32 %v2640, 23
    %v2642 = vor.u32 4788187, %v2641
    %v2643 = vand.u32 2147483647, %v2642
    %v2645 = vcvt.s32.f32 %v2638
    %v2646 = vmul.f32 %v2645, %v2643
    %v2647 = vxor.u32 %v2646, 2147483648
    %v2648 = vsel %vm2565, %v2647, %v2646
    %v2649 = vsub.s32 4, %v2625
    %v2650 = vsel %vm2565, %v2649, %v2625
    %v2651 = vsel %vm2564, %v1209, %v2648
    %v2652 = vsel %vm2564, 0, %v2650
    %v2653 = vcosq.f32.pop %v2651
    %v2654 = vsinq.f32.pop %v2651
    %vm2655 = vweird.f32 %v1209
    %v2656 = vand.u32 %v2652, 3
    %vm2657 = vcmp.lt.s32.totalorder %v2656, 2
    %vm2658 = vcmp.eq.s32.totalorder %v2656, 0
    %v2659 = vxor.u32 %v2654, 2147483648
    %v2660 = vsel %vm2658, %v2653, %v2659
    %vm2661 = vcmp.eq.s32.totalorder %v2656, 2
    %v2662 = vxor.u32 %v2653, 2147483648
    %v2663 = vsel %vm2661, %v2662, %v2654
    %v2664 = vsel %vm2657, %v2660, %v2663
    %v2665 = vsel %vm2655, nan, %v2664
    %v2666 = vand.u32 2147483647, %v1215
    %vm2667 = vcmp.le.f32.partialorder %v2666, 0.7853982
    %vm2668 = vcmp.lt.s32.totalorder %v1215, 0
    %v2669 = vand.u32 %v1215, 2139095040
    %v2670 = vshrl.u32 %v2669, 23
    %v2671 = vsub.s32 %v2670, 127
    %v2672 = vand.u32 2147483647, %v1215
    %v2673 = vand.u32 %v2672, 8388607
    %v2674 = vor.u32 %v2673, 8388608
    %v2675 = vsub.s32 0, %v2674
    %v2676 = vadd.s32 %v2671, 1
    %vm2677 = vcmp.gt.s32.totalorder %v2676, 0
    %v2678 = vsel %vm2677, %v2676, 0
    %v2679 = vshrl.u32 %v2678, 5
    %v2680 = vand.u32 %v2678, 31
    %v2681 = vsub.s32 32, %v2680
    %v2682 = vshrl.u32 683565275, %v2681
    %v2683 = vshll.u32 683565275, %v2680
    %v2684 = vshrl.u32 2475754826, %v2681
    %v2685 = vor.u32 %v2683, %v2684
    %v2686 = vshll.u32 2475754826, %v2680
    %v2687 = vshrl.u32 2131351028, %v2681
    %v2688 = vor.u32 %v2686, %v2687
    %v2689 = vshll.u32 2131351028, %v2680
    %v2690 = vshrl.u32 2102212464, %v2681
    %v2691 = vor.u32 %v2689, %v2690
    %v2692 = vshll.u32 2102212464, %v2680
    %v2693 = vshrl.u32 920167782, %v2681
    %v2694 = vor.u32 %v2692, %v2693
    %v2695 = vshll.u32 920167782, %v2680
    %v2696 = vshrl.u32 1326507024, %v2681
    %v2697 = vor.u32 %v2695, %v2696
    %vm2698 = vcmp.lt.s32.totalorder %v2679, 1
    %vm2699 = vcmp.lt.s32.totalorder %v2679, 2
    %vm2700 = vcmp.lt.s32.totalorder %v2679, 3
    %vm2701 = vcmp.lt.s32.totalorder %v2679, 4
    %v2702 = vsel %vm2698, %v2682, %v2685
    %v2703 = vsel %vm2701, %v2691, 2102212464
    %v2704 = vsel %vm2700, %v2688, %v2703
    %v2705 = vsel %vm2699, %v2702, %v2704
    %v2706 = vsel %vm2698, %v2685, %v2688
    %v2707 = vsel %vm2701, %v2694, 920167782
    %v2708 = vsel %vm2700, %v2691, %v2707
    %v2709 = vsel %vm2699, %v2706, %v2708
    %v2710 = vsel %vm2698, %v2688, %v2691
    %v2711 = vsel %vm2701, %v2697, 1326507024
    %v2712 = vsel %vm2700, %v2694, %v2711
    %v2713 = vsel %vm2699, %v2710, %v2712
    %v2714 = vshll.u32 %v2674, 8
    %v2715 = vmul.u32.u64.compose %v2714, %v2713
    %v2716 = vextract.low.u32 %v2715
    %v2717 = vextract.high.u32 %v2715
    %v2718 = vmul.u32.u64.compose %v2714, %v2709
    %v2719 = vextract.low.u32 %v2718
    %v2720 = vextract.high.u32 %v2718
    %v2721 = vmul.u32 %v2714, %v2705
    %v2722 = vadd.s32 %v2717, %v2719
    %vm2723 = vc.u32 %v2717, %v2719
    %v2724 = vadd.s32 %v2720, 1
    %v2725 = vsel %vm2723, %v2724, %v2720
    %v2726 = vadd.s32 %v2721, %v2725
    %v2727 = vadd.s32 %v2726, 536870912
    %v2728 = vshrl.u32 %v2727, 30
    %v2729 = vshll.u32 %v2728, 30
    %v2730 = vsub.s32 %v2726, %v2729
    %vm2731 = vcmp.lt.s32.totalorder %v2730, 0
    %v2732 = vsub.s32 0, %v2730
    %v2733 = vsel %vm2731, %v2732, %v2730
    %v2734 = vclz %v2733
    %v2735 = vsub.s32 %v2734, 2
    %vm2736 = vcmp.gt.s32.totalorder 0, %v2735
    %v2737 = vsel %vm2736, 0, %v2735
    %v2738 = vsub.s32 32, %v2737
    %v2739 = vshll.u32 %v2730, %v2737
    %v2740 = vshrl.u32 %v2722, %v2738
    %v2741 = vor.u32 %v2739, %v2740
    %v2742 = vsub.s32 4294967266, %v2737
    %v2743 = vadd.s32 %v2742, 127
    %v2744 = vshll.u32 %v2743, 23
    %v2745 = vor.u32 4788187, %v2744
    %v2746 = vand.u32 2147483647, %v2745
    %v2748 = vcvt.s32.f32 %v2741
    %v2749 = vmul.f32 %v2748, %v2746
    %v2750 = vxor.u32 %v2749, 2147483648
    %v2751 = vsel %vm2668, %v2750, %v2749
    %v2752 = vsub.s32 4, %v2728
    %v2753 = vsel %vm2668, %v2752, %v2728
    %v2754 = vsel %vm2667, %v1215, %v2751
    %v2755 = vsel %vm2667, 0, %v2753
    %v2756 = vcosq.f32.pop %v2754
    %v2757 = vsinq.f32.pop %v2754
    %vm2758 = vweird.f32 %v1215
    %v2759 = vand.u32 %v2755, 3
    %vm2760 = vcmp.lt.s32.totalorder %v2759, 2
    %vm2761 = vcmp.eq.s32.totalorder %v2759, 0
    %v2762 = vxor.u32 %v2757, 2147483648
    %v2763 = vsel %vm2761, %v2756, %v2762
    %vm2764 = vcmp.eq.s32.totalorder %v2759, 2
    %v2765 = vxor.u32 %v2756, 2147483648
    %v2766 = vsel %vm2764, %v2765, %v2757
    %v2767 = vsel %vm2760, %v2763, %v2766
    %v2768 = vsel %vm2758, nan, %v2767
    %v2769 = vand.u32 2147483647, %v1221
    %vm2770 = vcmp.le.f32.partialorder %v2769, 0.7853982
    %vm2771 = vcmp.lt.s32.totalorder %v1221, 0
    %v2772 = vand.u32 %v1221, 2139095040
    %v2773 = vshrl.u32 %v2772, 23
    %v2774 = vsub.s32 %v2773, 127
    %v2775 = vand.u32 2147483647, %v1221
    %v2776 = vand.u32 %v2775, 8388607
    %v2777 = vor.u32 %v2776, 8388608
    %v2778 = vsub.s32 0, %v2777
    %v2779 = vadd.s32 %v2774, 1
    %vm2780 = vcmp.gt.s32.totalorder %v2779, 0
    %v2781 = vsel %vm2780, %v2779, 0
    %v2782 = vshrl.u32 %v2781, 5
    %v2783 = vand.u32 %v2781, 31
    %v2784 = vsub.s32 32, %v2783
    %v2785 = vshrl.u32 683565275, %v2784
    %v2786 = vshll.u32 683565275, %v2783
    %v2787 = vshrl.u32 2475754826, %v2784
    %v2788 = vor.u32 %v2786, %v2787
    %v2789 = vshll.u32 2475754826, %v2783
    %v2790 = vshrl.u32 2131351028, %v2784
    %v2791 = vor.u32 %v2789, %v2790
    %v2792 = vshll.u32 2131351028, %v2783
    %v2793 = vshrl.u32 2102212464, %v2784
    %v2794 = vor.u32 %v2792, %v2793
    %v2795 = vshll.u32 2102212464, %v2783
    %v2796 = vshrl.u32 920167782, %v2784
    %v2797 = vor.u32 %v2795, %v2796
    %v2798 = vshll.u32 920167782, %v2783
    %v2799 = vshrl.u32 1326507024, %v2784
    %v2800 = vor.u32 %v2798, %v2799
    %vm2801 = vcmp.lt.s32.totalorder %v2782, 1
    %vm2802 = vcmp.lt.s32.totalorder %v2782, 2
    %vm2803 = vcmp.lt.s32.totalorder %v2782, 3
    %vm2804 = vcmp.lt.s32.totalorder %v2782, 4
    %v2805 = vsel %vm2801, %v2785, %v2788
    %v2806 = vsel %vm2804, %v2794, 2102212464
    %v2807 = vsel %vm2803, %v2791, %v2806
    %v2808 = vsel %vm2802, %v2805, %v2807
    %v2809 = vsel %vm2801, %v2788, %v2791
    %v2810 = vsel %vm2804, %v2797, 920167782
    %v2811 = vsel %vm2803, %v2794, %v2810
    %v2812 = vsel %vm2802, %v2809, %v2811
    %v2813 = vsel %vm2801, %v2791, %v2794
    %v2814 = vsel %vm2804, %v2800, 1326507024
    %v2815 = vsel %vm2803, %v2797, %v2814
    %v2816 = vsel %vm2802, %v2813, %v2815
    %v2817 = vshll.u32 %v2777, 8
    %v2818 = vmul.u32.u64.compose %v2817, %v2816
    %v2819 = vextract.low.u32 %v2818
    %v2820 = vextract.high.u32 %v2818
    %v2821 = vmul.u32.u64.compose %v2817, %v2812
    %v2822 = vextract.low.u32 %v2821
    %v2823 = vextract.high.u32 %v2821
    %v2824 = vmul.u32 %v2817, %v2808
    %v2825 = vadd.s32 %v2820, %v2822
    %vm2826 = vc.u32 %v2820, %v2822
    %v2827 = vadd.s32 %v2823, 1
    %v2828 = vsel %vm2826, %v2827, %v2823
    %v2829 = vadd.s32 %v2824, %v2828
    %v2830 = vadd.s32 %v2829, 536870912
    %v2831 = vshrl.u32 %v2830, 30
    %v2832 = vshll.u32 %v2831, 30
    %v2833 = vsub.s32 %v2829, %v2832
    %vm2834 = vcmp.lt.s32.totalorder %v2833, 0
    %v2835 = vsub.s32 0, %v2833
    %v2836 = vsel %vm2834, %v2835, %v2833
    %v2837 = vclz %v2836
    %v2838 = vsub.s32 %v2837, 2
    %vm2839 = vcmp.gt.s32.totalorder 0, %v2838
    %v2840 = vsel %vm2839, 0, %v2838
    %v2841 = vsub.s32 32, %v2840
    %v2842 = vshll.u32 %v2833, %v2840
    %v2843 = vshrl.u32 %v2825, %v2841
    %v2844 = vor.u32 %v2842, %v2843
    %v2845 = vsub.s32 4294967266, %v2840
    %v2846 = vadd.s32 %v2845, 127
    %v2847 = vshll.u32 %v2846, 23
    %v2848 = vor.u32 4788187, %v2847
    %v2849 = vand.u32 2147483647, %v2848
    %v2851 = vcvt.s32.f32 %v2844
    %v2852 = vmul.f32 %v2851, %v2849
    %v2853 = vxor.u32 %v2852, 2147483648
    %v2854 = vsel %vm2771, %v2853, %v2852
    %v2855 = vsub.s32 4, %v2831
    %v2856 = vsel %vm2771, %v2855, %v2831
    %v2857 = vsel %vm2770, %v1221, %v2854
    %v2858 = vsel %vm2770, 0, %v2856
    %v2859 = vcosq.f32.pop %v2857
    %v2860 = vsinq.f32.pop %v2857
    %vm2861 = vweird.f32 %v1221
    %v2862 = vand.u32 %v2858, 3
    %vm2863 = vcmp.lt.s32.totalorder %v2862, 2
    %vm2864 = vcmp.eq.s32.totalorder %v2862, 0
    %v2865 = vxor.u32 %v2860, 2147483648
    %v2866 = vsel %vm2864, %v2859, %v2865
    %vm2867 = vcmp.eq.s32.totalorder %v2862, 2
    %v2868 = vxor.u32 %v2859, 2147483648
    %v2869 = vsel %vm2867, %v2868, %v2860
    %v2870 = vsel %vm2863, %v2866, %v2869
    %v2871 = vsel %vm2861, nan, %v2870
    %v2872 = vmul.f32 %v1326, 0.125
    %v2873 = vmul.f32 %v1429, 0.125
    %v2874 = vmul.f32 %v1532, 0.125
    %v2875 = vmul.f32 %v1635, 0.125
    %v2876 = vmul.f32 %v1738, 0.125
    %v2877 = vmul.f32 %v1841, 0.125
    %v2878 = vmul.f32 %v1944, 0.125
    %v2879 = vmul.f32 %v2047, 0.125
    %v2880 = vmul.f32 %v2150, 0.125
    %v2881 = vmul.f32 %v2253, 0.125
    %v2882 = vmul.f32 %v2356, 0.125
    %v2883 = vmul.f32 %v2459, 0.125
    %v2884 = vmul.f32 %v2562, 0.125
    %v2885 = vmul.f32 %v2665, 0.125
    %v2886 = vmul.f32 %v2768, 0.125
    %v2887 = vmul.f32 %v2871, 0.125
    %v2888 = vld [vmem:[%s3] sm:$0xff]
    %v2889 = vld [vmem:[%s3 + $0x8] sm:$0xff]
    %v2890 = vld [vmem:[%s3 + $0x10] sm:$0xff]
    %v2891 = vld [vmem:[%s3 + $0x18] sm:$0xff]
    %v2892 = vld [vmem:[%s3 + $0x20] sm:$0xff]
    %v2893 = vld [vmem:[%s3 + $0x28] sm:$0xff]
    %v2894 = vld [vmem:[%s3 + $0x30] sm:$0xff]
    %v2895 = vld [vmem:[%s3 + $0x38] sm:$0xff]
    %v2896 = vld [vmem:[%s3 + $0x40] sm:$0xff]
    %v2897 = vld [vmem:[%s3 + $0x48] sm:$0xff]
    %v2898 = vld [vmem:[%s3 + $0x50] sm:$0xff]
    %v2899 = vld [vmem:[%s3 + $0x58] sm:$0xff]
    %v2900 = vld [vmem:[%s3 + $0x60] sm:$0xff]
    %v2901 = vld [vmem:[%s3 + $0x68] sm:$0xff]
    %v2902 = vld [vmem:[%s3 + $0x70] sm:$0xff]
    %v2903 = vld [vmem:[%s3 + $0x78] sm:$0xff]
    %vm2904 = vcmask 31744
    %v2905 = vsel %vm2904, %v2888, 0.0
    %v2906 = vsel %vm2904, %v2889, 0.0
    %v2907 = vadd.f32 %v2905, %v2906
    %v2908 = vrot.slane %v2907, 4
    %v2909 = vadd.f32 %v2907, %v2908
    %v2910 = vrot.slane %v2909, 2
    %v2911 = vadd.f32 %v2909, %v2910
    %v2912 = vrot.slane %v2911, 1
    %v2913 = vadd.f32 %v2911, %v2912
    %v2914 = vsel %vm2904, %v2890, 0.0
    %v2915 = vsel %vm2904, %v2891, 0.0
    %v2916 = vadd.f32 %v2914, %v2915
    %v2917 = vrot.slane %v2916, 4
    %v2918 = vadd.f32 %v2916, %v2917
    %v2919 = vrot.slane %v2918, 2
    %v2920 = vadd.f32 %v2918, %v2919
    %v2921 = vrot.slane %v2920, 1
    %v2922 = vadd.f32 %v2920, %v2921
    %v2923 = vsel %vm2904, %v2892, 0.0
    %v2924 = vsel %vm2904, %v2893, 0.0
    %v2925 = vadd.f32 %v2923, %v2924
    %v2926 = vrot.slane %v2925, 4
    %v2927 = vadd.f32 %v2925, %v2926
    %v2928 = vrot.slane %v2927, 2
    %v2929 = vadd.f32 %v2927, %v2928
    %v2930 = vrot.slane %v2929, 1
    %v2931 = vadd.f32 %v2929, %v2930
    %v2932 = vsel %vm2904, %v2894, 0.0
    %v2933 = vsel %vm2904, %v2895, 0.0
    %v2934 = vadd.f32 %v2932, %v2933
    %v2935 = vrot.slane %v2934, 4
    %v2936 = vadd.f32 %v2934, %v2935
    %v2937 = vrot.slane %v2936, 2
    %v2938 = vadd.f32 %v2936, %v2937
    %v2939 = vrot.slane %v2938, 1
    %v2940 = vadd.f32 %v2938, %v2939
    %v2941 = vsel %vm2904, %v2896, 0.0
    %v2942 = vsel %vm2904, %v2897, 0.0
    %v2943 = vadd.f32 %v2941, %v2942
    %v2944 = vrot.slane %v2943, 4
    %v2945 = vadd.f32 %v2943, %v2944
    %v2946 = vrot.slane %v2945, 2
    %v2947 = vadd.f32 %v2945, %v2946
    %v2948 = vrot.slane %v2947, 1
    %v2949 = vadd.f32 %v2947, %v2948
    %v2950 = vsel %vm2904, %v2898, 0.0
    %v2951 = vsel %vm2904, %v2899, 0.0
    %v2952 = vadd.f32 %v2950, %v2951
    %v2953 = vrot.slane %v2952, 4
    %v2954 = vadd.f32 %v2952, %v2953
    %v2955 = vrot.slane %v2954, 2
    %v2956 = vadd.f32 %v2954, %v2955
    %v2957 = vrot.slane %v2956, 1
    %v2958 = vadd.f32 %v2956, %v2957
    %v2959 = vsel %vm2904, %v2900, 0.0
    %v2960 = vsel %vm2904, %v2901, 0.0
    %v2961 = vadd.f32 %v2959, %v2960
    %v2962 = vrot.slane %v2961, 4
    %v2963 = vadd.f32 %v2961, %v2962
    %v2964 = vrot.slane %v2963, 2
    %v2965 = vadd.f32 %v2963, %v2964
    %v2966 = vrot.slane %v2965, 1
    %v2967 = vadd.f32 %v2965, %v2966
    %v2968 = vsel %vm2904, %v2902, 0.0
    %v2969 = vsel %vm2904, %v2903, 0.0
    %v2970 = vadd.f32 %v2968, %v2969
    %v2971 = vrot.slane %v2970, 4
    %v2972 = vadd.f32 %v2970, %v2971
    %v2973 = vrot.slane %v2972, 2
    %v2974 = vadd.f32 %v2972, %v2973
    %v2975 = vrot.slane %v2974, 1
    %v2976 = vadd.f32 %v2974, %v2975
    %v2977 = vsel %vm2904, %v2913, 0.0
    %2978 = vadd.xlane.f32.xlu0 %v2977
    %v2979 = vpop.xlane.xlu0 %2978
    %v2980 = vsel %vm2904, %v2922, 0.0
    %2981 = vadd.xlane.f32.xlu0 %v2980
    %v2982 = vpop.xlane.xlu0 %2981
    %v2983 = vsel %vm2904, %v2931, 0.0
    %2984 = vadd.xlane.f32.xlu0 %v2983
    %v2985 = vpop.xlane.xlu0 %2984
    %v2986 = vsel %vm2904, %v2940, 0.0
    %2987 = vadd.xlane.f32.xlu0 %v2986
    %v2988 = vpop.xlane.xlu0 %2987
    %v2989 = vsel %vm2904, %v2949, 0.0
    %2990 = vadd.xlane.f32.xlu0 %v2989
    %v2991 = vpop.xlane.xlu0 %2990
    %v2992 = vsel %vm2904, %v2958, 0.0
    %2993 = vadd.xlane.f32.xlu0 %v2992
    %v2994 = vpop.xlane.xlu0 %2993
    %v2995 = vsel %vm2904, %v2967, 0.0
    %2996 = vadd.xlane.f32.xlu0 %v2995
    %v2997 = vpop.xlane.xlu0 %2996
    %v2998 = vsel %vm2904, %v2976, 0.0
    %2999 = vadd.xlane.f32.xlu0 %v2998
    %v3000 = vpop.xlane.xlu0 %2999
    %v3001 = vmax.f32 %v2979, 1.0
    %v3002 = vmax.f32 %v2982, 1.0
    %v3003 = vmax.f32 %v2985, 1.0
    %v3004 = vmax.f32 %v2988, 1.0
    %v3005 = vmax.f32 %v2991, 1.0
    %v3006 = vmax.f32 %v2994, 1.0
    %v3007 = vmax.f32 %v2997, 1.0
    %v3008 = vmax.f32 %v3000, 1.0
    %v3009 = vrcp.pop %v3001
    %v3010 = vmul.f32 1.0, %v3009
    %v3011 = vrcp.pop %v3002
    %v3012 = vmul.f32 1.0, %v3011
    %v3013 = vrcp.pop %v3003
    %v3014 = vmul.f32 1.0, %v3013
    %v3015 = vrcp.pop %v3004
    %v3016 = vmul.f32 1.0, %v3015
    %v3017 = vrcp.pop %v3005
    %v3018 = vmul.f32 1.0, %v3017
    %v3019 = vrcp.pop %v3006
    %v3020 = vmul.f32 1.0, %v3019
    %v3021 = vrcp.pop %v3007
    %v3022 = vmul.f32 1.0, %v3021
    %v3023 = vrcp.pop %v3008
    %v3024 = vmul.f32 1.0, %v3023
    %3025 = vadd.xlane.f32.xlu0 %v2905
    %v3026 = vpop.xlane.xlu0 %3025
    %3027 = vadd.xlane.f32.xlu0 %v2906
    %v3028 = vpop.xlane.xlu0 %3027
    %3029 = vadd.xlane.f32.xlu0 %v2914
    %v3030 = vpop.xlane.xlu0 %3029
    %3031 = vadd.xlane.f32.xlu0 %v2915
    %v3032 = vpop.xlane.xlu0 %3031
    %3033 = vadd.xlane.f32.xlu0 %v2923
    %v3034 = vpop.xlane.xlu0 %3033
    %3035 = vadd.xlane.f32.xlu0 %v2924
    %v3036 = vpop.xlane.xlu0 %3035
    %3037 = vadd.xlane.f32.xlu0 %v2932
    %v3038 = vpop.xlane.xlu0 %3037
    %3039 = vadd.xlane.f32.xlu0 %v2933
    %v3040 = vpop.xlane.xlu0 %3039
    %3041 = vadd.xlane.f32.xlu0 %v2941
    %v3042 = vpop.xlane.xlu0 %3041
    %3043 = vadd.xlane.f32.xlu0 %v2942
    %v3044 = vpop.xlane.xlu0 %3043
    %3045 = vadd.xlane.f32.xlu0 %v2950
    %v3046 = vpop.xlane.xlu0 %3045
    %3047 = vadd.xlane.f32.xlu0 %v2951
    %v3048 = vpop.xlane.xlu0 %3047
    %3049 = vadd.xlane.f32.xlu0 %v2959
    %v3050 = vpop.xlane.xlu0 %3049
    %3051 = vadd.xlane.f32.xlu0 %v2960
    %v3052 = vpop.xlane.xlu0 %3051
    %3053 = vadd.xlane.f32.xlu0 %v2968
    %v3054 = vpop.xlane.xlu0 %3053
    %3055 = vadd.xlane.f32.xlu0 %v2969
    %v3056 = vpop.xlane.xlu0 %3055
    %v3057 = vmul.f32 %v2913, %v3010
    %v3058 = vmul.f32 %v2922, %v3012
    %v3059 = vmul.f32 %v2931, %v3014
    %v3060 = vmul.f32 %v2940, %v3016
    %v3061 = vmul.f32 %v2949, %v3018
    %v3062 = vmul.f32 %v2958, %v3020
    %v3063 = vmul.f32 %v2967, %v3022
    %v3064 = vmul.f32 %v2976, %v3024
    %v3065 = vmul.f32 %v3026, %v3057
    %v3066 = vmul.f32 %v3028, %v3057
    %v3067 = vmul.f32 %v3030, %v3058
    %v3068 = vmul.f32 %v3032, %v3058
    %v3069 = vmul.f32 %v3034, %v3059
    %v3070 = vmul.f32 %v3036, %v3059
    %v3071 = vmul.f32 %v3038, %v3060
    %v3072 = vmul.f32 %v3040, %v3060
    %v3073 = vmul.f32 %v3042, %v3061
    %v3074 = vmul.f32 %v3044, %v3061
    %v3075 = vmul.f32 %v3046, %v3062
    %v3076 = vmul.f32 %v3048, %v3062
    %v3077 = vmul.f32 %v3050, %v3063
    %v3078 = vmul.f32 %v3052, %v3063
    %v3079 = vmul.f32 %v3054, %v3064
    %v3080 = vmul.f32 %v3056, %v3064
    %v3081 = vsub.f32 %v2888, %v3065
    %v3082 = vsub.f32 %v2889, %v3066
    %v3083 = vsub.f32 %v2890, %v3067
    %v3084 = vsub.f32 %v2891, %v3068
    %v3085 = vsub.f32 %v2892, %v3069
    %v3086 = vsub.f32 %v2893, %v3070
    %v3087 = vsub.f32 %v2894, %v3071
    %v3088 = vsub.f32 %v2895, %v3072
    %v3089 = vsub.f32 %v2896, %v3073
    %v3090 = vsub.f32 %v2897, %v3074
    %v3091 = vsub.f32 %v2898, %v3075
    %v3092 = vsub.f32 %v2899, %v3076
    %v3093 = vsub.f32 %v2900, %v3077
    %v3094 = vsub.f32 %v2901, %v3078
    %v3095 = vsub.f32 %v2902, %v3079
    %v3096 = vsub.f32 %v2903, %v3080
    %3098 = vset.pattern.permute.xlu0 0
    %3099 = vperm.xlu0 %3098, %v3081
    %v3100 = vpop.permute.xlu0 %3099
    %3103 = vset.pattern.permute.xlu0 0
    %3104 = vperm.xlu0 %3103, %v3082
    %v3105 = vpop.permute.xlu0 %3104
    %3108 = vset.pattern.permute.xlu0 0
    %3109 = vperm.xlu0 %3108, %v3083
    %v3110 = vpop.permute.xlu0 %3109
    %3113 = vset.pattern.permute.xlu0 0
    %3114 = vperm.xlu0 %3113, %v3084
    %v3115 = vpop.permute.xlu0 %3114
    %3118 = vset.pattern.permute.xlu0 0
    %3119 = vperm.xlu0 %3118, %v3085
    %v3120 = vpop.permute.xlu0 %3119
    %3123 = vset.pattern.permute.xlu0 0
    %3124 = vperm.xlu0 %3123, %v3086
    %v3125 = vpop.permute.xlu0 %3124
    %3128 = vset.pattern.permute.xlu0 0
    %3129 = vperm.xlu0 %3128, %v3087
    %v3130 = vpop.permute.xlu0 %3129
    %3133 = vset.pattern.permute.xlu0 0
    %3134 = vperm.xlu0 %3133, %v3088
    %v3135 = vpop.permute.xlu0 %3134
    %3138 = vset.pattern.permute.xlu0 0
    %3139 = vperm.xlu0 %3138, %v3089
    %v3140 = vpop.permute.xlu0 %3139
    %3143 = vset.pattern.permute.xlu0 0
    %3144 = vperm.xlu0 %3143, %v3090
    %v3145 = vpop.permute.xlu0 %3144
    %3148 = vset.pattern.permute.xlu0 0
    %3149 = vperm.xlu0 %3148, %v3091
    %v3150 = vpop.permute.xlu0 %3149
    %3153 = vset.pattern.permute.xlu0 0
    %3154 = vperm.xlu0 %3153, %v3092
    %v3155 = vpop.permute.xlu0 %3154
    %3158 = vset.pattern.permute.xlu0 0
    %3159 = vperm.xlu0 %3158, %v3093
    %v3160 = vpop.permute.xlu0 %3159
    %3163 = vset.pattern.permute.xlu0 0
    %3164 = vperm.xlu0 %3163, %v3094
    %v3165 = vpop.permute.xlu0 %3164
    %3168 = vset.pattern.permute.xlu0 0
    %3169 = vperm.xlu0 %3168, %v3095
    %v3170 = vpop.permute.xlu0 %3169
    %3173 = vset.pattern.permute.xlu0 0
    %3174 = vperm.xlu0 %3173, %v3096
    %v3175 = vpop.permute.xlu0 %3174
    %v3177 = vmul.f32 %v3100, %v2872
    %v3178 = vmul.f32 %v3105, %v2873
    %v3179 = vmul.f32 %v3110, %v2874
    %v3180 = vmul.f32 %v3115, %v2875
    %v3181 = vmul.f32 %v3120, %v2876
    %v3182 = vmul.f32 %v3125, %v2877
    %v3183 = vmul.f32 %v3130, %v2878
    %v3184 = vmul.f32 %v3135, %v2879
    %v3185 = vmul.f32 %v3140, %v2880
    %v3186 = vmul.f32 %v3145, %v2881
    %v3187 = vmul.f32 %v3150, %v2882
    %v3188 = vmul.f32 %v3155, %v2883
    %v3189 = vmul.f32 %v3160, %v2884
    %v3190 = vmul.f32 %v3165, %v2885
    %v3191 = vmul.f32 %v3170, %v2886
    %v3192 = vmul.f32 %v3175, %v2887
    %v3193 = vadd.f32 %v3177, %v3178
    %v3194 = vrot.slane %v3193, 4
    %v3195 = vadd.f32 %v3193, %v3194
    %v3196 = vrot.slane %v3195, 2
    %v3197 = vadd.f32 %v3195, %v3196
    %v3198 = vrot.slane %v3197, 1
    %v3199 = vadd.f32 %v3197, %v3198
    %v3200 = vadd.f32 %v3179, %v3180
    %v3201 = vrot.slane %v3200, 4
    %v3202 = vadd.f32 %v3200, %v3201
    %v3203 = vrot.slane %v3202, 2
    %v3204 = vadd.f32 %v3202, %v3203
    %v3205 = vrot.slane %v3204, 1
    %v3206 = vadd.f32 %v3204, %v3205
    %v3207 = vadd.f32 %v3181, %v3182
    %v3208 = vrot.slane %v3207, 4
    %v3209 = vadd.f32 %v3207, %v3208
    %v3210 = vrot.slane %v3209, 2
    %v3211 = vadd.f32 %v3209, %v3210
    %v3212 = vrot.slane %v3211, 1
    %v3213 = vadd.f32 %v3211, %v3212
    %v3214 = vadd.f32 %v3183, %v3184
    %v3215 = vrot.slane %v3214, 4
    %v3216 = vadd.f32 %v3214, %v3215
    %v3217 = vrot.slane %v3216, 2
    %v3218 = vadd.f32 %v3216, %v3217
    %v3219 = vrot.slane %v3218, 1
    %v3220 = vadd.f32 %v3218, %v3219
    %v3221 = vadd.f32 %v3185, %v3186
    %v3222 = vrot.slane %v3221, 4
    %v3223 = vadd.f32 %v3221, %v3222
    %v3224 = vrot.slane %v3223, 2
    %v3225 = vadd.f32 %v3223, %v3224
    %v3226 = vrot.slane %v3225, 1
    %v3227 = vadd.f32 %v3225, %v3226
    %v3228 = vadd.f32 %v3187, %v3188
    %v3229 = vrot.slane %v3228, 4
    %v3230 = vadd.f32 %v3228, %v3229
    %v3231 = vrot.slane %v3230, 2
    %v3232 = vadd.f32 %v3230, %v3231
    %v3233 = vrot.slane %v3232, 1
    %v3234 = vadd.f32 %v3232, %v3233
    %v3235 = vadd.f32 %v3189, %v3190
    %v3236 = vrot.slane %v3235, 4
    %v3237 = vadd.f32 %v3235, %v3236
    %v3238 = vrot.slane %v3237, 2
    %v3239 = vadd.f32 %v3237, %v3238
    %v3240 = vrot.slane %v3239, 1
    %v3241 = vadd.f32 %v3239, %v3240
    %v3242 = vadd.f32 %v3191, %v3192
    %v3243 = vrot.slane %v3242, 4
    %v3244 = vadd.f32 %v3242, %v3243
    %v3245 = vrot.slane %v3244, 2
    %v3246 = vadd.f32 %v3244, %v3245
    %v3247 = vrot.slane %v3246, 1
    %v3248 = vadd.f32 %v3246, %v3247
    %v3249 = vmul.f32 %v3199, %v3199
    %v3250 = vmul.f32 %v3206, %v3206
    %v3251 = vmul.f32 %v3213, %v3213
    %v3252 = vmul.f32 %v3220, %v3220
    %v3253 = vmul.f32 %v3227, %v3227
    %v3254 = vmul.f32 %v3234, %v3234
    %v3255 = vmul.f32 %v3241, %v3241
    %v3256 = vmul.f32 %v3248, %v3248
    %vm3265 = vcmask 1041409
    %v3266 = vsel %vm3265, %v3250, %v3249
    %vm3267 = vcmask 1042434
    %v3268 = vsel %vm3267, %v3251, %v3266
    %vm3269 = vcmask 1043459
    %v3270 = vsel %vm3269, %v3252, %v3268
    %vm3271 = vcmask 1044484
    %v3272 = vsel %vm3271, %v3253, %v3270
    %vm3273 = vcmask 1045509
    %v3274 = vsel %vm3273, %v3254, %v3272
    %vm3275 = vcmask 1046534
    %v3276 = vsel %vm3275, %v3255, %v3274
    %vm3277 = vcmask 1047559
    %v3278 = vsel %vm3277, %v3256, %v3276
    %3280 = vadd.xlane.f32.xlu0 %v3278
    %v3281 = vpop.xlane.xlu0 %3280
    %3282 = vset.pattern.permute.xlu0 1
    %3283 = vperm.xlu0 %3282, %v3081
    %v3284 = vpop.permute.xlu0 %3283
    %3286 = vset.pattern.permute.xlu0 1
    %3287 = vperm.xlu0 %3286, %v3082
    %v3288 = vpop.permute.xlu0 %3287
    %3290 = vset.pattern.permute.xlu0 1
    %3291 = vperm.xlu0 %3290, %v3083
    %v3292 = vpop.permute.xlu0 %3291
    %3294 = vset.pattern.permute.xlu0 1
    %3295 = vperm.xlu0 %3294, %v3084
    %v3296 = vpop.permute.xlu0 %3295
    %3298 = vset.pattern.permute.xlu0 1
    %3299 = vperm.xlu0 %3298, %v3085
    %v3300 = vpop.permute.xlu0 %3299
    %3302 = vset.pattern.permute.xlu0 1
    %3303 = vperm.xlu0 %3302, %v3086
    %v3304 = vpop.permute.xlu0 %3303
    %3306 = vset.pattern.permute.xlu0 1
    %3307 = vperm.xlu0 %3306, %v3087
    %v3308 = vpop.permute.xlu0 %3307
    %3310 = vset.pattern.permute.xlu0 1
    %3311 = vperm.xlu0 %3310, %v3088
    %v3312 = vpop.permute.xlu0 %3311
    %3314 = vset.pattern.permute.xlu0 1
    %3315 = vperm.xlu0 %3314, %v3089
    %v3316 = vpop.permute.xlu0 %3315
    %3318 = vset.pattern.permute.xlu0 1
    %3319 = vperm.xlu0 %3318, %v3090
    %v3320 = vpop.permute.xlu0 %3319
    %3322 = vset.pattern.permute.xlu0 1
    %3323 = vperm.xlu0 %3322, %v3091
    %v3324 = vpop.permute.xlu0 %3323
    %3326 = vset.pattern.permute.xlu0 1
    %3327 = vperm.xlu0 %3326, %v3092
    %v3328 = vpop.permute.xlu0 %3327
    %3330 = vset.pattern.permute.xlu0 1
    %3331 = vperm.xlu0 %3330, %v3093
    %v3332 = vpop.permute.xlu0 %3331
    %3334 = vset.pattern.permute.xlu0 1
    %3335 = vperm.xlu0 %3334, %v3094
    %v3336 = vpop.permute.xlu0 %3335
    %3338 = vset.pattern.permute.xlu0 1
    %3339 = vperm.xlu0 %3338, %v3095
    %v3340 = vpop.permute.xlu0 %3339
    %3342 = vset.pattern.permute.xlu0 1
    %3343 = vperm.xlu0 %3342, %v3096
    %v3344 = vpop.permute.xlu0 %3343
    %v3346 = vmul.f32 %v3284, %v2872
    %v3347 = vmul.f32 %v3288, %v2873
    %v3348 = vmul.f32 %v3292, %v2874
    %v3349 = vmul.f32 %v3296, %v2875
    %v3350 = vmul.f32 %v3300, %v2876
    %v3351 = vmul.f32 %v3304, %v2877
    %v3352 = vmul.f32 %v3308, %v2878
    %v3353 = vmul.f32 %v3312, %v2879
    %v3354 = vmul.f32 %v3316, %v2880
    %v3355 = vmul.f32 %v3320, %v2881
    %v3356 = vmul.f32 %v3324, %v2882
    %v3357 = vmul.f32 %v3328, %v2883
    %v3358 = vmul.f32 %v3332, %v2884
    %v3359 = vmul.f32 %v3336, %v2885
    %v3360 = vmul.f32 %v3340, %v2886
    %v3361 = vmul.f32 %v3344, %v2887
    %v3362 = vadd.f32 %v3346, %v3347
    %v3363 = vrot.slane %v3362, 4
    %v3364 = vadd.f32 %v3362, %v3363
    %v3365 = vrot.slane %v3364, 2
    %v3366 = vadd.f32 %v3364, %v3365
    %v3367 = vrot.slane %v3366, 1
    %v3368 = vadd.f32 %v3366, %v3367
    %v3369 = vadd.f32 %v3348, %v3349
    %v3370 = vrot.slane %v3369, 4
    %v3371 = vadd.f32 %v3369, %v3370
    %v3372 = vrot.slane %v3371, 2
    %v3373 = vadd.f32 %v3371, %v3372
    %v3374 = vrot.slane %v3373, 1
    %v3375 = vadd.f32 %v3373, %v3374
    %v3376 = vadd.f32 %v3350, %v3351
    %v3377 = vrot.slane %v3376, 4
    %v3378 = vadd.f32 %v3376, %v3377
    %v3379 = vrot.slane %v3378, 2
    %v3380 = vadd.f32 %v3378, %v3379
    %v3381 = vrot.slane %v3380, 1
    %v3382 = vadd.f32 %v3380, %v3381
    %v3383 = vadd.f32 %v3352, %v3353
    %v3384 = vrot.slane %v3383, 4
    %v3385 = vadd.f32 %v3383, %v3384
    %v3386 = vrot.slane %v3385, 2
    %v3387 = vadd.f32 %v3385, %v3386
    %v3388 = vrot.slane %v3387, 1
    %v3389 = vadd.f32 %v3387, %v3388
    %v3390 = vadd.f32 %v3354, %v3355
    %v3391 = vrot.slane %v3390, 4
    %v3392 = vadd.f32 %v3390, %v3391
    %v3393 = vrot.slane %v3392, 2
    %v3394 = vadd.f32 %v3392, %v3393
    %v3395 = vrot.slane %v3394, 1
    %v3396 = vadd.f32 %v3394, %v3395
    %v3397 = vadd.f32 %v3356, %v3357
    %v3398 = vrot.slane %v3397, 4
    %v3399 = vadd.f32 %v3397, %v3398
    %v3400 = vrot.slane %v3399, 2
    %v3401 = vadd.f32 %v3399, %v3400
    %v3402 = vrot.slane %v3401, 1
    %v3403 = vadd.f32 %v3401, %v3402
    %v3404 = vadd.f32 %v3358, %v3359
    %v3405 = vrot.slane %v3404, 4
    %v3406 = vadd.f32 %v3404, %v3405
    %v3407 = vrot.slane %v3406, 2
    %v3408 = vadd.f32 %v3406, %v3407
    %v3409 = vrot.slane %v3408, 1
    %v3410 = vadd.f32 %v3408, %v3409
    %v3411 = vadd.f32 %v3360, %v3361
    %v3412 = vrot.slane %v3411, 4
    %v3413 = vadd.f32 %v3411, %v3412
    %v3414 = vrot.slane %v3413, 2
    %v3415 = vadd.f32 %v3413, %v3414
    %v3416 = vrot.slane %v3415, 1
    %v3417 = vadd.f32 %v3415, %v3416
    %v3418 = vmul.f32 %v3368, %v3368
    %v3419 = vmul.f32 %v3375, %v3375
    %v3420 = vmul.f32 %v3382, %v3382
    %v3421 = vmul.f32 %v3389, %v3389
    %v3422 = vmul.f32 %v3396, %v3396
    %v3423 = vmul.f32 %v3403, %v3403
    %v3424 = vmul.f32 %v3410, %v3410
    %v3425 = vmul.f32 %v3417, %v3417
    %v3434 = vsel %vm3265, %v3419, %v3418
    %v3435 = vsel %vm3267, %v3420, %v3434
    %v3436 = vsel %vm3269, %v3421, %v3435
    %v3437 = vsel %vm3271, %v3422, %v3436
    %v3438 = vsel %vm3273, %v3423, %v3437
    %v3439 = vsel %vm3275, %v3424, %v3438
    %v3440 = vsel %vm3277, %v3425, %v3439
    %3442 = vadd.xlane.f32.xlu0 %v3440
    %v3443 = vpop.xlane.xlu0 %3442
    %v3444 = vadd.f32 %v3281, %v3443
    %3445 = vset.pattern.permute.xlu0 2
    %3446 = vperm.xlu0 %3445, %v3081
    %v3447 = vpop.permute.xlu0 %3446
    %3449 = vset.pattern.permute.xlu0 2
    %3450 = vperm.xlu0 %3449, %v3082
    %v3451 = vpop.permute.xlu0 %3450
    %3453 = vset.pattern.permute.xlu0 2
    %3454 = vperm.xlu0 %3453, %v3083
    %v3455 = vpop.permute.xlu0 %3454
    %3457 = vset.pattern.permute.xlu0 2
    %3458 = vperm.xlu0 %3457, %v3084
    %v3459 = vpop.permute.xlu0 %3458
    %3461 = vset.pattern.permute.xlu0 2
    %3462 = vperm.xlu0 %3461, %v3085
    %v3463 = vpop.permute.xlu0 %3462
    %3465 = vset.pattern.permute.xlu0 2
    %3466 = vperm.xlu0 %3465, %v3086
    %v3467 = vpop.permute.xlu0 %3466
    %3469 = vset.pattern.permute.xlu0 2
    %3470 = vperm.xlu0 %3469, %v3087
    %v3471 = vpop.permute.xlu0 %3470
    %3473 = vset.pattern.permute.xlu0 2
    %3474 = vperm.xlu0 %3473, %v3088
    %v3475 = vpop.permute.xlu0 %3474
    %3477 = vset.pattern.permute.xlu0 2
    %3478 = vperm.xlu0 %3477, %v3089
    %v3479 = vpop.permute.xlu0 %3478
    %3481 = vset.pattern.permute.xlu0 2
    %3482 = vperm.xlu0 %3481, %v3090
    %v3483 = vpop.permute.xlu0 %3482
    %3485 = vset.pattern.permute.xlu0 2
    %3486 = vperm.xlu0 %3485, %v3091
    %v3487 = vpop.permute.xlu0 %3486
    %3489 = vset.pattern.permute.xlu0 2
    %3490 = vperm.xlu0 %3489, %v3092
    %v3491 = vpop.permute.xlu0 %3490
    %3493 = vset.pattern.permute.xlu0 2
    %3494 = vperm.xlu0 %3493, %v3093
    %v3495 = vpop.permute.xlu0 %3494
    %3497 = vset.pattern.permute.xlu0 2
    %3498 = vperm.xlu0 %3497, %v3094
    %v3499 = vpop.permute.xlu0 %3498
    %3501 = vset.pattern.permute.xlu0 2
    %3502 = vperm.xlu0 %3501, %v3095
    %v3503 = vpop.permute.xlu0 %3502
    %3505 = vset.pattern.permute.xlu0 2
    %3506 = vperm.xlu0 %3505, %v3096
    %v3507 = vpop.permute.xlu0 %3506
    %v3509 = vmul.f32 %v3447, %v2872
    %v3510 = vmul.f32 %v3451, %v2873
    %v3511 = vmul.f32 %v3455, %v2874
    %v3512 = vmul.f32 %v3459, %v2875
    %v3513 = vmul.f32 %v3463, %v2876
    %v3514 = vmul.f32 %v3467, %v2877
    %v3515 = vmul.f32 %v3471, %v2878
    %v3516 = vmul.f32 %v3475, %v2879
    %v3517 = vmul.f32 %v3479, %v2880
    %v3518 = vmul.f32 %v3483, %v2881
    %v3519 = vmul.f32 %v3487, %v2882
    %v3520 = vmul.f32 %v3491, %v2883
    %v3521 = vmul.f32 %v3495, %v2884
    %v3522 = vmul.f32 %v3499, %v2885
    %v3523 = vmul.f32 %v3503, %v2886
    %v3524 = vmul.f32 %v3507, %v2887
    %v3525 = vadd.f32 %v3509, %v3510
    %v3526 = vrot.slane %v3525, 4
    %v3527 = vadd.f32 %v3525, %v3526
    %v3528 = vrot.slane %v3527, 2
    %v3529 = vadd.f32 %v3527, %v3528
    %v3530 = vrot.slane %v3529, 1
    %v3531 = vadd.f32 %v3529, %v3530
    %v3532 = vadd.f32 %v3511, %v3512
    %v3533 = vrot.slane %v3532, 4
    %v3534 = vadd.f32 %v3532, %v3533
    %v3535 = vrot.slane %v3534, 2
    %v3536 = vadd.f32 %v3534, %v3535
    %v3537 = vrot.slane %v3536, 1
    %v3538 = vadd.f32 %v3536, %v3537
    %v3539 = vadd.f32 %v3513, %v3514
    %v3540 = vrot.slane %v3539, 4
    %v3541 = vadd.f32 %v3539, %v3540
    %v3542 = vrot.slane %v3541, 2
    %v3543 = vadd.f32 %v3541, %v3542
    %v3544 = vrot.slane %v3543, 1
    %v3545 = vadd.f32 %v3543, %v3544
    %v3546 = vadd.f32 %v3515, %v3516
    %v3547 = vrot.slane %v3546, 4
    %v3548 = vadd.f32 %v3546, %v3547
    %v3549 = vrot.slane %v3548, 2
    %v3550 = vadd.f32 %v3548, %v3549
    %v3551 = vrot.slane %v3550, 1
    %v3552 = vadd.f32 %v3550, %v3551
    %v3553 = vadd.f32 %v3517, %v3518
    %v3554 = vrot.slane %v3553, 4
    %v3555 = vadd.f32 %v3553, %v3554
    %v3556 = vrot.slane %v3555, 2
    %v3557 = vadd.f32 %v3555, %v3556
    %v3558 = vrot.slane %v3557, 1
    %v3559 = vadd.f32 %v3557, %v3558
    %v3560 = vadd.f32 %v3519, %v3520
    %v3561 = vrot.slane %v3560, 4
    %v3562 = vadd.f32 %v3560, %v3561
    %v3563 = vrot.slane %v3562, 2
    %v3564 = vadd.f32 %v3562, %v3563
    %v3565 = vrot.slane %v3564, 1
    %v3566 = vadd.f32 %v3564, %v3565
    %v3567 = vadd.f32 %v3521, %v3522
    %v3568 = vrot.slane %v3567, 4
    %v3569 = vadd.f32 %v3567, %v3568
    %v3570 = vrot.slane %v3569, 2
    %v3571 = vadd.f32 %v3569, %v3570
    %v3572 = vrot.slane %v3571, 1
    %v3573 = vadd.f32 %v3571, %v3572
    %v3574 = vadd.f32 %v3523, %v3524
    %v3575 = vrot.slane %v3574, 4
    %v3576 = vadd.f32 %v3574, %v3575
    %v3577 = vrot.slane %v3576, 2
    %v3578 = vadd.f32 %v3576, %v3577
    %v3579 = vrot.slane %v3578, 1
    %v3580 = vadd.f32 %v3578, %v3579
    %v3581 = vmul.f32 %v3531, %v3531
    %v3582 = vmul.f32 %v3538, %v3538
    %v3583 = vmul.f32 %v3545, %v3545
    %v3584 = vmul.f32 %v3552, %v3552
    %v3585 = vmul.f32 %v3559, %v3559
    %v3586 = vmul.f32 %v3566, %v3566
    %v3587 = vmul.f32 %v3573, %v3573
    %v3588 = vmul.f32 %v3580, %v3580
    %v3597 = vsel %vm3265, %v3582, %v3581
    %v3598 = vsel %vm3267, %v3583, %v3597
    %v3599 = vsel %vm3269, %v3584, %v3598
    %v3600 = vsel %vm3271, %v3585, %v3599
    %v3601 = vsel %vm3273, %v3586, %v3600
    %v3602 = vsel %vm3275, %v3587, %v3601
    %v3603 = vsel %vm3277, %v3588, %v3602
    %3605 = vadd.xlane.f32.xlu0 %v3603
    %v3606 = vpop.xlane.xlu0 %3605
    %v3607 = vadd.f32 %v3444, %v3606
    %3608 = vset.pattern.permute.xlu0 3
    %3609 = vperm.xlu0 %3608, %v3081
    %v3610 = vpop.permute.xlu0 %3609
    %3612 = vset.pattern.permute.xlu0 3
    %3613 = vperm.xlu0 %3612, %v3082
    %v3614 = vpop.permute.xlu0 %3613
    %3616 = vset.pattern.permute.xlu0 3
    %3617 = vperm.xlu0 %3616, %v3083
    %v3618 = vpop.permute.xlu0 %3617
    %3620 = vset.pattern.permute.xlu0 3
    %3621 = vperm.xlu0 %3620, %v3084
    %v3622 = vpop.permute.xlu0 %3621
    %3624 = vset.pattern.permute.xlu0 3
    %3625 = vperm.xlu0 %3624, %v3085
    %v3626 = vpop.permute.xlu0 %3625
    %3628 = vset.pattern.permute.xlu0 3
    %3629 = vperm.xlu0 %3628, %v3086
    %v3630 = vpop.permute.xlu0 %3629
    %3632 = vset.pattern.permute.xlu0 3
    %3633 = vperm.xlu0 %3632, %v3087
    %v3634 = vpop.permute.xlu0 %3633
    %3636 = vset.pattern.permute.xlu0 3
    %3637 = vperm.xlu0 %3636, %v3088
    %v3638 = vpop.permute.xlu0 %3637
    %3640 = vset.pattern.permute.xlu0 3
    %3641 = vperm.xlu0 %3640, %v3089
    %v3642 = vpop.permute.xlu0 %3641
    %3644 = vset.pattern.permute.xlu0 3
    %3645 = vperm.xlu0 %3644, %v3090
    %v3646 = vpop.permute.xlu0 %3645
    %3648 = vset.pattern.permute.xlu0 3
    %3649 = vperm.xlu0 %3648, %v3091
    %v3650 = vpop.permute.xlu0 %3649
    %3652 = vset.pattern.permute.xlu0 3
    %3653 = vperm.xlu0 %3652, %v3092
    %v3654 = vpop.permute.xlu0 %3653
    %3656 = vset.pattern.permute.xlu0 3
    %3657 = vperm.xlu0 %3656, %v3093
    %v3658 = vpop.permute.xlu0 %3657
    %3660 = vset.pattern.permute.xlu0 3
    %3661 = vperm.xlu0 %3660, %v3094
    %v3662 = vpop.permute.xlu0 %3661
    %3664 = vset.pattern.permute.xlu0 3
    %3665 = vperm.xlu0 %3664, %v3095
    %v3666 = vpop.permute.xlu0 %3665
    %3668 = vset.pattern.permute.xlu0 3
    %3669 = vperm.xlu0 %3668, %v3096
    %v3670 = vpop.permute.xlu0 %3669
    %v3672 = vmul.f32 %v3610, %v2872
    %v3673 = vmul.f32 %v3614, %v2873
    %v3674 = vmul.f32 %v3618, %v2874
    %v3675 = vmul.f32 %v3622, %v2875
    %v3676 = vmul.f32 %v3626, %v2876
    %v3677 = vmul.f32 %v3630, %v2877
    %v3678 = vmul.f32 %v3634, %v2878
    %v3679 = vmul.f32 %v3638, %v2879
    %v3680 = vmul.f32 %v3642, %v2880
    %v3681 = vmul.f32 %v3646, %v2881
    %v3682 = vmul.f32 %v3650, %v2882
    %v3683 = vmul.f32 %v3654, %v2883
    %v3684 = vmul.f32 %v3658, %v2884
    %v3685 = vmul.f32 %v3662, %v2885
    %v3686 = vmul.f32 %v3666, %v2886
    %v3687 = vmul.f32 %v3670, %v2887
    %v3688 = vadd.f32 %v3672, %v3673
    %v3689 = vrot.slane %v3688, 4
    %v3690 = vadd.f32 %v3688, %v3689
    %v3691 = vrot.slane %v3690, 2
    %v3692 = vadd.f32 %v3690, %v3691
    %v3693 = vrot.slane %v3692, 1
    %v3694 = vadd.f32 %v3692, %v3693
    %v3695 = vadd.f32 %v3674, %v3675
    %v3696 = vrot.slane %v3695, 4
    %v3697 = vadd.f32 %v3695, %v3696
    %v3698 = vrot.slane %v3697, 2
    %v3699 = vadd.f32 %v3697, %v3698
    %v3700 = vrot.slane %v3699, 1
    %v3701 = vadd.f32 %v3699, %v3700
    %v3702 = vadd.f32 %v3676, %v3677
    %v3703 = vrot.slane %v3702, 4
    %v3704 = vadd.f32 %v3702, %v3703
    %v3705 = vrot.slane %v3704, 2
    %v3706 = vadd.f32 %v3704, %v3705
    %v3707 = vrot.slane %v3706, 1
    %v3708 = vadd.f32 %v3706, %v3707
    %v3709 = vadd.f32 %v3678, %v3679
    %v3710 = vrot.slane %v3709, 4
    %v3711 = vadd.f32 %v3709, %v3710
    %v3712 = vrot.slane %v3711, 2
    %v3713 = vadd.f32 %v3711, %v3712
    %v3714 = vrot.slane %v3713, 1
    %v3715 = vadd.f32 %v3713, %v3714
    %v3716 = vadd.f32 %v3680, %v3681
    %v3717 = vrot.slane %v3716, 4
    %v3718 = vadd.f32 %v3716, %v3717
    %v3719 = vrot.slane %v3718, 2
    %v3720 = vadd.f32 %v3718, %v3719
    %v3721 = vrot.slane %v3720, 1
    %v3722 = vadd.f32 %v3720, %v3721
    %v3723 = vadd.f32 %v3682, %v3683
    %v3724 = vrot.slane %v3723, 4
    %v3725 = vadd.f32 %v3723, %v3724
    %v3726 = vrot.slane %v3725, 2
    %v3727 = vadd.f32 %v3725, %v3726
    %v3728 = vrot.slane %v3727, 1
    %v3729 = vadd.f32 %v3727, %v3728
    %v3730 = vadd.f32 %v3684, %v3685
    %v3731 = vrot.slane %v3730, 4
    %v3732 = vadd.f32 %v3730, %v3731
    %v3733 = vrot.slane %v3732, 2
    %v3734 = vadd.f32 %v3732, %v3733
    %v3735 = vrot.slane %v3734, 1
    %v3736 = vadd.f32 %v3734, %v3735
    %v3737 = vadd.f32 %v3686, %v3687
    %v3738 = vrot.slane %v3737, 4
    %v3739 = vadd.f32 %v3737, %v3738
    %v3740 = vrot.slane %v3739, 2
    %v3741 = vadd.f32 %v3739, %v3740
    %v3742 = vrot.slane %v3741, 1
    %v3743 = vadd.f32 %v3741, %v3742
    %v3744 = vmul.f32 %v3694, %v3694
    %v3745 = vmul.f32 %v3701, %v3701
    %v3746 = vmul.f32 %v3708, %v3708
    %v3747 = vmul.f32 %v3715, %v3715
    %v3748 = vmul.f32 %v3722, %v3722
    %v3749 = vmul.f32 %v3729, %v3729
    %v3750 = vmul.f32 %v3736, %v3736
    %v3751 = vmul.f32 %v3743, %v3743
    %v3760 = vsel %vm3265, %v3745, %v3744
    %v3761 = vsel %vm3267, %v3746, %v3760
    %v3762 = vsel %vm3269, %v3747, %v3761
    %v3763 = vsel %vm3271, %v3748, %v3762
    %v3764 = vsel %vm3273, %v3749, %v3763
    %v3765 = vsel %vm3275, %v3750, %v3764
    %v3766 = vsel %vm3277, %v3751, %v3765
    %3768 = vadd.xlane.f32.xlu0 %v3766
    %v3769 = vpop.xlane.xlu0 %3768
    %v3770 = vadd.f32 %v3607, %v3769
    %v3771 = vmul.f32 %v3770, 0.63212055
    %v3773 = vlaneseq
    %v3774 = vand.u32 %v3773, 127
    %v3775 = vlaneseq
    %v3776 = vshrl.u32 %v3775, 7
    %v3777 = vsub.s32 %v3774, %v3776
    %v3778 = vrot.slane %v3771, %v3777
    %vm3780 = vcmask 57344
    %3781 = vst.msk [vmem:[#allocation2] sm:$0x1] %vm3780, %v3778
    // Predicated region
    $region18: #{tpu_custom_call.1} parent=1 // pred_check
      _
    $region19: #{tpu_custom_call.1} parent=1 // pred_check_branch
      %3783 = sbr.rel (0) target = $region21
    $region20: #{tpu_custom_call.1} parent=1 // pred_region
      %s3785 = ssub.s32 16, 16
      %3786 = vsyncadd [#allocation3], %s3785
      %s3788 = sshll.u32 [#allocation2], 4
      %s3789 = int_to_ptr.vmem [resolvable:$true] %s3788
      %3791 = dma.vmem_to_hbm [thread:$0]  %s3789, 16, %s4, [#allocation3]
    $region21: #{tpu_custom_call.1} parent=1 // pred_fallthru
      _
    // Predicated region
    $region22: #{tpu_custom_call.1} parent=1 // pred_check
      _
    $region23: #{tpu_custom_call.1} parent=1 // pred_check_branch
      %3793 = sbr.rel (0) target = $region25
    $region24: #{tpu_custom_call.1} parent=1 // pred_region
      %3794 = dma.done [#allocation3], 16
    $region25: #{tpu_custom_call.1} parent=1 // pred_fallthru
      _
    %3795 = vsyncpa [#allocation3], 1

</llo_original>
